<compile_context>
chip_gen: v6e
topology: v6e:2x2x1
jax: 0.10.0
libtpu: 0.0.40
codegen_flags: <defaults>
</compile_context>

<pallas_src>
import functools

import jax
import jax.numpy as jnp
from jax.experimental import pallas as pl
from jax.experimental.pallas import tpu as pltpu


# ---------------------------------------------------------------------------
# Kernel
# ---------------------------------------------------------------------------
def residual_blk_kernel(*refs, stride, has_conv3):
    """Fused residual block for one batch element.

    refs layout (inputs, outputs, scratch):
      xp_ref  : (1, H+2, W+2, Cin) f32   input, spatially pre-padded by 1
      w1_ref  : (9, Cin, Cout)     bf16  conv1 3x3 taps, (tap, in, out)
      s1_ref  : (1, Cout)          f32   bn1 folded scale
      b1_ref  : (1, Cout)          f32   bn1 folded bias (incl. conv1 bias)
      w2_ref  : (9, Cout, Cout)    bf16  conv2 3x3 taps
      s2_ref  : (1, Cout)          f32
      b2_ref  : (1, Cout)          f32
      [w3_ref : (Cin, Cout)        bf16  1x1 projection shortcut]
      [b3_ref : (1, Cout)          f32 ]
      o_ref   : (1, Ho, Wo, Cout)  f32
      ypad_ref: (Ho+2, Wo+2, Cout) f32   VMEM scratch for conv2 padding
    """
    if has_conv3:
        (xp_ref, w1_ref, s1_ref, b1_ref, w2_ref, s2_ref, b2_ref,
         w3_ref, b3_ref, o_ref, ypad_ref) = refs
    else:
        (xp_ref, w1_ref, s1_ref, b1_ref, w2_ref, s2_ref, b2_ref,
         o_ref, ypad_ref) = refs
        w3_ref = b3_ref = None

    _, Ho, Wo, Cout = o_ref.shape
    M = Ho * Wo

    xp = xp_ref[0]                                  # (H+2, W+2, Cin) f32
    xpb = xp.astype(jnp.bfloat16)                   # bf16 copy for MXU operands

    def conv3x3(src_b16, w_ref, s):
        """3x3 conv as 9 per-tap MXU matmuls with f32 accumulation."""
        c_in = src_b16.shape[-1]
        acc = jnp.zeros((M, Cout), jnp.float32)
        for t in range(9):                          # static unroll: 9 taps
            ky, kx = t // 3, t % 3
            if s == 1:
                sl = src_b16[ky:ky + Ho, kx:kx + Wo, :]
            else:
                # TODO(synk): stride > 1 tap slicing is implemented but not
                # exercised by the demo below (demo uses strides=1).
                sl = jax.lax.slice(
                    src_b16, (ky, kx, 0),
                    (ky + s * (Ho - 1) + 1, kx + s * (Wo - 1) + 1, c_in),
                    (s, s, 1))
            acc = acc + jnp.dot(sl.reshape(M, c_in), w_ref[t],
                                preferred_element_type=jnp.float32)
        return acc                                  # (M, Cout) f32

    # conv1 + bn1 (folded per-channel affine) + relu
    y = conv3x3(xpb, w1_ref, stride)
    y = jnp.maximum(y * s1_ref[...] + b1_ref[...], 0.0)

    # zero-pad y (padding=1) into VMEM scratch for conv2
    ypad_ref[...] = jnp.zeros_like(ypad_ref)
    ypad_ref[pl.ds(1, Ho), pl.ds(1, Wo), :] = y.reshape(Ho, Wo, Cout)
    ypb = ypad_ref[...].astype(jnp.bfloat16)

    # conv2 + bn2 (folded affine)
    y2 = conv3x3(ypb, w2_ref, 1)
    y2 = y2 * s2_ref[...] + b2_ref[...]

    # shortcut path
    if has_conv3:
        if stride == 1:
            xs = xpb[1:1 + Ho, 1:1 + Wo, :]
        else:
            xs = jax.lax.slice(
                xpb, (1, 1, 0),
                (1 + stride * (Ho - 1) + 1, 1 + stride * (Wo - 1) + 1,
                 xpb.shape[-1]),
                (stride, stride, 1))
        short = jnp.dot(xs.reshape(M, xs.shape[-1]), w3_ref[...],
                        preferred_element_type=jnp.float32) + b3_ref[...]
    else:
        # identity shortcut (requires Cin == Cout and stride == 1, same
        # constraint as the PyTorch module)
        short = xp[1:1 + Ho, 1:1 + Wo, :].reshape(M, Cout)

    o_ref[0] = jnp.maximum(y2 + short, 0.0).reshape(Ho, Wo, Cout)


# ---------------------------------------------------------------------------
# Parameter preparation (BN folding, bf16 weights) and wrapper
# ---------------------------------------------------------------------------
def _fold_bn(conv_b, gamma, beta, mean, var, eps=1e-5):
    """Eval-mode BatchNorm(conv(x)+b) == conv(x)*scale + bias."""
    scale = gamma * jax.lax.rsqrt(var + eps)
    bias = beta + scale * (conv_b - mean)
    return scale.reshape(1, -1), bias.reshape(1, -1)


def _prepare_params(p, need_1x1conv):
    cin = p["conv1_w"].shape[2]
    cout = p["conv1_w"].shape[3]
    w1 = p["conv1_w"].reshape(9, cin, cout).astype(jnp.bfloat16)
    s1, b1 = _fold_bn(p["conv1_b"], p["bn1_gamma"], p["bn1_beta"],
                      p["bn1_mean"], p["bn1_var"])
    w2 = p["conv2_w"].reshape(9, cout, cout).astype(jnp.bfloat16)
    s2, b2 = _fold_bn(p["conv2_b"], p["bn2_gamma"], p["bn2_beta"],
                      p["bn2_mean"], p["bn2_var"])
    prep = [w1, s1, b1, w2, s2, b2]
    if need_1x1conv:
        prep.append(p["conv3_w"].reshape(cin, cout).astype(jnp.bfloat16))
        prep.append(p["conv3_b"].reshape(1, cout))
    return prep


def residual_blk(x_nchw, params, *, stride=1, need_1x1conv=False):
    """Residual_blk forward. x_nchw: (B, Cin, H, W) f32 (PyTorch layout)."""
    x = jnp.transpose(x_nchw, (0, 2, 3, 1)).astype(jnp.float32)   # NHWC
    B, H, W, Cin = x.shape
    Cout = params["conv1_w"].shape[3]
    Ho = (H - 1) // stride + 1
    Wo = (W - 1) // stride + 1
    xp = jnp.pad(x, ((0, 0), (1, 1), (1, 1), (0, 0)))             # padding=1
    Hp, Wp = H + 2, W + 2

    prep = _prepare_params(params, need_1x1conv)

    in_specs = [
        pl.BlockSpec((1, Hp, Wp, Cin), lambda b: (b, 0, 0, 0)),   # x (padded)
        pl.BlockSpec((9, Cin, Cout), lambda b: (0, 0, 0)),        # conv1 taps
        pl.BlockSpec((1, Cout), lambda b: (0, 0)),                # bn1 scale
        pl.BlockSpec((1, Cout), lambda b: (0, 0)),                # bn1 bias
        pl.BlockSpec((9, Cout, Cout), lambda b: (0, 0, 0)),       # conv2 taps
        pl.BlockSpec((1, Cout), lambda b: (0, 0)),                # bn2 scale
        pl.BlockSpec((1, Cout), lambda b: (0, 0)),                # bn2 bias
    ]
    if need_1x1conv:
        in_specs += [
            pl.BlockSpec((Cin, Cout), lambda b: (0, 0)),          # conv3 w
            pl.BlockSpec((1, Cout), lambda b: (0, 0)),            # conv3 b
        ]

    kernel = functools.partial(residual_blk_kernel,
                               stride=stride, has_conv3=need_1x1conv)
    out = pl.pallas_call(
        kernel,
        out_shape=jax.ShapeDtypeStruct((B, Ho, Wo, Cout), jnp.float32),
        grid=(B,),
        in_specs=in_specs,
        out_specs=pl.BlockSpec((1, Ho, Wo, Cout), lambda b: (b, 0, 0, 0)),
        scratch_shapes=[pltpu.VMEM((Ho + 2, Wo + 2, Cout), jnp.float32)],
        compiler_params=pltpu.CompilerParams(
            dimension_semantics=("parallel",)),
    )(xp, *prep)
    return jnp.transpose(out, (0, 3, 1, 2))                       # back to NCHW


# ---------------------------------------------------------------------------
# Pure-JAX reference (same bf16-rounded weights, f32 math)
# ---------------------------------------------------------------------------
def residual_blk_reference(x_nchw, params, *, stride=1, need_1x1conv=False):
    x = jnp.transpose(x_nchw, (0, 2, 3, 1)).astype(jnp.float32)
    prep = _prepare_params(params, need_1x1conv)
    w1 = prep[0].astype(jnp.float32); s1, b1 = prep[1], prep[2]
    w2 = prep[3].astype(jnp.float32); s2, b2 = prep[4], prep[5]

    def conv3x3(src, w_taps, s):
        B, H, W, C = src.shape
        Ho = (H - 1) // s + 1
        Wo = (W - 1) // s + 1
        xp = jnp.pad(src, ((0, 0), (1, 1), (1, 1), (0, 0)))
        out = jnp.zeros((B, Ho, Wo, w_taps.shape[-1]), jnp.float32)
        for t in range(9):
            ky, kx = t // 3, t % 3
            sl = xp[:, ky:ky + s * (Ho - 1) + 1:s,
                    kx:kx + s * (Wo - 1) + 1:s, :]
            out = out + jnp.einsum('bhwc,cd->bhwd', sl, w_taps[t],
                                   precision=jax.lax.Precision.HIGHEST)
        return out

    y = jnp.maximum(conv3x3(x, w1, stride) * s1 + b1, 0.0)
    y2 = conv3x3(y, w2, 1) * s2 + b2
    xs = x[:, ::stride, ::stride, :]
    if need_1x1conv:
        w3 = prep[6].astype(jnp.float32); b3 = prep[7]
        short = jnp.einsum('bhwc,cd->bhwd', xs, w3,
                           precision=jax.lax.Precision.HIGHEST) + b3
    else:
        short = xs
    out = jnp.maximum(y2 + short, 0.0)
    return jnp.transpose(out, (0, 3, 1, 2))


# ---------------------------------------------------------------------------
# Parameter init
# ---------------------------------------------------------------------------
def init_residual_blk_params(key, in_channels, out_channels, need_1x1conv):
    ks = jax.random.split(key, 8)

    def bn_params(k, c):
        k1, k2, k3, k4 = jax.random.split(k, 4)
        return (1.0 + 0.1 * jax.random.normal(k1, (c,), jnp.float32),
                0.1 * jax.random.normal(k2, (c,), jnp.float32),
                0.1 * jax.random.normal(k3, (c,), jnp.float32),
                jax.random.uniform(k4, (c,), jnp.float32, 0.5, 1.5))

    g1, bt1, m1, v1 = bn_params(ks[4], out_channels)
    g2, bt2, m2, v2 = bn_params(ks[5], out_channels)
    p = {
        # conv weights stored pre-transposed to HWIO = (ky, kx, in, out)
        "conv1_w": 0.1 * jax.random.normal(
            ks[0], (3, 3, in_channels, out_channels), jnp.float32),
        "conv1_b": 0.1 * jax.random.normal(ks[1], (out_channels,), jnp.float32),
        "conv2_w": 0.1 * jax.random.normal(
            ks[2], (3, 3, out_channels, out_channels), jnp.float32),
        "conv2_b": 0.1 * jax.random.normal(ks[3], (out_channels,), jnp.float32),
        "bn1_gamma": g1, "bn1_beta": bt1, "bn1_mean": m1, "bn1_var": v1,
        "bn2_gamma": g2, "bn2_beta": bt2, "bn2_mean": m2, "bn2_var": v2,
    }
    if need_1x1conv:
        p["conv3_w"] = 0.1 * jax.random.normal(
            ks[6], (1, 1, in_channels, out_channels), jnp.float32)
        p["conv3_b"] = 0.1 * jax.random.normal(
            ks[7], (out_channels,), jnp.float32)
    return p


if __name__ == "__main__":
    key = jax.random.PRNGKey(0)
    k_x, k_pA, k_pB = jax.random.split(key, 3)

    B, Cin, Hs, Ws = 2, 4, 16, 16
    x = jax.random.normal(k_x, (B, Cin, Hs, Ws), jnp.float32)

    # Config A: Residual_blk(4, 4) — identity shortcut.
    pA = init_residual_blk_params(k_pA, Cin, Cin, need_1x1conv=False)
    outA = residual_blk(x, pA, stride=1, need_1x1conv=False)
    refA = residual_blk_reference(x, pA, stride=1, need_1x1conv=False)

    # Config B: Residual_blk(4, 8, need_1x1conv=True) — 1x1 projection shortcut.
    pB = init_residual_blk_params(k_pB, Cin, 8, need_1x1conv=True)
    outB = residual_blk(x, pB, stride=1, need_1x1conv=True)
    refB = residual_blk_reference(x, pB, stride=1, need_1x1conv=True)

    outA, outB = jax.block_until_ready((outA, outB))
    assert outA.shape == (B, Cin, Hs, Ws)
    assert outB.shape == (B, 8, Hs, Ws)
    assert bool(jnp.all(jnp.isfinite(outA))) and bool(jnp.all(jnp.isfinite(outB)))
    # Loose tolerance: kernel matmuls use bf16 inputs (f32 accumulation).
    assert bool(jnp.allclose(outA, refA, atol=5e-2, rtol=1e-1))
    assert bool(jnp.allclose(outB, refB, atol=5e-2, rtol=1e-1))
    print("KERNEL_OK")
</pallas_src>

<mosaic_0001>
module attributes {stable_mosaic.version = 11 : i64} {
  func.func @residual_blk_kernel(%arg0: i32, %arg1: memref<1x18x18x4xf32, #tpu.memory_space<vmem>>, %arg2: memref<9x4x4xbf16, #tpu.memory_space<vmem>>, %arg3: memref<1x4xf32, #tpu.memory_space<vmem>>, %arg4: memref<1x4xf32, #tpu.memory_space<vmem>>, %arg5: memref<9x4x4xbf16, #tpu.memory_space<vmem>>, %arg6: memref<1x4xf32, #tpu.memory_space<vmem>>, %arg7: memref<1x4xf32, #tpu.memory_space<vmem>>, %arg8: memref<1x16x16x4xf32, #tpu.memory_space<vmem>>, %arg9: memref<18x18x4xf32, #tpu.memory_space<vmem>>) attributes {dimension_semantics = [#tpu.dimension_semantics<parallel>], iteration_bounds = array<i64: 2>, scalar_prefetch = 0 : i64, scratch_operands = 1 : i64, tpu.core_type = #tpu.core_type<tc>, window_params = [{transform_indices = @transform_0, window_bounds = array<i64: 1, 18, 18, 4>}, {pipeline_mode = #tpu.pipeline_mode<synchronous>, transform_indices = @transform_1, window_bounds = array<i64: 9, 4, 4>}, {pipeline_mode = #tpu.pipeline_mode<synchronous>, transform_indices = @transform_2, window_bounds = array<i64: 1, 4>}, {pipeline_mode = #tpu.pipeline_mode<synchronous>, transform_indices = @transform_3, window_bounds = array<i64: 1, 4>}, {pipeline_mode = #tpu.pipeline_mode<synchronous>, transform_indices = @transform_4, window_bounds = array<i64: 9, 4, 4>}, {pipeline_mode = #tpu.pipeline_mode<synchronous>, transform_indices = @transform_5, window_bounds = array<i64: 1, 4>}, {pipeline_mode = #tpu.pipeline_mode<synchronous>, transform_indices = @transform_6, window_bounds = array<i64: 1, 4>}, {transform_indices = @transform_7, window_bounds = array<i64: 1, 16, 16, 4>}]} {
    %c0 = arith.constant 0 : index
    %c0_0 = arith.constant 0 : index
    %c0_1 = arith.constant 0 : index
    %c0_2 = arith.constant 0 : index
    %0 = vector.load %arg1[%c0, %c0_0, %c0_1, %c0_2] : memref<1x18x18x4xf32, #tpu.memory_space<vmem>>, vector<1x18x18x4xf32>
    %1 = vector.shape_cast %0 : vector<1x18x18x4xf32> to vector<18x18x4xf32>
    %2 = arith.truncf %1 : vector<18x18x4xf32> to vector<18x18x4xbf16>
    %cst = arith.constant 0.000000e+00 : f32
    %3 = vector.broadcast %cst : f32 to vector<256x4xf32>
    %4 = vector.extract_strided_slice %2 {offsets = [0, 0, 0], sizes = [16, 16, 4], strides = [1, 1, 1]} : vector<18x18x4xbf16> to vector<16x16x4xbf16>
    %5 = vector.shape_cast %4 : vector<16x16x4xbf16> to vector<256x4xbf16>
    %c0_3 = arith.constant 0 : index
    %c0_4 = arith.constant 0 : index
    %c0_5 = arith.constant 0 : index
    %6 = vector.load %arg2[%c0_3, %c0_4, %c0_5] : memref<9x4x4xbf16, #tpu.memory_space<vmem>>, vector<1x4x4xbf16>
    %7 = vector.shape_cast %6 : vector<1x4x4xbf16> to vector<4x4xbf16>
    %cst_6 = arith.constant dense<0.000000e+00> : vector<256x4xf32>
    %8 = tpu.matmul %5, %7, %cst_6 {dimension_numbers = #tpu.dot_dimension_numbers<[1], [0], [0], [1], [0, 0, 1, 1], [], []>} : vector<256x4xbf16>, vector<4x4xbf16>, vector<256x4xf32> -> vector<256x4xf32>
    %9 = arith.addf %3, %8 : vector<256x4xf32>
    %10 = vector.extract_strided_slice %2 {offsets = [0, 1, 0], sizes = [16, 16, 4], strides = [1, 1, 1]} : vector<18x18x4xbf16> to vector<16x16x4xbf16>
    %11 = vector.shape_cast %10 : vector<16x16x4xbf16> to vector<256x4xbf16>
    %c1 = arith.constant 1 : index
    %c0_7 = arith.constant 0 : index
    %c0_8 = arith.constant 0 : index
    %12 = vector.load %arg2[%c1, %c0_7, %c0_8] : memref<9x4x4xbf16, #tpu.memory_space<vmem>>, vector<1x4x4xbf16>
    %13 = vector.shape_cast %12 : vector<1x4x4xbf16> to vector<4x4xbf16>
    %cst_9 = arith.constant dense<0.000000e+00> : vector<256x4xf32>
    %14 = tpu.matmul %11, %13, %cst_9 {dimension_numbers = #tpu.dot_dimension_numbers<[1], [0], [0], [1], [0, 0, 1, 1], [], []>} : vector<256x4xbf16>, vector<4x4xbf16>, vector<256x4xf32> -> vector<256x4xf32>
    %15 = arith.addf %9, %14 : vector<256x4xf32>
    %16 = vector.extract_strided_slice %2 {offsets = [0, 2, 0], sizes = [16, 16, 4], strides = [1, 1, 1]} : vector<18x18x4xbf16> to vector<16x16x4xbf16>
    %17 = vector.shape_cast %16 : vector<16x16x4xbf16> to vector<256x4xbf16>
    %c2 = arith.constant 2 : index
    %c0_10 = arith.constant 0 : index
    %c0_11 = arith.constant 0 : index
    %18 = vector.load %arg2[%c2, %c0_10, %c0_11] : memref<9x4x4xbf16, #tpu.memory_space<vmem>>, vector<1x4x4xbf16>
    %19 = vector.shape_cast %18 : vector<1x4x4xbf16> to vector<4x4xbf16>
    %cst_12 = arith.constant dense<0.000000e+00> : vector<256x4xf32>
    %20 = tpu.matmul %17, %19, %cst_12 {dimension_numbers = #tpu.dot_dimension_numbers<[1], [0], [0], [1], [0, 0, 1, 1], [], []>} : vector<256x4xbf16>, vector<4x4xbf16>, vector<256x4xf32> -> vector<256x4xf32>
    %21 = arith.addf %15, %20 : vector<256x4xf32>
    %22 = vector.extract_strided_slice %2 {offsets = [1, 0, 0], sizes = [16, 16, 4], strides = [1, 1, 1]} : vector<18x18x4xbf16> to vector<16x16x4xbf16>
    %23 = vector.shape_cast %22 : vector<16x16x4xbf16> to vector<256x4xbf16>
    %c3 = arith.constant 3 : index
    %c0_13 = arith.constant 0 : index
    %c0_14 = arith.constant 0 : index
    %24 = vector.load %arg2[%c3, %c0_13, %c0_14] : memref<9x4x4xbf16, #tpu.memory_space<vmem>>, vector<1x4x4xbf16>
    %25 = vector.shape_cast %24 : vector<1x4x4xbf16> to vector<4x4xbf16>
    %cst_15 = arith.constant dense<0.000000e+00> : vector<256x4xf32>
    %26 = tpu.matmul %23, %25, %cst_15 {dimension_numbers = #tpu.dot_dimension_numbers<[1], [0], [0], [1], [0, 0, 1, 1], [], []>} : vector<256x4xbf16>, vector<4x4xbf16>, vector<256x4xf32> -> vector<256x4xf32>
    %27 = arith.addf %21, %26 : vector<256x4xf32>
    %28 = vector.extract_strided_slice %2 {offsets = [1, 1, 0], sizes = [16, 16, 4], strides = [1, 1, 1]} : vector<18x18x4xbf16> to vector<16x16x4xbf16>
    %29 = vector.shape_cast %28 : vector<16x16x4xbf16> to vector<256x4xbf16>
    %c4 = arith.constant 4 : index
    %c0_16 = arith.constant 0 : index
    %c0_17 = arith.constant 0 : index
    %30 = vector.load %arg2[%c4, %c0_16, %c0_17] : memref<9x4x4xbf16, #tpu.memory_space<vmem>>, vector<1x4x4xbf16>
    %31 = vector.shape_cast %30 : vector<1x4x4xbf16> to vector<4x4xbf16>
    %cst_18 = arith.constant dense<0.000000e+00> : vector<256x4xf32>
    %32 = tpu.matmul %29, %31, %cst_18 {dimension_numbers = #tpu.dot_dimension_numbers<[1], [0], [0], [1], [0, 0, 1, 1], [], []>} : vector<256x4xbf16>, vector<4x4xbf16>, vector<256x4xf32> -> vector<256x4xf32>
    %33 = arith.addf %27, %32 : vector<256x4xf32>
    %34 = vector.extract_strided_slice %2 {offsets = [1, 2, 0], sizes = [16, 16, 4], strides = [1, 1, 1]} : vector<18x18x4xbf16> to vector<16x16x4xbf16>
    %35 = vector.shape_cast %34 : vector<16x16x4xbf16> to vector<256x4xbf16>
    %c5 = arith.constant 5 : index
    %c0_19 = arith.constant 0 : index
    %c0_20 = arith.constant 0 : index
    %36 = vector.load %arg2[%c5, %c0_19, %c0_20] : memref<9x4x4xbf16, #tpu.memory_space<vmem>>, vector<1x4x4xbf16>
    %37 = vector.shape_cast %36 : vector<1x4x4xbf16> to vector<4x4xbf16>
    %cst_21 = arith.constant dense<0.000000e+00> : vector<256x4xf32>
    %38 = tpu.matmul %35, %37, %cst_21 {dimension_numbers = #tpu.dot_dimension_numbers<[1], [0], [0], [1], [0, 0, 1, 1], [], []>} : vector<256x4xbf16>, vector<4x4xbf16>, vector<256x4xf32> -> vector<256x4xf32>
    %39 = arith.addf %33, %38 : vector<256x4xf32>
    %40 = vector.extract_strided_slice %2 {offsets = [2, 0, 0], sizes = [16, 16, 4], strides = [1, 1, 1]} : vector<18x18x4xbf16> to vector<16x16x4xbf16>
    %41 = vector.shape_cast %40 : vector<16x16x4xbf16> to vector<256x4xbf16>
    %c6 = arith.constant 6 : index
    %c0_22 = arith.constant 0 : index
    %c0_23 = arith.constant 0 : index
    %42 = vector.load %arg2[%c6, %c0_22, %c0_23] : memref<9x4x4xbf16, #tpu.memory_space<vmem>>, vector<1x4x4xbf16>
    %43 = vector.shape_cast %42 : vector<1x4x4xbf16> to vector<4x4xbf16>
    %cst_24 = arith.constant dense<0.000000e+00> : vector<256x4xf32>
    %44 = tpu.matmul %41, %43, %cst_24 {dimension_numbers = #tpu.dot_dimension_numbers<[1], [0], [0], [1], [0, 0, 1, 1], [], []>} : vector<256x4xbf16>, vector<4x4xbf16>, vector<256x4xf32> -> vector<256x4xf32>
    %45 = arith.addf %39, %44 : vector<256x4xf32>
    %46 = vector.extract_strided_slice %2 {offsets = [2, 1, 0], sizes = [16, 16, 4], strides = [1, 1, 1]} : vector<18x18x4xbf16> to vector<16x16x4xbf16>
    %47 = vector.shape_cast %46 : vector<16x16x4xbf16> to vector<256x4xbf16>
    %c7 = arith.constant 7 : index
    %c0_25 = arith.constant 0 : index
    %c0_26 = arith.constant 0 : index
    %48 = vector.load %arg2[%c7, %c0_25, %c0_26] : memref<9x4x4xbf16, #tpu.memory_space<vmem>>, vector<1x4x4xbf16>
    %49 = vector.shape_cast %48 : vector<1x4x4xbf16> to vector<4x4xbf16>
    %cst_27 = arith.constant dense<0.000000e+00> : vector<256x4xf32>
    %50 = tpu.matmul %47, %49, %cst_27 {dimension_numbers = #tpu.dot_dimension_numbers<[1], [0], [0], [1], [0, 0, 1, 1], [], []>} : vector<256x4xbf16>, vector<4x4xbf16>, vector<256x4xf32> -> vector<256x4xf32>
    %51 = arith.addf %45, %50 : vector<256x4xf32>
    %52 = vector.extract_strided_slice %2 {offsets = [2, 2, 0], sizes = [16, 16, 4], strides = [1, 1, 1]} : vector<18x18x4xbf16> to vector<16x16x4xbf16>
    %53 = vector.shape_cast %52 : vector<16x16x4xbf16> to vector<256x4xbf16>
    %c8 = arith.constant 8 : index
    %c0_28 = arith.constant 0 : index
    %c0_29 = arith.constant 0 : index
    %54 = vector.load %arg2[%c8, %c0_28, %c0_29] : memref<9x4x4xbf16, #tpu.memory_space<vmem>>, vector<1x4x4xbf16>
    %55 = vector.shape_cast %54 : vector<1x4x4xbf16> to vector<4x4xbf16>
    %cst_30 = arith.constant dense<0.000000e+00> : vector<256x4xf32>
    %56 = tpu.matmul %53, %55, %cst_30 {dimension_numbers = #tpu.dot_dimension_numbers<[1], [0], [0], [1], [0, 0, 1, 1], [], []>} : vector<256x4xbf16>, vector<4x4xbf16>, vector<256x4xf32> -> vector<256x4xf32>
    %57 = arith.addf %51, %56 : vector<256x4xf32>
    %c0_31 = arith.constant 0 : index
    %c0_32 = arith.constant 0 : index
    %58 = vector.load %arg3[%c0_31, %c0_32] : memref<1x4xf32, #tpu.memory_space<vmem>>, vector<1x4xf32>
    %59 = vector.broadcast %58 : vector<1x4xf32> to vector<256x4xf32>
    %60 = arith.mulf %57, %59 : vector<256x4xf32>
    %c0_33 = arith.constant 0 : index
    %c0_34 = arith.constant 0 : index
    %61 = vector.load %arg4[%c0_33, %c0_34] : memref<1x4xf32, #tpu.memory_space<vmem>>, vector<1x4xf32>
    %62 = vector.broadcast %61 : vector<1x4xf32> to vector<256x4xf32>
    %63 = arith.addf %60, %62 : vector<256x4xf32>
    %cst_35 = arith.constant 0.000000e+00 : f32
    %64 = vector.broadcast %cst_35 : f32 to vector<256x4xf32>
    %65 = arith.maximumf %63, %64 : vector<256x4xf32>
    %cst_36 = arith.constant 0.000000e+00 : f32
    %66 = vector.broadcast %cst_36 : f32 to vector<18x18x4xf32>
    %c0_37 = arith.constant 0 : index
    %c0_38 = arith.constant 0 : index
    %c0_39 = arith.constant 0 : index
    %67 = vector.load %arg9[%c0_37, %c0_38, %c0_39] : memref<18x18x4xf32, #tpu.memory_space<vmem>>, vector<18x18x4xf32>
    tpu.vector_store %arg9[%c0_37, %c0_38, %c0_39], %66 {strides = array<i32>} : memref<18x18x4xf32, #tpu.memory_space<vmem>>, vector<18x18x4xf32>,
    %68 = vector.shape_cast %65 : vector<256x4xf32> to vector<16x16x4xf32>
    %c1_40 = arith.constant 1 : index
    %c1_41 = arith.constant 1 : index
    %c0_42 = arith.constant 0 : index
    %69 = vector.load %arg9[%c1_40, %c1_41, %c0_42] : memref<18x18x4xf32, #tpu.memory_space<vmem>>, vector<16x16x4xf32>
    tpu.vector_store %arg9[%c1_40, %c1_41, %c0_42], %68 {strides = array<i32>} : memref<18x18x4xf32, #tpu.memory_space<vmem>>, vector<16x16x4xf32>,
    %c0_43 = arith.constant 0 : index
    %c0_44 = arith.constant 0 : index
    %c0_45 = arith.constant 0 : index
    %70 = vector.load %arg9[%c0_43, %c0_44, %c0_45] : memref<18x18x4xf32, #tpu.memory_space<vmem>>, vector<18x18x4xf32>
    %71 = arith.truncf %70 : vector<18x18x4xf32> to vector<18x18x4xbf16>
    %cst_46 = arith.constant 0.000000e+00 : f32
    %72 = vector.broadcast %cst_46 : f32 to vector<256x4xf32>
    %73 = vector.extract_strided_slice %71 {offsets = [0, 0, 0], sizes = [16, 16, 4], strides = [1, 1, 1]} : vector<18x18x4xbf16> to vector<16x16x4xbf16>
    %74 = vector.shape_cast %73 : vector<16x16x4xbf16> to vector<256x4xbf16>
    %c0_47 = arith.constant 0 : index
    %c0_48 = arith.constant 0 : index
    %c0_49 = arith.constant 0 : index
    %75 = vector.load %arg5[%c0_47, %c0_48, %c0_49] : memref<9x4x4xbf16, #tpu.memory_space<vmem>>, vector<1x4x4xbf16>
    %76 = vector.shape_cast %75 : vector<1x4x4xbf16> to vector<4x4xbf16>
    %cst_50 = arith.constant dense<0.000000e+00> : vector<256x4xf32>
    %77 = tpu.matmul %74, %76, %cst_50 {dimension_numbers = #tpu.dot_dimension_numbers<[1], [0], [0], [1], [0, 0, 1, 1], [], []>} : vector<256x4xbf16>, vector<4x4xbf16>, vector<256x4xf32> -> vector<256x4xf32>
    %78 = arith.addf %72, %77 : vector<256x4xf32>
    %79 = vector.extract_strided_slice %71 {offsets = [0, 1, 0], sizes = [16, 16, 4], strides = [1, 1, 1]} : vector<18x18x4xbf16> to vector<16x16x4xbf16>
    %80 = vector.shape_cast %79 : vector<16x16x4xbf16> to vector<256x4xbf16>
    %c1_51 = arith.constant 1 : index
    %c0_52 = arith.constant 0 : index
    %c0_53 = arith.constant 0 : index
    %81 = vector.load %arg5[%c1_51, %c0_52, %c0_53] : memref<9x4x4xbf16, #tpu.memory_space<vmem>>, vector<1x4x4xbf16>
    %82 = vector.shape_cast %81 : vector<1x4x4xbf16> to vector<4x4xbf16>
    %cst_54 = arith.constant dense<0.000000e+00> : vector<256x4xf32>
    %83 = tpu.matmul %80, %82, %cst_54 {dimension_numbers = #tpu.dot_dimension_numbers<[1], [0], [0], [1], [0, 0, 1, 1], [], []>} : vector<256x4xbf16>, vector<4x4xbf16>, vector<256x4xf32> -> vector<256x4xf32>
    %84 = arith.addf %78, %83 : vector<256x4xf32>
    %85 = vector.extract_strided_slice %71 {offsets = [0, 2, 0], sizes = [16, 16, 4], strides = [1, 1, 1]} : vector<18x18x4xbf16> to vector<16x16x4xbf16>
    %86 = vector.shape_cast %85 : vector<16x16x4xbf16> to vector<256x4xbf16>
    %c2_55 = arith.constant 2 : index
    %c0_56 = arith.constant 0 : index
    %c0_57 = arith.constant 0 : index
    %87 = vector.load %arg5[%c2_55, %c0_56, %c0_57] : memref<9x4x4xbf16, #tpu.memory_space<vmem>>, vector<1x4x4xbf16>
    %88 = vector.shape_cast %87 : vector<1x4x4xbf16> to vector<4x4xbf16>
    %cst_58 = arith.constant dense<0.000000e+00> : vector<256x4xf32>
    %89 = tpu.matmul %86, %88, %cst_58 {dimension_numbers = #tpu.dot_dimension_numbers<[1], [0], [0], [1], [0, 0, 1, 1], [], []>} : vector<256x4xbf16>, vector<4x4xbf16>, vector<256x4xf32> -> vector<256x4xf32>
    %90 = arith.addf %84, %89 : vector<256x4xf32>
    %91 = vector.extract_strided_slice %71 {offsets = [1, 0, 0], sizes = [16, 16, 4], strides = [1, 1, 1]} : vector<18x18x4xbf16> to vector<16x16x4xbf16>
    %92 = vector.shape_cast %91 : vector<16x16x4xbf16> to vector<256x4xbf16>
    %c3_59 = arith.constant 3 : index
    %c0_60 = arith.constant 0 : index
    %c0_61 = arith.constant 0 : index
    %93 = vector.load %arg5[%c3_59, %c0_60, %c0_61] : memref<9x4x4xbf16, #tpu.memory_space<vmem>>, vector<1x4x4xbf16>
    %94 = vector.shape_cast %93 : vector<1x4x4xbf16> to vector<4x4xbf16>
    %cst_62 = arith.constant dense<0.000000e+00> : vector<256x4xf32>
    %95 = tpu.matmul %92, %94, %cst_62 {dimension_numbers = #tpu.dot_dimension_numbers<[1], [0], [0], [1], [0, 0, 1, 1], [], []>} : vector<256x4xbf16>, vector<4x4xbf16>, vector<256x4xf32> -> vector<256x4xf32>
    %96 = arith.addf %90, %95 : vector<256x4xf32>
    %97 = vector.extract_strided_slice %71 {offsets = [1, 1, 0], sizes = [16, 16, 4], strides = [1, 1, 1]} : vector<18x18x4xbf16> to vector<16x16x4xbf16>
    %98 = vector.shape_cast %97 : vector<16x16x4xbf16> to vector<256x4xbf16>
    %c4_63 = arith.constant 4 : index
    %c0_64 = arith.constant 0 : index
    %c0_65 = arith.constant 0 : index
    %99 = vector.load %arg5[%c4_63, %c0_64, %c0_65] : memref<9x4x4xbf16, #tpu.memory_space<vmem>>, vector<1x4x4xbf16>
    %100 = vector.shape_cast %99 : vector<1x4x4xbf16> to vector<4x4xbf16>
    %cst_66 = arith.constant dense<0.000000e+00> : vector<256x4xf32>
    %101 = tpu.matmul %98, %100, %cst_66 {dimension_numbers = #tpu.dot_dimension_numbers<[1], [0], [0], [1], [0, 0, 1, 1], [], []>} : vector<256x4xbf16>, vector<4x4xbf16>, vector<256x4xf32> -> vector<256x4xf32>
    %102 = arith.addf %96, %101 : vector<256x4xf32>
    %103 = vector.extract_strided_slice %71 {offsets = [1, 2, 0], sizes = [16, 16, 4], strides = [1, 1, 1]} : vector<18x18x4xbf16> to vector<16x16x4xbf16>
    %104 = vector.shape_cast %103 : vector<16x16x4xbf16> to vector<256x4xbf16>
    %c5_67 = arith.constant 5 : index
    %c0_68 = arith.constant 0 : index
    %c0_69 = arith.constant 0 : index
    %105 = vector.load %arg5[%c5_67, %c0_68, %c0_69] : memref<9x4x4xbf16, #tpu.memory_space<vmem>>, vector<1x4x4xbf16>
    %106 = vector.shape_cast %105 : vector<1x4x4xbf16> to vector<4x4xbf16>
    %cst_70 = arith.constant dense<0.000000e+00> : vector<256x4xf32>
    %107 = tpu.matmul %104, %106, %cst_70 {dimension_numbers = #tpu.dot_dimension_numbers<[1], [0], [0], [1], [0, 0, 1, 1], [], []>} : vector<256x4xbf16>, vector<4x4xbf16>, vector<256x4xf32> -> vector<256x4xf32>
    %108 = arith.addf %102, %107 : vector<256x4xf32>
    %109 = vector.extract_strided_slice %71 {offsets = [2, 0, 0], sizes = [16, 16, 4], strides = [1, 1, 1]} : vector<18x18x4xbf16> to vector<16x16x4xbf16>
    %110 = vector.shape_cast %109 : vector<16x16x4xbf16> to vector<256x4xbf16>
    %c6_71 = arith.constant 6 : index
    %c0_72 = arith.constant 0 : index
    %c0_73 = arith.constant 0 : index
    %111 = vector.load %arg5[%c6_71, %c0_72, %c0_73] : memref<9x4x4xbf16, #tpu.memory_space<vmem>>, vector<1x4x4xbf16>
    %112 = vector.shape_cast %111 : vector<1x4x4xbf16> to vector<4x4xbf16>
    %cst_74 = arith.constant dense<0.000000e+00> : vector<256x4xf32>
    %113 = tpu.matmul %110, %112, %cst_74 {dimension_numbers = #tpu.dot_dimension_numbers<[1], [0], [0], [1], [0, 0, 1, 1], [], []>} : vector<256x4xbf16>, vector<4x4xbf16>, vector<256x4xf32> -> vector<256x4xf32>
    %114 = arith.addf %108, %113 : vector<256x4xf32>
    %115 = vector.extract_strided_slice %71 {offsets = [2, 1, 0], sizes = [16, 16, 4], strides = [1, 1, 1]} : vector<18x18x4xbf16> to vector<16x16x4xbf16>
    %116 = vector.shape_cast %115 : vector<16x16x4xbf16> to vector<256x4xbf16>
    %c7_75 = arith.constant 7 : index
    %c0_76 = arith.constant 0 : index
    %c0_77 = arith.constant 0 : index
    %117 = vector.load %arg5[%c7_75, %c0_76, %c0_77] : memref<9x4x4xbf16, #tpu.memory_space<vmem>>, vector<1x4x4xbf16>
    %118 = vector.shape_cast %117 : vector<1x4x4xbf16> to vector<4x4xbf16>
    %cst_78 = arith.constant dense<0.000000e+00> : vector<256x4xf32>
    %119 = tpu.matmul %116, %118, %cst_78 {dimension_numbers = #tpu.dot_dimension_numbers<[1], [0], [0], [1], [0, 0, 1, 1], [], []>} : vector<256x4xbf16>, vector<4x4xbf16>, vector<256x4xf32> -> vector<256x4xf32>
    %120 = arith.addf %114, %119 : vector<256x4xf32>
    %121 = vector.extract_strided_slice %71 {offsets = [2, 2, 0], sizes = [16, 16, 4], strides = [1, 1, 1]} : vector<18x18x4xbf16> to vector<16x16x4xbf16>
    %122 = vector.shape_cast %121 : vector<16x16x4xbf16> to vector<256x4xbf16>
    %c8_79 = arith.constant 8 : index
    %c0_80 = arith.constant 0 : index
    %c0_81 = arith.constant 0 : index
    %123 = vector.load %arg5[%c8_79, %c0_80, %c0_81] : memref<9x4x4xbf16, #tpu.memory_space<vmem>>, vector<1x4x4xbf16>
    %124 = vector.shape_cast %123 : vector<1x4x4xbf16> to vector<4x4xbf16>
    %cst_82 = arith.constant dense<0.000000e+00> : vector<256x4xf32>
    %125 = tpu.matmul %122, %124, %cst_82 {dimension_numbers = #tpu.dot_dimension_numbers<[1], [0], [0], [1], [0, 0, 1, 1], [], []>} : vector<256x4xbf16>, vector<4x4xbf16>, vector<256x4xf32> -> vector<256x4xf32>
    %126 = arith.addf %120, %125 : vector<256x4xf32>
    %c0_83 = arith.constant 0 : index
    %c0_84 = arith.constant 0 : index
    %127 = vector.load %arg6[%c0_83, %c0_84] : memref<1x4xf32, #tpu.memory_space<vmem>>, vector<1x4xf32>
    %128 = vector.broadcast %127 : vector<1x4xf32> to vector<256x4xf32>
    %129 = arith.mulf %126, %128 : vector<256x4xf32>
    %c0_85 = arith.constant 0 : index
    %c0_86 = arith.constant 0 : index
    %130 = vector.load %arg7[%c0_85, %c0_86] : memref<1x4xf32, #tpu.memory_space<vmem>>, vector<1x4xf32>
    %131 = vector.broadcast %130 : vector<1x4xf32> to vector<256x4xf32>
    %132 = arith.addf %129, %131 : vector<256x4xf32>
    %133 = vector.extract_strided_slice %1 {offsets = [1, 1, 0], sizes = [16, 16, 4], strides = [1, 1, 1]} : vector<18x18x4xf32> to vector<16x16x4xf32>
    %134 = vector.shape_cast %133 : vector<16x16x4xf32> to vector<256x4xf32>
    %135 = arith.addf %132, %134 : vector<256x4xf32>
    %cst_87 = arith.constant 0.000000e+00 : f32
    %136 = vector.broadcast %cst_87 : f32 to vector<256x4xf32>
    %137 = arith.maximumf %135, %136 : vector<256x4xf32>
    %138 = vector.shape_cast %137 : vector<256x4xf32> to vector<16x16x4xf32>
    %c0_88 = arith.constant 0 : index
    %c0_89 = arith.constant 0 : index
    %c0_90 = arith.constant 0 : index
    %c0_91 = arith.constant 0 : index
    %139 = vector.load %arg8[%c0_88, %c0_89, %c0_90, %c0_91] : memref<1x16x16x4xf32, #tpu.memory_space<vmem>>, vector<1x16x16x4xf32>
    %140 = vector.shape_cast %139 : vector<1x16x16x4xf32> to vector<16x16x4xf32>
    %141 = vector.shape_cast %138 : vector<16x16x4xf32> to vector<1x16x16x4xf32>
    tpu.vector_store %arg8[%c0_88, %c0_89, %c0_90, %c0_91], %141 {strides = array<i32>} : memref<1x16x16x4xf32, #tpu.memory_space<vmem>>, vector<1x16x16x4xf32>,
    return
  }
  func.func @transform_0(%arg0: i32) -> (i32, i32, i32, i32) {
    %c0_i32 = arith.constant 0 : i32
    %c0_i32_0 = arith.constant 0 : i32
    %c0_i32_1 = arith.constant 0 : i32
    %c0_i32_2 = arith.constant 0 : i32
    return %arg0, %c0_i32, %c0_i32_0, %c0_i32_1 : i32, i32, i32, i32
  }
  func.func @transform_1(%arg0: i32) -> (i32, i32, i32) {
    %c0_i32 = arith.constant 0 : i32
    %c0_i32_0 = arith.constant 0 : i32
    %c0_i32_1 = arith.constant 0 : i32
    %c0_i32_2 = arith.constant 0 : i32
    return %c0_i32, %c0_i32_0, %c0_i32_1 : i32, i32, i32
  }
  func.func @transform_2(%arg0: i32) -> (i32, i32) {
    %c0_i32 = arith.constant 0 : i32
    %c0_i32_0 = arith.constant 0 : i32
    %c0_i32_1 = arith.constant 0 : i32
    return %c0_i32, %c0_i32_0 : i32, i32
  }
  func.func @transform_3(%arg0: i32) -> (i32, i32) {
    %c0_i32 = arith.constant 0 : i32
    %c0_i32_0 = arith.constant 0 : i32
    %c0_i32_1 = arith.constant 0 : i32
    return %c0_i32, %c0_i32_0 : i32, i32
  }
  func.func @transform_4(%arg0: i32) -> (i32, i32, i32) {
    %c0_i32 = arith.constant 0 : i32
    %c0_i32_0 = arith.constant 0 : i32
    %c0_i32_1 = arith.constant 0 : i32
    %c0_i32_2 = arith.constant 0 : i32
    return %c0_i32, %c0_i32_0, %c0_i32_1 : i32, i32, i32
  }
  func.func @transform_5(%arg0: i32) -> (i32, i32) {
    %c0_i32 = arith.constant 0 : i32
    %c0_i32_0 = arith.constant 0 : i32
    %c0_i32_1 = arith.constant 0 : i32
    return %c0_i32, %c0_i32_0 : i32, i32
  }
  func.func @transform_6(%arg0: i32) -> (i32, i32) {
    %c0_i32 = arith.constant 0 : i32
    %c0_i32_0 = arith.constant 0 : i32
    %c0_i32_1 = arith.constant 0 : i32
    return %c0_i32, %c0_i32_0 : i32, i32
  }
  func.func @transform_7(%arg0: i32) -> (i32, i32, i32, i32) {
    %c0_i32 = arith.constant 0 : i32
    %c0_i32_0 = arith.constant 0 : i32
    %c0_i32_1 = arith.constant 0 : i32
    %c0_i32_2 = arith.constant 0 : i32
    return %arg0, %c0_i32, %c0_i32_0, %c0_i32_1 : i32, i32, i32, i32
  }
}

</mosaic_0001>

<llo_original>
// kernel: tpu_custom_call.1
$region0: #{tpu_custom_call.1}
  #allocation0 [shape = 'u32[]', space=smem, size = 0x4, offset = 0x4, fixed_abs, tag = 'smem constant byte address 0x4 - core index']
  #allocation1 [shape = 'u32[144,128]{1,0:T(1,128)}', space=vmem, size = 0x12000, scoped, tag = 'internal scratch']
  #allocation2 [shape = 'f32[18,18,4]{2,1,0:T(8,128)}', space=vmem, size = 0x36000, scoped, tag = 'scratch operand']
  %s0 = inlined_call_operand.vmem [shape: f32[2,18,18,4], index: 0, kind: input, shape index: {}]
  %s1 = inlined_call_operand.vmem [shape: bf16[9,4,4], index: 1, kind: input, shape index: {}]
  %s2 = inlined_call_operand.vmem [shape: f32[1,4], index: 2, kind: input, shape index: {}]
  %s3 = inlined_call_operand.vmem [shape: f32[1,4], index: 3, kind: input, shape index: {}]
  %s4 = inlined_call_operand.vmem [shape: bf16[9,4,4], index: 4, kind: input, shape index: {}]
  %s5 = inlined_call_operand.vmem [shape: f32[1,4], index: 5, kind: input, shape index: {}]
  %s6 = inlined_call_operand.vmem [shape: f32[1,4], index: 6, kind: input, shape index: {}]
  %s7 = inlined_call_operand.vmem [shape: f32[2,16,16,4], index: 7, kind: output, shape index: {}]
  %s8 = sld [smem:[#allocation0]]
  $region61: #{tpu_custom_call.1} parent=0
    _
  %s10 = ssub.s32 1, %s8
  %s11 = scalar_select 0, %s10, %s8
  loop: start=0, step=1, limit=4
  $region2: #{tpu_custom_call.1} parent=0 // loop_pre_header
    _
  $region3: #{tpu_custom_call.1} parent=0 // loop_header
    %s13 = sphi 0, %s17
    %p14 = scmp.ge.s32.totalorder %s13, 4
    %s23 = sphi 0, %s25
    %s26 = sphi 0, %s23
    %s27 = sphi 0, %s26
    %s43 = sphi 0, %s27
    %s47 = sphi 0, %s47
    %s49 = sphi 0, %s47
    %s50 = sphi 0, %s49
    %s64 = sphi 0, %s50
    %s68 = sphi 0, %s68
    %s70 = sphi 0, %s68
    %s71 = sphi 0, %s70
    %s85 = sphi 0, %s71
    %s89 = sphi 0, %s89
    %s91 = sphi 0, %s89
    %s92 = sphi 0, %s91
    %s106 = sphi 0, %s92
    %s110 = sphi 0, %s110
    %s112 = sphi 0, %s110
    %s113 = sphi 0, %s112
    %s127 = sphi 0, %s113
    %s131 = sphi 0, %s131
    %s133 = sphi 0, %s131
    %s134 = sphi 0, %s133
    %s148 = sphi 0, %s134
    %s152 = sphi 0, %s152
    %s154 = sphi 0, %s152
    %s155 = sphi 0, %s154
    %s169 = sphi 0, %s155
    %s175 = sphi 0, %s177
    %s178 = sphi 0, %s175
    %s179 = sphi 0, %s178
    %s195 = sphi 0, %s179
  $region4: #{tpu_custom_call.1} parent=0 // loop_header_branch
    %16 = sbr.rel (%p14) target = $region8
  $region5: #{tpu_custom_call.1} parent=0 // loop_body
    %s18 = ssub.s32 %s13, 1
    %s19 = ssub.s32 %s13, 2
    %s20 = sadd.s32 %s13, 1
    %s21 = ssub.s32 %s13, %s20
    %p22 = scmp.eq.s32.totalorder %s21, 0
    %s24 = sadd.s32 %s23, 1
    %s25 = scalar_select %p22, %s23, %s24
    %p28 = pneg %p22
    %p29 = scmp.eq.s32.totalorder %s13, 1
    %p30 = por %p28, %p29
    %p31 = scmp.ne.s32.totalorder %s23, %s26
    %p32 = scmp.eq.s32.totalorder %s13, 0
    %p33 = por %p31, %p32
    %p34 = scmp.ne.s32.totalorder %s23, %s26
    %p35 = scmp.eq.s32.totalorder %s18, 1
    %p36 = por %p34, %p35
    %p37 = scmp.ne.s32.totalorder %s26, %s27
    %p38 = scmp.eq.s32.totalorder %s18, 0
    %p39 = por %p37, %p38
    %p40 = scmp.ne.s32.totalorder %s26, %s27
    %p41 = scmp.eq.s32.totalorder %s19, 1
    %p42 = por %p40, %p41
    %p44 = scmp.ne.s32.totalorder %s27, %s43
    %p45 = scmp.eq.s32.totalorder %s19, 0
    %p46 = por %p44, %p45
    %s48 = sadd.s32 %s47, 1
    %p51 = scmp.eq.s32.totalorder %s13, 1
    %p52 = scmp.ne.s32.totalorder %s47, %s49
    %p53 = scmp.eq.s32.totalorder %s13, 0
    %p54 = por %p52, %p53
    %p55 = scmp.ne.s32.totalorder %s47, %s49
    %p56 = scmp.eq.s32.totalorder %s18, 1
    %p57 = por %p55, %p56
    %p58 = scmp.ne.s32.totalorder %s49, %s50
    %p59 = scmp.eq.s32.totalorder %s18, 0
    %p60 = por %p58, %p59
    %p61 = scmp.ne.s32.totalorder %s49, %s50
    %p62 = scmp.eq.s32.totalorder %s19, 1
    %p63 = por %p61, %p62
    %p65 = scmp.ne.s32.totalorder %s50, %s64
    %p66 = scmp.eq.s32.totalorder %s19, 0
    %p67 = por %p65, %p66
    %s69 = sadd.s32 %s68, 1
    %p72 = scmp.eq.s32.totalorder %s13, 1
    %p73 = scmp.ne.s32.totalorder %s68, %s70
    %p74 = scmp.eq.s32.totalorder %s13, 0
    %p75 = por %p73, %p74
    %p76 = scmp.ne.s32.totalorder %s68, %s70
    %p77 = scmp.eq.s32.totalorder %s18, 1
    %p78 = por %p76, %p77
    %p79 = scmp.ne.s32.totalorder %s70, %s71
    %p80 = scmp.eq.s32.totalorder %s18, 0
    %p81 = por %p79, %p80
    %p82 = scmp.ne.s32.totalorder %s70, %s71
    %p83 = scmp.eq.s32.totalorder %s19, 1
    %p84 = por %p82, %p83
    %p86 = scmp.ne.s32.totalorder %s71, %s85
    %p87 = scmp.eq.s32.totalorder %s19, 0
    %p88 = por %p86, %p87
    %s90 = sadd.s32 %s89, 1
    %p93 = scmp.eq.s32.totalorder %s13, 1
    %p94 = scmp.ne.s32.totalorder %s89, %s91
    %p95 = scmp.eq.s32.totalorder %s13, 0
    %p96 = por %p94, %p95
    %p97 = scmp.ne.s32.totalorder %s89, %s91
    %p98 = scmp.eq.s32.totalorder %s18, 1
    %p99 = por %p97, %p98
    %p100 = scmp.ne.s32.totalorder %s91, %s92
    %p101 = scmp.eq.s32.totalorder %s18, 0
    %p102 = por %p100, %p101
    %p103 = scmp.ne.s32.totalorder %s91, %s92
    %p104 = scmp.eq.s32.totalorder %s19, 1
    %p105 = por %p103, %p104
    %p107 = scmp.ne.s32.totalorder %s92, %s106
    %p108 = scmp.eq.s32.totalorder %s19, 0
    %p109 = por %p107, %p108
    %s111 = sadd.s32 %s110, 1
    %p114 = scmp.eq.s32.totalorder %s13, 1
    %p115 = scmp.ne.s32.totalorder %s110, %s112
    %p116 = scmp.eq.s32.totalorder %s13, 0
    %p117 = por %p115, %p116
    %p118 = scmp.ne.s32.totalorder %s110, %s112
    %p119 = scmp.eq.s32.totalorder %s18, 1
    %p120 = por %p118, %p119
    %p121 = scmp.ne.s32.totalorder %s112, %s113
    %p122 = scmp.eq.s32.totalorder %s18, 0
    %p123 = por %p121, %p122
    %p124 = scmp.ne.s32.totalorder %s112, %s113
    %p125 = scmp.eq.s32.totalorder %s19, 1
    %p126 = por %p124, %p125
    %p128 = scmp.ne.s32.totalorder %s113, %s127
    %p129 = scmp.eq.s32.totalorder %s19, 0
    %p130 = por %p128, %p129
    %s132 = sadd.s32 %s131, 1
    %p135 = scmp.eq.s32.totalorder %s13, 1
    %p136 = scmp.ne.s32.totalorder %s131, %s133
    %p137 = scmp.eq.s32.totalorder %s13, 0
    %p138 = por %p136, %p137
    %p139 = scmp.ne.s32.totalorder %s131, %s133
    %p140 = scmp.eq.s32.totalorder %s18, 1
    %p141 = por %p139, %p140
    %p142 = scmp.ne.s32.totalorder %s133, %s134
    %p143 = scmp.eq.s32.totalorder %s18, 0
    %p144 = por %p142, %p143
    %p145 = scmp.ne.s32.totalorder %s133, %s134
    %p146 = scmp.eq.s32.totalorder %s19, 1
    %p147 = por %p145, %p146
    %p149 = scmp.ne.s32.totalorder %s134, %s148
    %p150 = scmp.eq.s32.totalorder %s19, 0
    %p151 = por %p149, %p150
    %s153 = sadd.s32 %s152, 1
    %p156 = scmp.eq.s32.totalorder %s13, 1
    %p157 = scmp.ne.s32.totalorder %s152, %s154
    %p158 = scmp.eq.s32.totalorder %s13, 0
    %p159 = por %p157, %p158
    %p160 = scmp.ne.s32.totalorder %s152, %s154
    %p161 = scmp.eq.s32.totalorder %s18, 1
    %p162 = por %p160, %p161
    %p163 = scmp.ne.s32.totalorder %s154, %s155
    %p164 = scmp.eq.s32.totalorder %s18, 0
    %p165 = por %p163, %p164
    %p166 = scmp.ne.s32.totalorder %s154, %s155
    %p167 = scmp.eq.s32.totalorder %s19, 1
    %p168 = por %p166, %p167
    %p170 = scmp.ne.s32.totalorder %s155, %s169
    %p171 = scmp.eq.s32.totalorder %s19, 0
    %p172 = por %p170, %p171
    %s173 = ssub.s32 %s13, %s20
    %p174 = scmp.eq.s32.totalorder %s173, 0
    %s176 = sadd.s32 %s175, 1
    %s177 = scalar_select %p174, %s175, %s176
    %p180 = pneg %p174
    %p181 = scmp.eq.s32.totalorder %s13, 1
    %p182 = por %p180, %p181
    %p183 = scmp.ne.s32.totalorder %s175, %s178
    %p184 = scmp.eq.s32.totalorder %s13, 0
    %p185 = por %p183, %p184
    %p186 = scmp.ne.s32.totalorder %s175, %s178
    %p187 = scmp.eq.s32.totalorder %s18, 1
    %p188 = por %p186, %p187
    %p189 = scmp.ne.s32.totalorder %s178, %s179
    %p190 = scmp.eq.s32.totalorder %s18, 0
    %p191 = por %p189, %p190
    %p192 = scmp.ne.s32.totalorder %s178, %s179
    %p193 = scmp.eq.s32.totalorder %s19, 1
    %p194 = por %p192, %p193
    %p196 = scmp.ne.s32.totalorder %s179, %s195
    %p197 = scmp.eq.s32.totalorder %s19, 0
    %p198 = por %p196, %p197
    %p199 = scmp.le.s32.totalorder 1, %s13
    %p200 = scmp.lt.s32.totalorder %s13, 3
    %p201 = pnand %p199, %p200
    %p202 = pneg %p201
    // Predicated region
    $region9: #{tpu_custom_call.1} parent=5 // pred_check
      _
    $region10: #{tpu_custom_call.1} parent=5 // pred_check_branch
      %204 = sbr.rel (%p201) target = $region12
    $region11: #{tpu_custom_call.1} parent=5 // pred_region
      %s205 = ssub.s32 %s13, 1
      // Predicated region
      $region13: #{tpu_custom_call.1} parent=11 // pred_check
        %p206 = pneg %p60
      $region14: #{tpu_custom_call.1} parent=11 // pred_check_branch
        %208 = sbr.rel (%p206) target = $region16
      $region15: #{tpu_custom_call.1} parent=11 // pred_region
        _
      $region16: #{tpu_custom_call.1} parent=11 // pred_fallthru
        _
      // Predicated region
      $region17: #{tpu_custom_call.1} parent=11 // pred_check
        %p209 = pneg %p81
      $region18: #{tpu_custom_call.1} parent=11 // pred_check_branch
        %211 = sbr.rel (%p209) target = $region20
      $region19: #{tpu_custom_call.1} parent=11 // pred_region
        _
      $region20: #{tpu_custom_call.1} parent=11 // pred_fallthru
        _
      // Predicated region
      $region21: #{tpu_custom_call.1} parent=11 // pred_check
        %p212 = pneg %p102
      $region22: #{tpu_custom_call.1} parent=11 // pred_check_branch
        %214 = sbr.rel (%p212) target = $region24
      $region23: #{tpu_custom_call.1} parent=11 // pred_region
        _
      $region24: #{tpu_custom_call.1} parent=11 // pred_fallthru
        _
      // Predicated region
      $region25: #{tpu_custom_call.1} parent=11 // pred_check
        %p215 = pneg %p123
      $region26: #{tpu_custom_call.1} parent=11 // pred_check_branch
        %217 = sbr.rel (%p215) target = $region28
      $region27: #{tpu_custom_call.1} parent=11 // pred_region
        _
      $region28: #{tpu_custom_call.1} parent=11 // pred_fallthru
        _
      // Predicated region
      $region29: #{tpu_custom_call.1} parent=11 // pred_check
        %p218 = pneg %p144
      $region30: #{tpu_custom_call.1} parent=11 // pred_check_branch
        %220 = sbr.rel (%p218) target = $region32
      $region31: #{tpu_custom_call.1} parent=11 // pred_region
        _
      $region32: #{tpu_custom_call.1} parent=11 // pred_fallthru
        _
      // Predicated region
      $region33: #{tpu_custom_call.1} parent=11 // pred_check
        %p221 = pneg %p165
      $region34: #{tpu_custom_call.1} parent=11 // pred_check_branch
        %223 = sbr.rel (%p221) target = $region36
      $region35: #{tpu_custom_call.1} parent=11 // pred_region
        _
      $region36: #{tpu_custom_call.1} parent=11 // pred_fallthru
        _
    $region12: #{tpu_custom_call.1} parent=5 // pred_fallthru
      _
    %p224 = scmp.lt.s32.totalorder %s13, 2
    // Predicated region
    $region37: #{tpu_custom_call.1} parent=5 // pred_check
      %p225 = pneg %p224
    $region38: #{tpu_custom_call.1} parent=5 // pred_check_branch
      %227 = sbr.rel (%p225) target = $region40
    $region39: #{tpu_custom_call.1} parent=5 // pred_region
      // Predicated region
      $region41: #{tpu_custom_call.1} parent=39 // pred_check
        %p228 = pneg %p33
      $region42: #{tpu_custom_call.1} parent=39 // pred_check_branch
        %230 = sbr.rel (%p228) target = $region44
      $region43: #{tpu_custom_call.1} parent=39 // pred_region
        %p231 = scmp.lt.s32.totalorder %s13, 1
        %s232 = scalar_select %p231, %s13, 1
        %s233 = smul.addr %s232, 54
        %s234 = smul.addr %s233, 8
        %s235 = scalar_lea.vmem %s0, %s234
      $region44: #{tpu_custom_call.1} parent=39 // pred_fallthru
        _
    $region40: #{tpu_custom_call.1} parent=5 // pred_fallthru
      _
    %p236 = scmp.le.s32.totalorder 1, %s13
    %p237 = scmp.lt.s32.totalorder %s13, 3
    %p238 = pnand %p236, %p237
    %p239 = pneg %p238
    // Predicated region
    $region45: #{tpu_custom_call.1} parent=5 // pred_check
      _
    $region46: #{tpu_custom_call.1} parent=5 // pred_check_branch
      %241 = sbr.rel (%p238) target = $region48
    $region47: #{tpu_custom_call.1} parent=5 // pred_region
      %s242 = ssub.s32 %s13, 1
      %p243 = scmp.lt.s32.totalorder %s18, 1
      %s244 = scalar_select %p243, %s18, 1
      %s245 = smul.addr %s244, 54
      %s246 = smul.addr %s245, 8
      %s247 = scalar_lea.vmem %s0, %s246
      %p248 = pneg %p39
      %p249 = pneg %p36
      %p250 = pneg %p60
      %p251 = pneg %p57
      %p252 = pneg %p81
      %p253 = pneg %p78
      %p254 = pneg %p102
      %p255 = pneg %p99
      %p256 = pneg %p123
      %p257 = pneg %p120
      %p258 = pneg %p144
      %p259 = pneg %p141
      %p260 = pneg %p165
      %p261 = pneg %p162
      %p262 = pneg %p191
      %p263 = pneg %p188
      %p264 = scmp.lt.s32.totalorder %s18, 1
      %s265 = scalar_select %p264, %s18, 1
      %s266 = smul.addr %s265, 32
      %s267 = smul.addr %s266, 8
      %s268 = scalar_lea.vmem %s7, %s267
      %p269 = scmp.lt.s32.totalorder %s18, 1
      %s270 = scalar_select %p269, %s18, 1
      %s271 = smul.addr %s270, 54
      %s272 = smul.addr %s271, 8
      %s273 = scalar_lea.vmem %s0, %s272
      %p274 = scmp.lt.s32.totalorder %s18, 1
      %s275 = scalar_select %p274, %s18, 1
      %s276 = smul.addr %s275, 32
      %s277 = smul.addr %s276, 8
      %s278 = scalar_lea.vmem %s7, %s277
      %v280 = vld [vmem:[%s273] sm:$0xff]
      %v281 = vld [vmem:[%s273 + $0x8] sm:$0xff]
      %v282 = vld [vmem:[%s273 + $0x10] sm:$0x3]
      %v283 = vld [vmem:[%s273 + $0x18] sm:$0xff]
      %v284 = vld [vmem:[%s273 + $0x20] sm:$0xff]
      %v285 = vld [vmem:[%s273 + $0x28] sm:$0x3]
      %v286 = vld [vmem:[%s273 + $0x30] sm:$0xff]
      %v287 = vld [vmem:[%s273 + $0x38] sm:$0xff]
      %v288 = vld [vmem:[%s273 + $0x40] sm:$0x3]
      %v289 = vld [vmem:[%s273 + $0x48] sm:$0xff]
      %v290 = vld [vmem:[%s273 + $0x50] sm:$0xff]
      %v291 = vld [vmem:[%s273 + $0x58] sm:$0x3]
      %v292 = vld [vmem:[%s273 + $0x60] sm:$0xff]
      %v293 = vld [vmem:[%s273 + $0x68] sm:$0xff]
      %v294 = vld [vmem:[%s273 + $0x70] sm:$0x3]
      %v295 = vld [vmem:[%s273 + $0x78] sm:$0xff]
      %v296 = vld [vmem:[%s273 + $0x80] sm:$0xff]
      %v297 = vld [vmem:[%s273 + $0x88] sm:$0x3]
      %v298 = vld [vmem:[%s273 + $0x90] sm:$0xff]
      %v299 = vld [vmem:[%s273 + $0x98] sm:$0xff]
      %v300 = vld [vmem:[%s273 + $0xa0] sm:$0x3]
      %v301 = vld [vmem:[%s273 + $0xa8] sm:$0xff]
      %v302 = vld [vmem:[%s273 + $0xb0] sm:$0xff]
      %v303 = vld [vmem:[%s273 + $0xb8] sm:$0x3]
      %v304 = vld [vmem:[%s273 + $0xc0] sm:$0xff]
      %v305 = vld [vmem:[%s273 + $0xc8] sm:$0xff]
      %v306 = vld [vmem:[%s273 + $0xd0] sm:$0x3]
      %v307 = vld [vmem:[%s273 + $0xd8] sm:$0xff]
      %v308 = vld [vmem:[%s273 + $0xe0] sm:$0xff]
      %v309 = vld [vmem:[%s273 + $0xe8] sm:$0x3]
      %v310 = vld [vmem:[%s273 + $0xf0] sm:$0xff]
      %v311 = vld [vmem:[%s273 + $0xf8] sm:$0xff]
      %v312 = vld [vmem:[%s273 + $0x100] sm:$0x3]
      %v313 = vld [vmem:[%s273 + $0x108] sm:$0xff]
      %v314 = vld [vmem:[%s273 + $0x110] sm:$0xff]
      %v315 = vld [vmem:[%s273 + $0x118] sm:$0x3]
      %v316 = vld [vmem:[%s273 + $0x120] sm:$0xff]
      %v317 = vld [vmem:[%s273 + $0x128] sm:$0xff]
      %v318 = vld [vmem:[%s273 + $0x130] sm:$0x3]
      %v319 = vld [vmem:[%s273 + $0x138] sm:$0xff]
      %v320 = vld [vmem:[%s273 + $0x140] sm:$0xff]
      %v321 = vld [vmem:[%s273 + $0x148] sm:$0x3]
      %v322 = vld [vmem:[%s273 + $0x150] sm:$0xff]
      %v323 = vld [vmem:[%s273 + $0x158] sm:$0xff]
      %v324 = vld [vmem:[%s273 + $0x160] sm:$0x3]
      %v325 = vld [vmem:[%s273 + $0x168] sm:$0xff]
      %v326 = vld [vmem:[%s273 + $0x170] sm:$0xff]
      %v327 = vld [vmem:[%s273 + $0x178] sm:$0x3]
      %v328 = vld [vmem:[%s273 + $0x180] sm:$0xff]
      %v329 = vld [vmem:[%s273 + $0x188] sm:$0xff]
      %v330 = vld [vmem:[%s273 + $0x190] sm:$0x3]
      %v331 = vld [vmem:[%s273 + $0x198] sm:$0xff]
      %v332 = vld [vmem:[%s273 + $0x1a0] sm:$0xff]
      %v333 = vld [vmem:[%s273 + $0x1a8] sm:$0x3]
      %v334 = vpack.c.bf16 %v281, %v280
      %v335 = vpack.c.bf16 %v282, %v282
      %v336 = vpack.c.bf16 %v284, %v283
      %v337 = vpack.c.bf16 %v285, %v285
      %v338 = vpack.c.bf16 %v287, %v286
      %v339 = vpack.c.bf16 %v288, %v288
      %v340 = vpack.c.bf16 %v290, %v289
      %v341 = vpack.c.bf16 %v291, %v291
      %v342 = vpack.c.bf16 %v293, %v292
      %v343 = vpack.c.bf16 %v294, %v294
      %v344 = vpack.c.bf16 %v296, %v295
      %v345 = vpack.c.bf16 %v297, %v297
      %v346 = vpack.c.bf16 %v299, %v298
      %v347 = vpack.c.bf16 %v300, %v300
      %v348 = vpack.c.bf16 %v302, %v301
      %v349 = vpack.c.bf16 %v303, %v303
      %v350 = vpack.c.bf16 %v305, %v304
      %v351 = vpack.c.bf16 %v306, %v306
      %v352 = vpack.c.bf16 %v308, %v307
      %v353 = vpack.c.bf16 %v309, %v309
      %v354 = vpack.c.bf16 %v311, %v310
      %v355 = vpack.c.bf16 %v312, %v312
      %v356 = vpack.c.bf16 %v314, %v313
      %v357 = vpack.c.bf16 %v315, %v315
      %v358 = vpack.c.bf16 %v317, %v316
      %v359 = vpack.c.bf16 %v318, %v318
      %v360 = vpack.c.bf16 %v320, %v319
      %v361 = vpack.c.bf16 %v321, %v321
      %v362 = vpack.c.bf16 %v323, %v322
      %v363 = vpack.c.bf16 %v324, %v324
      %v364 = vpack.c.bf16 %v326, %v325
      %v365 = vpack.c.bf16 %v327, %v327
      %v366 = vpack.c.bf16 %v329, %v328
      %v367 = vpack.c.bf16 %v330, %v330
      %v368 = vpack.c.bf16 %v332, %v331
      %v369 = vpack.c.bf16 %v333, %v333
      %v370 = vld [vmem:[%s1] sm:$0x3]
      %vm371 = vsmask.f32 7424
      %v373 = vshrl.u32 %v334, 16
      %v375 = vshll.u32 %v334, 16
      %v377 = vrot.slane %v375, 1
      %v378 = vor.u32 %v373, %v377
      %v380 = vshll.u32 %v335, 16
      %v382 = vrot.slane %v380, 1
      %v383 = vsel %vm371, %v378, %v382
      %v385 = vshrl.u32 %v336, 16
      %v387 = vshll.u32 %v336, 16
      %v389 = vrot.slane %v387, 1
      %v390 = vor.u32 %v385, %v389
      %v392 = vshll.u32 %v337, 16
      %v394 = vrot.slane %v392, 1
      %v395 = vsel %vm371, %v390, %v394
      %v397 = vshrl.u32 %v338, 16
      %v399 = vshll.u32 %v338, 16
      %v401 = vrot.slane %v399, 1
      %v402 = vor.u32 %v397, %v401
      %v404 = vshll.u32 %v339, 16
      %v406 = vrot.slane %v404, 1
      %v407 = vsel %vm371, %v402, %v406
      %v409 = vshrl.u32 %v340, 16
      %v411 = vshll.u32 %v340, 16
      %v413 = vrot.slane %v411, 1
      %v414 = vor.u32 %v409, %v413
      %v416 = vshll.u32 %v341, 16
      %v418 = vrot.slane %v416, 1
      %v419 = vsel %vm371, %v414, %v418
      %v421 = vshrl.u32 %v342, 16
      %v423 = vshll.u32 %v342, 16
      %v425 = vrot.slane %v423, 1
      %v426 = vor.u32 %v421, %v425
      %v428 = vshll.u32 %v343, 16
      %v430 = vrot.slane %v428, 1
      %v431 = vsel %vm371, %v426, %v430
      %v433 = vshrl.u32 %v344, 16
      %v435 = vshll.u32 %v344, 16
      %v437 = vrot.slane %v435, 1
      %v438 = vor.u32 %v433, %v437
      %v440 = vshll.u32 %v345, 16
      %v442 = vrot.slane %v440, 1
      %v443 = vsel %vm371, %v438, %v442
      %v445 = vshrl.u32 %v346, 16
      %v447 = vshll.u32 %v346, 16
      %v449 = vrot.slane %v447, 1
      %v450 = vor.u32 %v445, %v449
      %v452 = vshll.u32 %v347, 16
      %v454 = vrot.slane %v452, 1
      %v455 = vsel %vm371, %v450, %v454
      %v457 = vshrl.u32 %v348, 16
      %v459 = vshll.u32 %v348, 16
      %v461 = vrot.slane %v459, 1
      %v462 = vor.u32 %v457, %v461
      %v464 = vshll.u32 %v349, 16
      %v466 = vrot.slane %v464, 1
      %v467 = vsel %vm371, %v462, %v466
      %v469 = vshrl.u32 %v350, 16
      %v471 = vshll.u32 %v350, 16
      %v473 = vrot.slane %v471, 1
      %v474 = vor.u32 %v469, %v473
      %v476 = vshll.u32 %v351, 16
      %v478 = vrot.slane %v476, 1
      %v479 = vsel %vm371, %v474, %v478
      %v481 = vshrl.u32 %v352, 16
      %v483 = vshll.u32 %v352, 16
      %v485 = vrot.slane %v483, 1
      %v486 = vor.u32 %v481, %v485
      %v488 = vshll.u32 %v353, 16
      %v490 = vrot.slane %v488, 1
      %v491 = vsel %vm371, %v486, %v490
      %v493 = vshrl.u32 %v354, 16
      %v495 = vshll.u32 %v354, 16
      %v497 = vrot.slane %v495, 1
      %v498 = vor.u32 %v493, %v497
      %v500 = vshll.u32 %v355, 16
      %v502 = vrot.slane %v500, 1
      %v503 = vsel %vm371, %v498, %v502
      %v505 = vshrl.u32 %v356, 16
      %v507 = vshll.u32 %v356, 16
      %v509 = vrot.slane %v507, 1
      %v510 = vor.u32 %v505, %v509
      %v512 = vshll.u32 %v357, 16
      %v514 = vrot.slane %v512, 1
      %v515 = vsel %vm371, %v510, %v514
      %v517 = vshrl.u32 %v358, 16
      %v519 = vshll.u32 %v358, 16
      %v521 = vrot.slane %v519, 1
      %v522 = vor.u32 %v517, %v521
      %v524 = vshll.u32 %v359, 16
      %v526 = vrot.slane %v524, 1
      %v527 = vsel %vm371, %v522, %v526
      %v529 = vshrl.u32 %v360, 16
      %v531 = vshll.u32 %v360, 16
      %v533 = vrot.slane %v531, 1
      %v534 = vor.u32 %v529, %v533
      %v536 = vshll.u32 %v361, 16
      %v538 = vrot.slane %v536, 1
      %v539 = vsel %vm371, %v534, %v538
      %v541 = vshrl.u32 %v362, 16
      %v543 = vshll.u32 %v362, 16
      %v545 = vrot.slane %v543, 1
      %v546 = vor.u32 %v541, %v545
      %v548 = vshll.u32 %v363, 16
      %v550 = vrot.slane %v548, 1
      %v551 = vsel %vm371, %v546, %v550
      %v553 = vshrl.u32 %v364, 16
      %v555 = vshll.u32 %v364, 16
      %v557 = vrot.slane %v555, 1
      %v558 = vor.u32 %v553, %v557
      %v560 = vshll.u32 %v365, 16
      %v562 = vrot.slane %v560, 1
      %v563 = vsel %vm371, %v558, %v562
      %s564 = scalar_lea.vmem %s1, 2
      %v565 = vld [vmem:[%s564] sm:$0x3]
      %vm566 = vcmask 31744
      %v568 = vsel %vm566, %v383, 0
      %v571 = vsel %vm566, %v395, 0
      %v574 = vsel %vm566, %v407, 0
      %v577 = vsel %vm566, %v419, 0
      %v580 = vsel %vm566, %v431, 0
      %v583 = vsel %vm566, %v443, 0
      %v586 = vsel %vm566, %v455, 0
      %v589 = vsel %vm566, %v467, 0
      %v592 = vsel %vm566, %v479, 0
      %v595 = vsel %vm566, %v491, 0
      %v598 = vsel %vm566, %v503, 0
      %v601 = vsel %vm566, %v515, 0
      %v604 = vsel %vm566, %v527, 0
      %v607 = vsel %vm566, %v539, 0
      %v610 = vsel %vm566, %v551, 0
      %v613 = vsel %vm566, %v563, 0
      %vm615 = vcmask 1041408
      %v617 = vsel %vm615, %v565, 0
      %619 = vmatprep.subr.bf16.mxu0 0
      %620 = vmatpush1.bf16.msra.mxu0 0
      %621 = vmatprep.subr.bf16.mxu0 0
      %622 = vmatpush1.bf16.msra.mxu0 0
      %623 = vmatprep.subr.bf16.mxu0 0
      %624 = vmatpush1.bf16.msra.mxu0 0
      %625 = vmatprep.subr.bf16.mxu0 0
      %626 = vmatpush1.bf16.msra.mxu0 0
      %627 = vmatprep.subr.bf16.mxu0 0
      %628 = vmatpush1.bf16.msra.mxu0 0
      %629 = vmatprep.subr.bf16.mxu0 0
      %630 = vmatpush1.bf16.msra.mxu0 0
      %631 = vmatprep.subr.bf16.mxu0 0
      %632 = vmatpush1.bf16.msra.mxu0 0
      %633 = vmatprep.subr.bf16.mxu0 0
      %634 = vmatpush1.bf16.msra.mxu0 %v617
      %635 = vmatprep.subr.bf16.mxu0 0
      %636 = vmatpush2.bf16.msra.mxu0 0
      %637 = vmatprep.subr.bf16.mxu0 0
      %638 = vmatpush2.bf16.msra.mxu0 0
      %639 = vmatprep.subr.bf16.mxu0 0
      %640 = vmatpush2.bf16.msra.mxu0 0
      %641 = vmatprep.subr.bf16.mxu0 0
      %642 = vmatpush2.bf16.msra.mxu0 0
      %643 = vmatprep.subr.bf16.mxu0 0
      %644 = vmatpush2.bf16.msra.mxu0 0
      %645 = vmatprep.subr.bf16.mxu0 0
      %646 = vmatpush2.bf16.msra.mxu0 0
      %647 = vmatprep.subr.bf16.mxu0 0
      %648 = vmatpush2.bf16.msra.mxu0 0
      %649 = vmatprep.subr.bf16.mxu0 0
      %650 = vmatpush2.bf16.msra.mxu0 0
      %651 = vmatprep.mubr.bf16.mxu0 0
      %652 = vmatmul.mubr.bf16.gmra.mxu0 %v568
      %v653 = vpop.f32.mrf.mxu0
      %v654 = vadd.f32 0.0, %v653
      %v655 = vpop.f32.mrf.mxu0
      %v656 = vpop.f32.mrf.mxu0
      %v657 = vadd.f32 0.0, %v656
      %v658 = vpop.f32.mrf.mxu0
      %659 = vmatprep.mubr.bf16.mxu0 0
      %660 = vmatmul.mubr.bf16.gmra.mxu0 %v571
      %v661 = vpop.f32.mrf.mxu0
      %v662 = vadd.f32 0.0, %v661
      %v663 = vpop.f32.mrf.mxu0
      %v664 = vpop.f32.mrf.mxu0
      %v665 = vadd.f32 0.0, %v664
      %v666 = vpop.f32.mrf.mxu0
      %667 = vmatprep.mubr.bf16.mxu0 0
      %668 = vmatmul.mubr.bf16.gmra.mxu0 %v574
      %v669 = vpop.f32.mrf.mxu0
      %v670 = vadd.f32 0.0, %v669
      %v671 = vpop.f32.mrf.mxu0
      %v672 = vpop.f32.mrf.mxu0
      %v673 = vadd.f32 0.0, %v672
      %v674 = vpop.f32.mrf.mxu0
      %675 = vmatprep.mubr.bf16.mxu0 0
      %676 = vmatmul.mubr.bf16.gmra.mxu0 %v577
      %v677 = vpop.f32.mrf.mxu0
      %v678 = vadd.f32 0.0, %v677
      %v679 = vpop.f32.mrf.mxu0
      %v680 = vpop.f32.mrf.mxu0
      %v681 = vadd.f32 0.0, %v680
      %v682 = vpop.f32.mrf.mxu0
      %683 = vmatprep.mubr.bf16.mxu0 0
      %684 = vmatmul.mubr.bf16.gmra.mxu0 %v580
      %v685 = vpop.f32.mrf.mxu0
      %v686 = vadd.f32 0.0, %v685
      %v687 = vpop.f32.mrf.mxu0
      %v688 = vpop.f32.mrf.mxu0
      %v689 = vadd.f32 0.0, %v688
      %v690 = vpop.f32.mrf.mxu0
      %691 = vmatprep.mubr.bf16.mxu0 0
      %692 = vmatmul.mubr.bf16.gmra.mxu0 %v583
      %v693 = vpop.f32.mrf.mxu0
      %v694 = vadd.f32 0.0, %v693
      %v695 = vpop.f32.mrf.mxu0
      %v696 = vpop.f32.mrf.mxu0
      %v697 = vadd.f32 0.0, %v696
      %v698 = vpop.f32.mrf.mxu0
      %699 = vmatprep.mubr.bf16.mxu0 0
      %700 = vmatmul.mubr.bf16.gmra.mxu0 %v586
      %v701 = vpop.f32.mrf.mxu0
      %v702 = vadd.f32 0.0, %v701
      %v703 = vpop.f32.mrf.mxu0
      %v704 = vpop.f32.mrf.mxu0
      %v705 = vadd.f32 0.0, %v704
      %v706 = vpop.f32.mrf.mxu0
      %707 = vmatprep.mubr.bf16.mxu0 0
      %708 = vmatmul.mubr.bf16.gmra.mxu0 %v589
      %v709 = vpop.f32.mrf.mxu0
      %v710 = vadd.f32 0.0, %v709
      %v711 = vpop.f32.mrf.mxu0
      %v712 = vpop.f32.mrf.mxu0
      %v713 = vadd.f32 0.0, %v712
      %v714 = vpop.f32.mrf.mxu0
      %715 = vmatprep.mubr.bf16.mxu0 0
      %716 = vmatmul.mubr.bf16.gmra.mxu0 %v592
      %v717 = vpop.f32.mrf.mxu0
      %v718 = vadd.f32 0.0, %v717
      %v719 = vpop.f32.mrf.mxu0
      %v720 = vpop.f32.mrf.mxu0
      %v721 = vadd.f32 0.0, %v720
      %v722 = vpop.f32.mrf.mxu0
      %723 = vmatprep.mubr.bf16.mxu0 0
      %724 = vmatmul.mubr.bf16.gmra.mxu0 %v595
      %v725 = vpop.f32.mrf.mxu0
      %v726 = vadd.f32 0.0, %v725
      %v727 = vpop.f32.mrf.mxu0
      %v728 = vpop.f32.mrf.mxu0
      %v729 = vadd.f32 0.0, %v728
      %v730 = vpop.f32.mrf.mxu0
      %731 = vmatprep.mubr.bf16.mxu0 0
      %732 = vmatmul.mubr.bf16.gmra.mxu0 %v598
      %v733 = vpop.f32.mrf.mxu0
      %v734 = vadd.f32 0.0, %v733
      %v735 = vpop.f32.mrf.mxu0
      %v736 = vpop.f32.mrf.mxu0
      %v737 = vadd.f32 0.0, %v736
      %v738 = vpop.f32.mrf.mxu0
      %739 = vmatprep.mubr.bf16.mxu0 0
      %740 = vmatmul.mubr.bf16.gmra.mxu0 %v601
      %v741 = vpop.f32.mrf.mxu0
      %v742 = vadd.f32 0.0, %v741
      %v743 = vpop.f32.mrf.mxu0
      %v744 = vpop.f32.mrf.mxu0
      %v745 = vadd.f32 0.0, %v744
      %v746 = vpop.f32.mrf.mxu0
      %747 = vmatprep.mubr.bf16.mxu0 0
      %748 = vmatmul.mubr.bf16.gmra.mxu0 %v604
      %v749 = vpop.f32.mrf.mxu0
      %v750 = vadd.f32 0.0, %v749
      %v751 = vpop.f32.mrf.mxu0
      %v752 = vpop.f32.mrf.mxu0
      %v753 = vadd.f32 0.0, %v752
      %v754 = vpop.f32.mrf.mxu0
      %755 = vmatprep.mubr.bf16.mxu0 0
      %756 = vmatmul.mubr.bf16.gmra.mxu0 %v607
      %v757 = vpop.f32.mrf.mxu0
      %v758 = vadd.f32 0.0, %v757
      %v759 = vpop.f32.mrf.mxu0
      %v760 = vpop.f32.mrf.mxu0
      %v761 = vadd.f32 0.0, %v760
      %v762 = vpop.f32.mrf.mxu0
      %763 = vmatprep.mubr.bf16.mxu0 0
      %764 = vmatmul.mubr.bf16.gmra.mxu0 %v610
      %v765 = vpop.f32.mrf.mxu0
      %v766 = vadd.f32 0.0, %v765
      %v767 = vpop.f32.mrf.mxu0
      %v768 = vpop.f32.mrf.mxu0
      %v769 = vadd.f32 0.0, %v768
      %v770 = vpop.f32.mrf.mxu0
      %771 = vmatprep.mubr.bf16.mxu0 0
      %772 = vmatmul.mubr.bf16.gmra.mxu0 %v613
      %v773 = vpop.f32.mrf.mxu0
      %v774 = vadd.f32 0.0, %v773
      %v775 = vpop.f32.mrf.mxu0
      %v776 = vpop.f32.mrf.mxu0
      %v777 = vadd.f32 0.0, %v776
      %v778 = vpop.f32.mrf.mxu0
      %779 = vdwg.mxu0
      %v780 = vsel %vm566, %v334, 0
      %v782 = vsel %vm566, %v336, 0
      %v784 = vsel %vm566, %v338, 0
      %v786 = vsel %vm566, %v340, 0
      %v788 = vsel %vm566, %v342, 0
      %v790 = vsel %vm566, %v344, 0
      %v792 = vsel %vm566, %v346, 0
      %v794 = vsel %vm566, %v348, 0
      %v796 = vsel %vm566, %v350, 0
      %v798 = vsel %vm566, %v352, 0
      %v800 = vsel %vm566, %v354, 0
      %v802 = vsel %vm566, %v356, 0
      %v804 = vsel %vm566, %v358, 0
      %v806 = vsel %vm566, %v360, 0
      %v808 = vsel %vm566, %v362, 0
      %v810 = vsel %vm566, %v364, 0
      %v813 = vsel %vm615, %v370, 0
      %815 = vmatprep.subr.bf16.mxu0 0
      %816 = vmatpush1.bf16.msra.mxu0 0
      %817 = vmatprep.subr.bf16.mxu0 0
      %818 = vmatpush1.bf16.msra.mxu0 0
      %819 = vmatprep.subr.bf16.mxu0 0
      %820 = vmatpush1.bf16.msra.mxu0 0
      %821 = vmatprep.subr.bf16.mxu0 0
      %822 = vmatpush1.bf16.msra.mxu0 0
      %823 = vmatprep.subr.bf16.mxu0 0
      %824 = vmatpush1.bf16.msra.mxu0 0
      %825 = vmatprep.subr.bf16.mxu0 0
      %826 = vmatpush1.bf16.msra.mxu0 0
      %827 = vmatprep.subr.bf16.mxu0 0
      %828 = vmatpush1.bf16.msra.mxu0 0
      %829 = vmatprep.subr.bf16.mxu0 0
      %830 = vmatpush1.bf16.msra.mxu0 %v813
      %831 = vmatprep.subr.bf16.mxu0 0
      %832 = vmatpush2.bf16.msra.mxu0 0
      %833 = vmatprep.subr.bf16.mxu0 0
      %834 = vmatpush2.bf16.msra.mxu0 0
      %835 = vmatprep.subr.bf16.mxu0 0
      %836 = vmatpush2.bf16.msra.mxu0 0
      %837 = vmatprep.subr.bf16.mxu0 0
      %838 = vmatpush2.bf16.msra.mxu0 0
      %839 = vmatprep.subr.bf16.mxu0 0
      %840 = vmatpush2.bf16.msra.mxu0 0
      %841 = vmatprep.subr.bf16.mxu0 0
      %842 = vmatpush2.bf16.msra.mxu0 0
      %843 = vmatprep.subr.bf16.mxu0 0
      %844 = vmatpush2.bf16.msra.mxu0 0
      %845 = vmatprep.subr.bf16.mxu0 0
      %846 = vmatpush2.bf16.msra.mxu0 0
      %847 = vmatprep.mubr.bf16.mxu0 0
      %848 = vmatmul.mubr.bf16.gmra.mxu0 %v780
      %v849 = vpop.f32.mrf.mxu0
      %v850 = vadd.f32 %v654, %v849
      %v851 = vpop.f32.mrf.mxu0
      %v852 = vpop.f32.mrf.mxu0
      %v853 = vadd.f32 %v657, %v852
      %v854 = vpop.f32.mrf.mxu0
      %855 = vmatprep.mubr.bf16.mxu0 0
      %856 = vmatmul.mubr.bf16.gmra.mxu0 %v782
      %v857 = vpop.f32.mrf.mxu0
      %v858 = vadd.f32 %v662, %v857
      %v859 = vpop.f32.mrf.mxu0
      %v860 = vpop.f32.mrf.mxu0
      %v861 = vadd.f32 %v665, %v860
      %v862 = vpop.f32.mrf.mxu0
      %863 = vmatprep.mubr.bf16.mxu0 0
      %864 = vmatmul.mubr.bf16.gmra.mxu0 %v784
      %v865 = vpop.f32.mrf.mxu0
      %v866 = vadd.f32 %v670, %v865
      %v867 = vpop.f32.mrf.mxu0
      %v868 = vpop.f32.mrf.mxu0
      %v869 = vadd.f32 %v673, %v868
      %v870 = vpop.f32.mrf.mxu0
      %871 = vmatprep.mubr.bf16.mxu0 0
      %872 = vmatmul.mubr.bf16.gmra.mxu0 %v786
      %v873 = vpop.f32.mrf.mxu0
      %v874 = vadd.f32 %v678, %v873
      %v875 = vpop.f32.mrf.mxu0
      %v876 = vpop.f32.mrf.mxu0
      %v877 = vadd.f32 %v681, %v876
      %v878 = vpop.f32.mrf.mxu0
      %879 = vmatprep.mubr.bf16.mxu0 0
      %880 = vmatmul.mubr.bf16.gmra.mxu0 %v788
      %v881 = vpop.f32.mrf.mxu0
      %v882 = vadd.f32 %v686, %v881
      %v883 = vpop.f32.mrf.mxu0
      %v884 = vpop.f32.mrf.mxu0
      %v885 = vadd.f32 %v689, %v884
      %v886 = vpop.f32.mrf.mxu0
      %887 = vmatprep.mubr.bf16.mxu0 0
      %888 = vmatmul.mubr.bf16.gmra.mxu0 %v790
      %v889 = vpop.f32.mrf.mxu0
      %v890 = vadd.f32 %v694, %v889
      %v891 = vpop.f32.mrf.mxu0
      %v892 = vpop.f32.mrf.mxu0
      %v893 = vadd.f32 %v697, %v892
      %v894 = vpop.f32.mrf.mxu0
      %895 = vmatprep.mubr.bf16.mxu0 0
      %896 = vmatmul.mubr.bf16.gmra.mxu0 %v792
      %v897 = vpop.f32.mrf.mxu0
      %v898 = vadd.f32 %v702, %v897
      %v899 = vpop.f32.mrf.mxu0
      %v900 = vpop.f32.mrf.mxu0
      %v901 = vadd.f32 %v705, %v900
      %v902 = vpop.f32.mrf.mxu0
      %903 = vmatprep.mubr.bf16.mxu0 0
      %904 = vmatmul.mubr.bf16.gmra.mxu0 %v794
      %v905 = vpop.f32.mrf.mxu0
      %v906 = vadd.f32 %v710, %v905
      %v907 = vpop.f32.mrf.mxu0
      %v908 = vpop.f32.mrf.mxu0
      %v909 = vadd.f32 %v713, %v908
      %v910 = vpop.f32.mrf.mxu0
      %911 = vmatprep.mubr.bf16.mxu0 0
      %912 = vmatmul.mubr.bf16.gmra.mxu0 %v796
      %v913 = vpop.f32.mrf.mxu0
      %v914 = vadd.f32 %v718, %v913
      %v915 = vpop.f32.mrf.mxu0
      %v916 = vpop.f32.mrf.mxu0
      %v917 = vadd.f32 %v721, %v916
      %v918 = vpop.f32.mrf.mxu0
      %919 = vmatprep.mubr.bf16.mxu0 0
      %920 = vmatmul.mubr.bf16.gmra.mxu0 %v798
      %v921 = vpop.f32.mrf.mxu0
      %v922 = vadd.f32 %v726, %v921
      %v923 = vpop.f32.mrf.mxu0
      %v924 = vpop.f32.mrf.mxu0
      %v925 = vadd.f32 %v729, %v924
      %v926 = vpop.f32.mrf.mxu0
      %927 = vmatprep.mubr.bf16.mxu0 0
      %928 = vmatmul.mubr.bf16.gmra.mxu0 %v800
      %v929 = vpop.f32.mrf.mxu0
      %v930 = vadd.f32 %v734, %v929
      %v931 = vpop.f32.mrf.mxu0
      %v932 = vpop.f32.mrf.mxu0
      %v933 = vadd.f32 %v737, %v932
      %v934 = vpop.f32.mrf.mxu0
      %935 = vmatprep.mubr.bf16.mxu0 0
      %936 = vmatmul.mubr.bf16.gmra.mxu0 %v802
      %v937 = vpop.f32.mrf.mxu0
      %v938 = vadd.f32 %v742, %v937
      %v939 = vpop.f32.mrf.mxu0
      %v940 = vpop.f32.mrf.mxu0
      %v941 = vadd.f32 %v745, %v940
      %v942 = vpop.f32.mrf.mxu0
      %943 = vmatprep.mubr.bf16.mxu0 0
      %944 = vmatmul.mubr.bf16.gmra.mxu0 %v804
      %v945 = vpop.f32.mrf.mxu0
      %v946 = vadd.f32 %v750, %v945
      %v947 = vpop.f32.mrf.mxu0
      %v948 = vpop.f32.mrf.mxu0
      %v949 = vadd.f32 %v753, %v948
      %v950 = vpop.f32.mrf.mxu0
      %951 = vmatprep.mubr.bf16.mxu0 0
      %952 = vmatmul.mubr.bf16.gmra.mxu0 %v806
      %v953 = vpop.f32.mrf.mxu0
      %v954 = vadd.f32 %v758, %v953
      %v955 = vpop.f32.mrf.mxu0
      %v956 = vpop.f32.mrf.mxu0
      %v957 = vadd.f32 %v761, %v956
      %v958 = vpop.f32.mrf.mxu0
      %959 = vmatprep.mubr.bf16.mxu0 0
      %960 = vmatmul.mubr.bf16.gmra.mxu0 %v808
      %v961 = vpop.f32.mrf.mxu0
      %v962 = vadd.f32 %v766, %v961
      %v963 = vpop.f32.mrf.mxu0
      %v964 = vpop.f32.mrf.mxu0
      %v965 = vadd.f32 %v769, %v964
      %v966 = vpop.f32.mrf.mxu0
      %967 = vmatprep.mubr.bf16.mxu0 0
      %968 = vmatmul.mubr.bf16.gmra.mxu0 %v810
      %v969 = vpop.f32.mrf.mxu0
      %v970 = vadd.f32 %v774, %v969
      %v971 = vpop.f32.mrf.mxu0
      %v972 = vpop.f32.mrf.mxu0
      %v973 = vadd.f32 %v777, %v972
      %v974 = vpop.f32.mrf.mxu0
      %975 = vdwg.mxu0
      %vm1008 = vcmask 1046528
      %v1009 = vrot.slane %v334, 1
      %v1010 = vrot.slane %v335, 1
      %v1011 = vsel %vm1008, %v1009, %v1010
      %v1012 = vrot.slane %v336, 1
      %v1013 = vrot.slane %v337, 1
      %v1014 = vsel %vm1008, %v1012, %v1013
      %v1015 = vrot.slane %v338, 1
      %v1016 = vrot.slane %v339, 1
      %v1017 = vsel %vm1008, %v1015, %v1016
      %v1018 = vrot.slane %v340, 1
      %v1019 = vrot.slane %v341, 1
      %v1020 = vsel %vm1008, %v1018, %v1019
      %v1021 = vrot.slane %v342, 1
      %v1022 = vrot.slane %v343, 1
      %v1023 = vsel %vm1008, %v1021, %v1022
      %v1024 = vrot.slane %v344, 1
      %v1025 = vrot.slane %v345, 1
      %v1026 = vsel %vm1008, %v1024, %v1025
      %v1027 = vrot.slane %v346, 1
      %v1028 = vrot.slane %v347, 1
      %v1029 = vsel %vm1008, %v1027, %v1028
      %v1030 = vrot.slane %v348, 1
      %v1031 = vrot.slane %v349, 1
      %v1032 = vsel %vm1008, %v1030, %v1031
      %v1033 = vrot.slane %v350, 1
      %v1034 = vrot.slane %v351, 1
      %v1035 = vsel %vm1008, %v1033, %v1034
      %v1036 = vrot.slane %v352, 1
      %v1037 = vrot.slane %v353, 1
      %v1038 = vsel %vm1008, %v1036, %v1037
      %v1039 = vrot.slane %v354, 1
      %v1040 = vrot.slane %v355, 1
      %v1041 = vsel %vm1008, %v1039, %v1040
      %v1042 = vrot.slane %v356, 1
      %v1043 = vrot.slane %v357, 1
      %v1044 = vsel %vm1008, %v1042, %v1043
      %v1045 = vrot.slane %v358, 1
      %v1046 = vrot.slane %v359, 1
      %v1047 = vsel %vm1008, %v1045, %v1046
      %v1048 = vrot.slane %v360, 1
      %v1049 = vrot.slane %v361, 1
      %v1050 = vsel %vm1008, %v1048, %v1049
      %v1051 = vrot.slane %v362, 1
      %v1052 = vrot.slane %v363, 1
      %v1053 = vsel %vm1008, %v1051, %v1052
      %v1054 = vrot.slane %v364, 1
      %v1055 = vrot.slane %v365, 1
      %v1056 = vsel %vm1008, %v1054, %v1055
      %s1057 = scalar_lea.vmem %s1, 4
      %v1058 = vld [vmem:[%s1057] sm:$0x3]
      %v1060 = vsel %vm566, %v1011, 0
      %v1063 = vsel %vm566, %v1014, 0
      %v1066 = vsel %vm566, %v1017, 0
      %v1069 = vsel %vm566, %v1020, 0
      %v1072 = vsel %vm566, %v1023, 0
      %v1075 = vsel %vm566, %v1026, 0
      %v1078 = vsel %vm566, %v1029, 0
      %v1081 = vsel %vm566, %v1032, 0
      %v1084 = vsel %vm566, %v1035, 0
      %v1087 = vsel %vm566, %v1038, 0
      %v1090 = vsel %vm566, %v1041, 0
      %v1093 = vsel %vm566, %v1044, 0
      %v1096 = vsel %vm566, %v1047, 0
      %v1099 = vsel %vm566, %v1050, 0
      %v1102 = vsel %vm566, %v1053, 0
      %v1105 = vsel %vm566, %v1056, 0
      %v1108 = vsel %vm615, %v1058, 0
      %1110 = vmatprep.subr.bf16.mxu0 0
      %1111 = vmatpush1.bf16.msra.mxu0 0
      %1112 = vmatprep.subr.bf16.mxu0 0
      %1113 = vmatpush1.bf16.msra.mxu0 0
      %1114 = vmatprep.subr.bf16.mxu0 0
      %1115 = vmatpush1.bf16.msra.mxu0 0
      %1116 = vmatprep.subr.bf16.mxu0 0
      %1117 = vmatpush1.bf16.msra.mxu0 0
      %1118 = vmatprep.subr.bf16.mxu0 0
      %1119 = vmatpush1.bf16.msra.mxu0 0
      %1120 = vmatprep.subr.bf16.mxu0 0
      %1121 = vmatpush1.bf16.msra.mxu0 0
      %1122 = vmatprep.subr.bf16.mxu0 0
      %1123 = vmatpush1.bf16.msra.mxu0 0
      %1124 = vmatprep.subr.bf16.mxu0 0
      %1125 = vmatpush1.bf16.msra.mxu0 %v1108
      %1126 = vmatprep.subr.bf16.mxu0 0
      %1127 = vmatpush2.bf16.msra.mxu0 0
      %1128 = vmatprep.subr.bf16.mxu0 0
      %1129 = vmatpush2.bf16.msra.mxu0 0
      %1130 = vmatprep.subr.bf16.mxu0 0
      %1131 = vmatpush2.bf16.msra.mxu0 0
      %1132 = vmatprep.subr.bf16.mxu0 0
      %1133 = vmatpush2.bf16.msra.mxu0 0
      %1134 = vmatprep.subr.bf16.mxu0 0
      %1135 = vmatpush2.bf16.msra.mxu0 0
      %1136 = vmatprep.subr.bf16.mxu0 0
      %1137 = vmatpush2.bf16.msra.mxu0 0
      %1138 = vmatprep.subr.bf16.mxu0 0
      %1139 = vmatpush2.bf16.msra.mxu0 0
      %1140 = vmatprep.subr.bf16.mxu0 0
      %1141 = vmatpush2.bf16.msra.mxu0 0
      %1142 = vmatprep.mubr.bf16.mxu0 0
      %1143 = vmatmul.mubr.bf16.gmra.mxu0 %v1060
      %v1144 = vpop.f32.mrf.mxu0
      %v1145 = vadd.f32 0.0, %v1144
      %v1146 = vpop.f32.mrf.mxu0
      %v1147 = vpop.f32.mrf.mxu0
      %v1148 = vadd.f32 0.0, %v1147
      %v1149 = vpop.f32.mrf.mxu0
      %1150 = vmatprep.mubr.bf16.mxu0 0
      %1151 = vmatmul.mubr.bf16.gmra.mxu0 %v1063
      %v1152 = vpop.f32.mrf.mxu0
      %v1153 = vadd.f32 0.0, %v1152
      %v1154 = vpop.f32.mrf.mxu0
      %v1155 = vpop.f32.mrf.mxu0
      %v1156 = vadd.f32 0.0, %v1155
      %v1157 = vpop.f32.mrf.mxu0
      %1158 = vmatprep.mubr.bf16.mxu0 0
      %1159 = vmatmul.mubr.bf16.gmra.mxu0 %v1066
      %v1160 = vpop.f32.mrf.mxu0
      %v1161 = vadd.f32 0.0, %v1160
      %v1162 = vpop.f32.mrf.mxu0
      %v1163 = vpop.f32.mrf.mxu0
      %v1164 = vadd.f32 0.0, %v1163
      %v1165 = vpop.f32.mrf.mxu0
      %1166 = vmatprep.mubr.bf16.mxu0 0
      %1167 = vmatmul.mubr.bf16.gmra.mxu0 %v1069
      %v1168 = vpop.f32.mrf.mxu0
      %v1169 = vadd.f32 0.0, %v1168
      %v1170 = vpop.f32.mrf.mxu0
      %v1171 = vpop.f32.mrf.mxu0
      %v1172 = vadd.f32 0.0, %v1171
      %v1173 = vpop.f32.mrf.mxu0
      %1174 = vmatprep.mubr.bf16.mxu0 0
      %1175 = vmatmul.mubr.bf16.gmra.mxu0 %v1072
      %v1176 = vpop.f32.mrf.mxu0
      %v1177 = vadd.f32 0.0, %v1176
      %v1178 = vpop.f32.mrf.mxu0
      %v1179 = vpop.f32.mrf.mxu0
      %v1180 = vadd.f32 0.0, %v1179
      %v1181 = vpop.f32.mrf.mxu0
      %1182 = vmatprep.mubr.bf16.mxu0 0
      %1183 = vmatmul.mubr.bf16.gmra.mxu0 %v1075
      %v1184 = vpop.f32.mrf.mxu0
      %v1185 = vadd.f32 0.0, %v1184
      %v1186 = vpop.f32.mrf.mxu0
      %v1187 = vpop.f32.mrf.mxu0
      %v1188 = vadd.f32 0.0, %v1187
      %v1189 = vpop.f32.mrf.mxu0
      %1190 = vmatprep.mubr.bf16.mxu0 0
      %1191 = vmatmul.mubr.bf16.gmra.mxu0 %v1078
      %v1192 = vpop.f32.mrf.mxu0
      %v1193 = vadd.f32 0.0, %v1192
      %v1194 = vpop.f32.mrf.mxu0
      %v1195 = vpop.f32.mrf.mxu0
      %v1196 = vadd.f32 0.0, %v1195
      %v1197 = vpop.f32.mrf.mxu0
      %1198 = vmatprep.mubr.bf16.mxu0 0
      %1199 = vmatmul.mubr.bf16.gmra.mxu0 %v1081
      %v1200 = vpop.f32.mrf.mxu0
      %v1201 = vadd.f32 0.0, %v1200
      %v1202 = vpop.f32.mrf.mxu0
      %v1203 = vpop.f32.mrf.mxu0
      %v1204 = vadd.f32 0.0, %v1203
      %v1205 = vpop.f32.mrf.mxu0
      %1206 = vmatprep.mubr.bf16.mxu0 0
      %1207 = vmatmul.mubr.bf16.gmra.mxu0 %v1084
      %v1208 = vpop.f32.mrf.mxu0
      %v1209 = vadd.f32 0.0, %v1208
      %v1210 = vpop.f32.mrf.mxu0
      %v1211 = vpop.f32.mrf.mxu0
      %v1212 = vadd.f32 0.0, %v1211
      %v1213 = vpop.f32.mrf.mxu0
      %1214 = vmatprep.mubr.bf16.mxu0 0
      %1215 = vmatmul.mubr.bf16.gmra.mxu0 %v1087
      %v1216 = vpop.f32.mrf.mxu0
      %v1217 = vadd.f32 0.0, %v1216
      %v1218 = vpop.f32.mrf.mxu0
      %v1219 = vpop.f32.mrf.mxu0
      %v1220 = vadd.f32 0.0, %v1219
      %v1221 = vpop.f32.mrf.mxu0
      %1222 = vmatprep.mubr.bf16.mxu0 0
      %1223 = vmatmul.mubr.bf16.gmra.mxu0 %v1090
      %v1224 = vpop.f32.mrf.mxu0
      %v1225 = vadd.f32 0.0, %v1224
      %v1226 = vpop.f32.mrf.mxu0
      %v1227 = vpop.f32.mrf.mxu0
      %v1228 = vadd.f32 0.0, %v1227
      %v1229 = vpop.f32.mrf.mxu0
      %1230 = vmatprep.mubr.bf16.mxu0 0
      %1231 = vmatmul.mubr.bf16.gmra.mxu0 %v1093
      %v1232 = vpop.f32.mrf.mxu0
      %v1233 = vadd.f32 0.0, %v1232
      %v1234 = vpop.f32.mrf.mxu0
      %v1235 = vpop.f32.mrf.mxu0
      %v1236 = vadd.f32 0.0, %v1235
      %v1237 = vpop.f32.mrf.mxu0
      %1238 = vmatprep.mubr.bf16.mxu0 0
      %1239 = vmatmul.mubr.bf16.gmra.mxu0 %v1096
      %v1240 = vpop.f32.mrf.mxu0
      %v1241 = vadd.f32 0.0, %v1240
      %v1242 = vpop.f32.mrf.mxu0
      %v1243 = vpop.f32.mrf.mxu0
      %v1244 = vadd.f32 0.0, %v1243
      %v1245 = vpop.f32.mrf.mxu0
      %1246 = vmatprep.mubr.bf16.mxu0 0
      %1247 = vmatmul.mubr.bf16.gmra.mxu0 %v1099
      %v1248 = vpop.f32.mrf.mxu0
      %v1249 = vadd.f32 0.0, %v1248
      %v1250 = vpop.f32.mrf.mxu0
      %v1251 = vpop.f32.mrf.mxu0
      %v1252 = vadd.f32 0.0, %v1251
      %v1253 = vpop.f32.mrf.mxu0
      %1254 = vmatprep.mubr.bf16.mxu0 0
      %1255 = vmatmul.mubr.bf16.gmra.mxu0 %v1102
      %v1256 = vpop.f32.mrf.mxu0
      %v1257 = vadd.f32 0.0, %v1256
      %v1258 = vpop.f32.mrf.mxu0
      %v1259 = vpop.f32.mrf.mxu0
      %v1260 = vadd.f32 0.0, %v1259
      %v1261 = vpop.f32.mrf.mxu0
      %1262 = vmatprep.mubr.bf16.mxu0 0
      %1263 = vmatmul.mubr.bf16.gmra.mxu0 %v1105
      %v1264 = vpop.f32.mrf.mxu0
      %v1265 = vadd.f32 0.0, %v1264
      %v1266 = vpop.f32.mrf.mxu0
      %v1267 = vpop.f32.mrf.mxu0
      %v1268 = vadd.f32 0.0, %v1267
      %v1269 = vpop.f32.mrf.mxu0
      %1270 = vdwg.mxu0
      %v1271 = vadd.f32 %v850, %v1145
      %v1272 = vadd.f32 %v853, %v1148
      %v1273 = vadd.f32 %v858, %v1153
      %v1274 = vadd.f32 %v861, %v1156
      %v1275 = vadd.f32 %v866, %v1161
      %v1276 = vadd.f32 %v869, %v1164
      %v1277 = vadd.f32 %v874, %v1169
      %v1278 = vadd.f32 %v877, %v1172
      %v1279 = vadd.f32 %v882, %v1177
      %v1280 = vadd.f32 %v885, %v1180
      %v1281 = vadd.f32 %v890, %v1185
      %v1282 = vadd.f32 %v893, %v1188
      %v1283 = vadd.f32 %v898, %v1193
      %v1284 = vadd.f32 %v901, %v1196
      %v1285 = vadd.f32 %v906, %v1201
      %v1286 = vadd.f32 %v909, %v1204
      %v1287 = vadd.f32 %v914, %v1209
      %v1288 = vadd.f32 %v917, %v1212
      %v1289 = vadd.f32 %v922, %v1217
      %v1290 = vadd.f32 %v925, %v1220
      %v1291 = vadd.f32 %v930, %v1225
      %v1292 = vadd.f32 %v933, %v1228
      %v1293 = vadd.f32 %v938, %v1233
      %v1294 = vadd.f32 %v941, %v1236
      %v1295 = vadd.f32 %v946, %v1241
      %v1296 = vadd.f32 %v949, %v1244
      %v1297 = vadd.f32 %v954, %v1249
      %v1298 = vadd.f32 %v957, %v1252
      %v1299 = vadd.f32 %v962, %v1257
      %v1300 = vadd.f32 %v965, %v1260
      %v1301 = vadd.f32 %v970, %v1265
      %v1302 = vadd.f32 %v973, %v1268
      %s1303 = scalar_lea.vmem %s1, 6
      %v1304 = vld [vmem:[%s1303] sm:$0x3]
      %v1306 = vsel %vm566, %v366, 0
      %v1309 = vsel %vm615, %v1304, 0
      %1311 = vmatprep.subr.bf16.mxu0 0
      %1312 = vmatpush1.bf16.msra.mxu0 0
      %1313 = vmatprep.subr.bf16.mxu0 0
      %1314 = vmatpush1.bf16.msra.mxu0 0
      %1315 = vmatprep.subr.bf16.mxu0 0
      %1316 = vmatpush1.bf16.msra.mxu0 0
      %1317 = vmatprep.subr.bf16.mxu0 0
      %1318 = vmatpush1.bf16.msra.mxu0 0
      %1319 = vmatprep.subr.bf16.mxu0 0
      %1320 = vmatpush1.bf16.msra.mxu0 0
      %1321 = vmatprep.subr.bf16.mxu0 0
      %1322 = vmatpush1.bf16.msra.mxu0 0
      %1323 = vmatprep.subr.bf16.mxu0 0
      %1324 = vmatpush1.bf16.msra.mxu0 0
      %1325 = vmatprep.subr.bf16.mxu0 0
      %1326 = vmatpush1.bf16.msra.mxu0 %v1309
      %1327 = vmatprep.subr.bf16.mxu0 0
      %1328 = vmatpush2.bf16.msra.mxu0 0
      %1329 = vmatprep.subr.bf16.mxu0 0
      %1330 = vmatpush2.bf16.msra.mxu0 0
      %1331 = vmatprep.subr.bf16.mxu0 0
      %1332 = vmatpush2.bf16.msra.mxu0 0
      %1333 = vmatprep.subr.bf16.mxu0 0
      %1334 = vmatpush2.bf16.msra.mxu0 0
      %1335 = vmatprep.subr.bf16.mxu0 0
      %1336 = vmatpush2.bf16.msra.mxu0 0
      %1337 = vmatprep.subr.bf16.mxu0 0
      %1338 = vmatpush2.bf16.msra.mxu0 0
      %1339 = vmatprep.subr.bf16.mxu0 0
      %1340 = vmatpush2.bf16.msra.mxu0 0
      %1341 = vmatprep.subr.bf16.mxu0 0
      %1342 = vmatpush2.bf16.msra.mxu0 0
      %1343 = vmatprep.mubr.bf16.mxu0 0
      %1344 = vmatmul.mubr.bf16.gmra.mxu0 %v782
      %v1345 = vpop.f32.mrf.mxu0
      %v1346 = vadd.f32 0.0, %v1345
      %v1347 = vpop.f32.mrf.mxu0
      %v1348 = vpop.f32.mrf.mxu0
      %v1349 = vadd.f32 0.0, %v1348
      %v1350 = vpop.f32.mrf.mxu0
      %1351 = vmatprep.mubr.bf16.mxu0 0
      %1352 = vmatmul.mubr.bf16.gmra.mxu0 %v784
      %v1353 = vpop.f32.mrf.mxu0
      %v1354 = vadd.f32 0.0, %v1353
      %v1355 = vpop.f32.mrf.mxu0
      %v1356 = vpop.f32.mrf.mxu0
      %v1357 = vadd.f32 0.0, %v1356
      %v1358 = vpop.f32.mrf.mxu0
      %1359 = vmatprep.mubr.bf16.mxu0 0
      %1360 = vmatmul.mubr.bf16.gmra.mxu0 %v786
      %v1361 = vpop.f32.mrf.mxu0
      %v1362 = vadd.f32 0.0, %v1361
      %v1363 = vpop.f32.mrf.mxu0
      %v1364 = vpop.f32.mrf.mxu0
      %v1365 = vadd.f32 0.0, %v1364
      %v1366 = vpop.f32.mrf.mxu0
      %1367 = vmatprep.mubr.bf16.mxu0 0
      %1368 = vmatmul.mubr.bf16.gmra.mxu0 %v788
      %v1369 = vpop.f32.mrf.mxu0
      %v1370 = vadd.f32 0.0, %v1369
      %v1371 = vpop.f32.mrf.mxu0
      %v1372 = vpop.f32.mrf.mxu0
      %v1373 = vadd.f32 0.0, %v1372
      %v1374 = vpop.f32.mrf.mxu0
      %1375 = vmatprep.mubr.bf16.mxu0 0
      %1376 = vmatmul.mubr.bf16.gmra.mxu0 %v790
      %v1377 = vpop.f32.mrf.mxu0
      %v1378 = vadd.f32 0.0, %v1377
      %v1379 = vpop.f32.mrf.mxu0
      %v1380 = vpop.f32.mrf.mxu0
      %v1381 = vadd.f32 0.0, %v1380
      %v1382 = vpop.f32.mrf.mxu0
      %1383 = vmatprep.mubr.bf16.mxu0 0
      %1384 = vmatmul.mubr.bf16.gmra.mxu0 %v792
      %v1385 = vpop.f32.mrf.mxu0
      %v1386 = vadd.f32 0.0, %v1385
      %v1387 = vpop.f32.mrf.mxu0
      %v1388 = vpop.f32.mrf.mxu0
      %v1389 = vadd.f32 0.0, %v1388
      %v1390 = vpop.f32.mrf.mxu0
      %1391 = vmatprep.mubr.bf16.mxu0 0
      %1392 = vmatmul.mubr.bf16.gmra.mxu0 %v794
      %v1393 = vpop.f32.mrf.mxu0
      %v1394 = vadd.f32 0.0, %v1393
      %v1395 = vpop.f32.mrf.mxu0
      %v1396 = vpop.f32.mrf.mxu0
      %v1397 = vadd.f32 0.0, %v1396
      %v1398 = vpop.f32.mrf.mxu0
      %1399 = vmatprep.mubr.bf16.mxu0 0
      %1400 = vmatmul.mubr.bf16.gmra.mxu0 %v796
      %v1401 = vpop.f32.mrf.mxu0
      %v1402 = vadd.f32 0.0, %v1401
      %v1403 = vpop.f32.mrf.mxu0
      %v1404 = vpop.f32.mrf.mxu0
      %v1405 = vadd.f32 0.0, %v1404
      %v1406 = vpop.f32.mrf.mxu0
      %1407 = vmatprep.mubr.bf16.mxu0 0
      %1408 = vmatmul.mubr.bf16.gmra.mxu0 %v798
      %v1409 = vpop.f32.mrf.mxu0
      %v1410 = vadd.f32 0.0, %v1409
      %v1411 = vpop.f32.mrf.mxu0
      %v1412 = vpop.f32.mrf.mxu0
      %v1413 = vadd.f32 0.0, %v1412
      %v1414 = vpop.f32.mrf.mxu0
      %1415 = vmatprep.mubr.bf16.mxu0 0
      %1416 = vmatmul.mubr.bf16.gmra.mxu0 %v800
      %v1417 = vpop.f32.mrf.mxu0
      %v1418 = vadd.f32 0.0, %v1417
      %v1419 = vpop.f32.mrf.mxu0
      %v1420 = vpop.f32.mrf.mxu0
      %v1421 = vadd.f32 0.0, %v1420
      %v1422 = vpop.f32.mrf.mxu0
      %1423 = vmatprep.mubr.bf16.mxu0 0
      %1424 = vmatmul.mubr.bf16.gmra.mxu0 %v802
      %v1425 = vpop.f32.mrf.mxu0
      %v1426 = vadd.f32 0.0, %v1425
      %v1427 = vpop.f32.mrf.mxu0
      %v1428 = vpop.f32.mrf.mxu0
      %v1429 = vadd.f32 0.0, %v1428
      %v1430 = vpop.f32.mrf.mxu0
      %1431 = vmatprep.mubr.bf16.mxu0 0
      %1432 = vmatmul.mubr.bf16.gmra.mxu0 %v804
      %v1433 = vpop.f32.mrf.mxu0
      %v1434 = vadd.f32 0.0, %v1433
      %v1435 = vpop.f32.mrf.mxu0
      %v1436 = vpop.f32.mrf.mxu0
      %v1437 = vadd.f32 0.0, %v1436
      %v1438 = vpop.f32.mrf.mxu0
      %1439 = vmatprep.mubr.bf16.mxu0 0
      %1440 = vmatmul.mubr.bf16.gmra.mxu0 %v806
      %v1441 = vpop.f32.mrf.mxu0
      %v1442 = vadd.f32 0.0, %v1441
      %v1443 = vpop.f32.mrf.mxu0
      %v1444 = vpop.f32.mrf.mxu0
      %v1445 = vadd.f32 0.0, %v1444
      %v1446 = vpop.f32.mrf.mxu0
      %1447 = vmatprep.mubr.bf16.mxu0 0
      %1448 = vmatmul.mubr.bf16.gmra.mxu0 %v808
      %v1449 = vpop.f32.mrf.mxu0
      %v1450 = vadd.f32 0.0, %v1449
      %v1451 = vpop.f32.mrf.mxu0
      %v1452 = vpop.f32.mrf.mxu0
      %v1453 = vadd.f32 0.0, %v1452
      %v1454 = vpop.f32.mrf.mxu0
      %1455 = vmatprep.mubr.bf16.mxu0 0
      %1456 = vmatmul.mubr.bf16.gmra.mxu0 %v810
      %v1457 = vpop.f32.mrf.mxu0
      %v1458 = vadd.f32 0.0, %v1457
      %v1459 = vpop.f32.mrf.mxu0
      %v1460 = vpop.f32.mrf.mxu0
      %v1461 = vadd.f32 0.0, %v1460
      %v1462 = vpop.f32.mrf.mxu0
      %1463 = vmatprep.mubr.bf16.mxu0 0
      %1464 = vmatmul.mubr.bf16.gmra.mxu0 %v1306
      %v1465 = vpop.f32.mrf.mxu0
      %v1466 = vadd.f32 0.0, %v1465
      %v1467 = vpop.f32.mrf.mxu0
      %v1468 = vpop.f32.mrf.mxu0
      %v1469 = vadd.f32 0.0, %v1468
      %v1470 = vpop.f32.mrf.mxu0
      %1471 = vdwg.mxu0
      %v1472 = vadd.f32 %v1271, %v1346
      %v1473 = vadd.f32 %v1272, %v1349
      %v1474 = vadd.f32 %v1273, %v1354
      %v1475 = vadd.f32 %v1274, %v1357
      %v1476 = vadd.f32 %v1275, %v1362
      %v1477 = vadd.f32 %v1276, %v1365
      %v1478 = vadd.f32 %v1277, %v1370
      %v1479 = vadd.f32 %v1278, %v1373
      %v1480 = vadd.f32 %v1279, %v1378
      %v1481 = vadd.f32 %v1280, %v1381
      %v1482 = vadd.f32 %v1281, %v1386
      %v1483 = vadd.f32 %v1282, %v1389
      %v1484 = vadd.f32 %v1283, %v1394
      %v1485 = vadd.f32 %v1284, %v1397
      %v1486 = vadd.f32 %v1285, %v1402
      %v1487 = vadd.f32 %v1286, %v1405
      %v1488 = vadd.f32 %v1287, %v1410
      %v1489 = vadd.f32 %v1288, %v1413
      %v1490 = vadd.f32 %v1289, %v1418
      %v1491 = vadd.f32 %v1290, %v1421
      %v1492 = vadd.f32 %v1291, %v1426
      %v1493 = vadd.f32 %v1292, %v1429
      %v1494 = vadd.f32 %v1293, %v1434
      %v1495 = vadd.f32 %v1294, %v1437
      %v1496 = vadd.f32 %v1295, %v1442
      %v1497 = vadd.f32 %v1296, %v1445
      %v1498 = vadd.f32 %v1297, %v1450
      %v1499 = vadd.f32 %v1298, %v1453
      %v1500 = vadd.f32 %v1299, %v1458
      %v1501 = vadd.f32 %v1300, %v1461
      %v1502 = vadd.f32 %v1301, %v1466
      %v1503 = vadd.f32 %v1302, %v1469
      %v1504 = vshrl.u32 %v366, 16
      %v1506 = vshll.u32 %v366, 16
      %v1508 = vrot.slane %v1506, 1
      %v1509 = vor.u32 %v1504, %v1508
      %v1511 = vshll.u32 %v367, 16
      %v1513 = vrot.slane %v1511, 1
      %v1514 = vsel %vm371, %v1509, %v1513
      %s1515 = scalar_lea.vmem %s1, 8
      %v1516 = vld [vmem:[%s1515] sm:$0x3]
      %v1518 = vsel %vm566, %v1514, 0
      %v1521 = vsel %vm615, %v1516, 0
      %1523 = vmatprep.subr.bf16.mxu0 0
      %1524 = vmatpush1.bf16.msra.mxu0 0
      %1525 = vmatprep.subr.bf16.mxu0 0
      %1526 = vmatpush1.bf16.msra.mxu0 0
      %1527 = vmatprep.subr.bf16.mxu0 0
      %1528 = vmatpush1.bf16.msra.mxu0 0
      %1529 = vmatprep.subr.bf16.mxu0 0
      %1530 = vmatpush1.bf16.msra.mxu0 0
      %1531 = vmatprep.subr.bf16.mxu0 0
      %1532 = vmatpush1.bf16.msra.mxu0 0
      %1533 = vmatprep.subr.bf16.mxu0 0
      %1534 = vmatpush1.bf16.msra.mxu0 0
      %1535 = vmatprep.subr.bf16.mxu0 0
      %1536 = vmatpush1.bf16.msra.mxu0 0
      %1537 = vmatprep.subr.bf16.mxu0 0
      %1538 = vmatpush1.bf16.msra.mxu0 %v1521
      %1539 = vmatprep.subr.bf16.mxu0 0
      %1540 = vmatpush2.bf16.msra.mxu0 0
      %1541 = vmatprep.subr.bf16.mxu0 0
      %1542 = vmatpush2.bf16.msra.mxu0 0
      %1543 = vmatprep.subr.bf16.mxu0 0
      %1544 = vmatpush2.bf16.msra.mxu0 0
      %1545 = vmatprep.subr.bf16.mxu0 0
      %1546 = vmatpush2.bf16.msra.mxu0 0
      %1547 = vmatprep.subr.bf16.mxu0 0
      %1548 = vmatpush2.bf16.msra.mxu0 0
      %1549 = vmatprep.subr.bf16.mxu0 0
      %1550 = vmatpush2.bf16.msra.mxu0 0
      %1551 = vmatprep.subr.bf16.mxu0 0
      %1552 = vmatpush2.bf16.msra.mxu0 0
      %1553 = vmatprep.subr.bf16.mxu0 0
      %1554 = vmatpush2.bf16.msra.mxu0 0
      %1555 = vmatprep.mubr.bf16.mxu0 0
      %1556 = vmatmul.mubr.bf16.gmra.mxu0 %v571
      %v1557 = vpop.f32.mrf.mxu0
      %v1558 = vadd.f32 0.0, %v1557
      %v1559 = vpop.f32.mrf.mxu0
      %v1560 = vpop.f32.mrf.mxu0
      %v1561 = vadd.f32 0.0, %v1560
      %v1562 = vpop.f32.mrf.mxu0
      %1563 = vmatprep.mubr.bf16.mxu0 0
      %1564 = vmatmul.mubr.bf16.gmra.mxu0 %v574
      %v1565 = vpop.f32.mrf.mxu0
      %v1566 = vadd.f32 0.0, %v1565
      %v1567 = vpop.f32.mrf.mxu0
      %v1568 = vpop.f32.mrf.mxu0
      %v1569 = vadd.f32 0.0, %v1568
      %v1570 = vpop.f32.mrf.mxu0
      %1571 = vmatprep.mubr.bf16.mxu0 0
      %1572 = vmatmul.mubr.bf16.gmra.mxu0 %v577
      %v1573 = vpop.f32.mrf.mxu0
      %v1574 = vadd.f32 0.0, %v1573
      %v1575 = vpop.f32.mrf.mxu0
      %v1576 = vpop.f32.mrf.mxu0
      %v1577 = vadd.f32 0.0, %v1576
      %v1578 = vpop.f32.mrf.mxu0
      %1579 = vmatprep.mubr.bf16.mxu0 0
      %1580 = vmatmul.mubr.bf16.gmra.mxu0 %v580
      %v1581 = vpop.f32.mrf.mxu0
      %v1582 = vadd.f32 0.0, %v1581
      %v1583 = vpop.f32.mrf.mxu0
      %v1584 = vpop.f32.mrf.mxu0
      %v1585 = vadd.f32 0.0, %v1584
      %v1586 = vpop.f32.mrf.mxu0
      %1587 = vmatprep.mubr.bf16.mxu0 0
      %1588 = vmatmul.mubr.bf16.gmra.mxu0 %v583
      %v1589 = vpop.f32.mrf.mxu0
      %v1590 = vadd.f32 0.0, %v1589
      %v1591 = vpop.f32.mrf.mxu0
      %v1592 = vpop.f32.mrf.mxu0
      %v1593 = vadd.f32 0.0, %v1592
      %v1594 = vpop.f32.mrf.mxu0
      %1595 = vmatprep.mubr.bf16.mxu0 0
      %1596 = vmatmul.mubr.bf16.gmra.mxu0 %v586
      %v1597 = vpop.f32.mrf.mxu0
      %v1598 = vadd.f32 0.0, %v1597
      %v1599 = vpop.f32.mrf.mxu0
      %v1600 = vpop.f32.mrf.mxu0
      %v1601 = vadd.f32 0.0, %v1600
      %v1602 = vpop.f32.mrf.mxu0
      %1603 = vmatprep.mubr.bf16.mxu0 0
      %1604 = vmatmul.mubr.bf16.gmra.mxu0 %v589
      %v1605 = vpop.f32.mrf.mxu0
      %v1606 = vadd.f32 0.0, %v1605
      %v1607 = vpop.f32.mrf.mxu0
      %v1608 = vpop.f32.mrf.mxu0
      %v1609 = vadd.f32 0.0, %v1608
      %v1610 = vpop.f32.mrf.mxu0
      %1611 = vmatprep.mubr.bf16.mxu0 0
      %1612 = vmatmul.mubr.bf16.gmra.mxu0 %v592
      %v1613 = vpop.f32.mrf.mxu0
      %v1614 = vadd.f32 0.0, %v1613
      %v1615 = vpop.f32.mrf.mxu0
      %v1616 = vpop.f32.mrf.mxu0
      %v1617 = vadd.f32 0.0, %v1616
      %v1618 = vpop.f32.mrf.mxu0
      %1619 = vmatprep.mubr.bf16.mxu0 0
      %1620 = vmatmul.mubr.bf16.gmra.mxu0 %v595
      %v1621 = vpop.f32.mrf.mxu0
      %v1622 = vadd.f32 0.0, %v1621
      %v1623 = vpop.f32.mrf.mxu0
      %v1624 = vpop.f32.mrf.mxu0
      %v1625 = vadd.f32 0.0, %v1624
      %v1626 = vpop.f32.mrf.mxu0
      %1627 = vmatprep.mubr.bf16.mxu0 0
      %1628 = vmatmul.mubr.bf16.gmra.mxu0 %v598
      %v1629 = vpop.f32.mrf.mxu0
      %v1630 = vadd.f32 0.0, %v1629
      %v1631 = vpop.f32.mrf.mxu0
      %v1632 = vpop.f32.mrf.mxu0
      %v1633 = vadd.f32 0.0, %v1632
      %v1634 = vpop.f32.mrf.mxu0
      %1635 = vmatprep.mubr.bf16.mxu0 0
      %1636 = vmatmul.mubr.bf16.gmra.mxu0 %v601
      %v1637 = vpop.f32.mrf.mxu0
      %v1638 = vadd.f32 0.0, %v1637
      %v1639 = vpop.f32.mrf.mxu0
      %v1640 = vpop.f32.mrf.mxu0
      %v1641 = vadd.f32 0.0, %v1640
      %v1642 = vpop.f32.mrf.mxu0
      %1643 = vmatprep.mubr.bf16.mxu0 0
      %1644 = vmatmul.mubr.bf16.gmra.mxu0 %v604
      %v1645 = vpop.f32.mrf.mxu0
      %v1646 = vadd.f32 0.0, %v1645
      %v1647 = vpop.f32.mrf.mxu0
      %v1648 = vpop.f32.mrf.mxu0
      %v1649 = vadd.f32 0.0, %v1648
      %v1650 = vpop.f32.mrf.mxu0
      %1651 = vmatprep.mubr.bf16.mxu0 0
      %1652 = vmatmul.mubr.bf16.gmra.mxu0 %v607
      %v1653 = vpop.f32.mrf.mxu0
      %v1654 = vadd.f32 0.0, %v1653
      %v1655 = vpop.f32.mrf.mxu0
      %v1656 = vpop.f32.mrf.mxu0
      %v1657 = vadd.f32 0.0, %v1656
      %v1658 = vpop.f32.mrf.mxu0
      %1659 = vmatprep.mubr.bf16.mxu0 0
      %1660 = vmatmul.mubr.bf16.gmra.mxu0 %v610
      %v1661 = vpop.f32.mrf.mxu0
      %v1662 = vadd.f32 0.0, %v1661
      %v1663 = vpop.f32.mrf.mxu0
      %v1664 = vpop.f32.mrf.mxu0
      %v1665 = vadd.f32 0.0, %v1664
      %v1666 = vpop.f32.mrf.mxu0
      %1667 = vmatprep.mubr.bf16.mxu0 0
      %1668 = vmatmul.mubr.bf16.gmra.mxu0 %v613
      %v1669 = vpop.f32.mrf.mxu0
      %v1670 = vadd.f32 0.0, %v1669
      %v1671 = vpop.f32.mrf.mxu0
      %v1672 = vpop.f32.mrf.mxu0
      %v1673 = vadd.f32 0.0, %v1672
      %v1674 = vpop.f32.mrf.mxu0
      %1675 = vmatprep.mubr.bf16.mxu0 0
      %1676 = vmatmul.mubr.bf16.gmra.mxu0 %v1518
      %v1677 = vpop.f32.mrf.mxu0
      %v1678 = vadd.f32 0.0, %v1677
      %v1679 = vpop.f32.mrf.mxu0
      %v1680 = vpop.f32.mrf.mxu0
      %v1681 = vadd.f32 0.0, %v1680
      %v1682 = vpop.f32.mrf.mxu0
      %1683 = vdwg.mxu0
      %v1684 = vadd.f32 %v1472, %v1558
      %v1685 = vadd.f32 %v1473, %v1561
      %v1686 = vadd.f32 %v1474, %v1566
      %v1687 = vadd.f32 %v1475, %v1569
      %v1688 = vadd.f32 %v1476, %v1574
      %v1689 = vadd.f32 %v1477, %v1577
      %v1690 = vadd.f32 %v1478, %v1582
      %v1691 = vadd.f32 %v1479, %v1585
      %v1692 = vadd.f32 %v1480, %v1590
      %v1693 = vadd.f32 %v1481, %v1593
      %v1694 = vadd.f32 %v1482, %v1598
      %v1695 = vadd.f32 %v1483, %v1601
      %v1696 = vadd.f32 %v1484, %v1606
      %v1697 = vadd.f32 %v1485, %v1609
      %v1698 = vadd.f32 %v1486, %v1614
      %v1699 = vadd.f32 %v1487, %v1617
      %v1700 = vadd.f32 %v1488, %v1622
      %v1701 = vadd.f32 %v1489, %v1625
      %v1702 = vadd.f32 %v1490, %v1630
      %v1703 = vadd.f32 %v1491, %v1633
      %v1704 = vadd.f32 %v1492, %v1638
      %v1705 = vadd.f32 %v1493, %v1641
      %v1706 = vadd.f32 %v1494, %v1646
      %v1707 = vadd.f32 %v1495, %v1649
      %v1708 = vadd.f32 %v1496, %v1654
      %v1709 = vadd.f32 %v1497, %v1657
      %v1710 = vadd.f32 %v1498, %v1662
      %v1711 = vadd.f32 %v1499, %v1665
      %v1712 = vadd.f32 %v1500, %v1670
      %v1713 = vadd.f32 %v1501, %v1673
      %v1714 = vadd.f32 %v1502, %v1678
      %v1715 = vadd.f32 %v1503, %v1681
      %v1718 = vrot.slane %v366, 1
      %v1719 = vrot.slane %v367, 1
      %v1720 = vsel %vm1008, %v1718, %v1719
      %s1721 = scalar_lea.vmem %s1, 10
      %v1722 = vld [vmem:[%s1721] sm:$0x3]
      %v1724 = vsel %vm566, %v1720, 0
      %v1727 = vsel %vm615, %v1722, 0
      %1729 = vmatprep.subr.bf16.mxu0 0
      %1730 = vmatpush1.bf16.msra.mxu0 0
      %1731 = vmatprep.subr.bf16.mxu0 0
      %1732 = vmatpush1.bf16.msra.mxu0 0
      %1733 = vmatprep.subr.bf16.mxu0 0
      %1734 = vmatpush1.bf16.msra.mxu0 0
      %1735 = vmatprep.subr.bf16.mxu0 0
      %1736 = vmatpush1.bf16.msra.mxu0 0
      %1737 = vmatprep.subr.bf16.mxu0 0
      %1738 = vmatpush1.bf16.msra.mxu0 0
      %1739 = vmatprep.subr.bf16.mxu0 0
      %1740 = vmatpush1.bf16.msra.mxu0 0
      %1741 = vmatprep.subr.bf16.mxu0 0
      %1742 = vmatpush1.bf16.msra.mxu0 0
      %1743 = vmatprep.subr.bf16.mxu0 0
      %1744 = vmatpush1.bf16.msra.mxu0 %v1727
      %1745 = vmatprep.subr.bf16.mxu0 0
      %1746 = vmatpush2.bf16.msra.mxu0 0
      %1747 = vmatprep.subr.bf16.mxu0 0
      %1748 = vmatpush2.bf16.msra.mxu0 0
      %1749 = vmatprep.subr.bf16.mxu0 0
      %1750 = vmatpush2.bf16.msra.mxu0 0
      %1751 = vmatprep.subr.bf16.mxu0 0
      %1752 = vmatpush2.bf16.msra.mxu0 0
      %1753 = vmatprep.subr.bf16.mxu0 0
      %1754 = vmatpush2.bf16.msra.mxu0 0
      %1755 = vmatprep.subr.bf16.mxu0 0
      %1756 = vmatpush2.bf16.msra.mxu0 0
      %1757 = vmatprep.subr.bf16.mxu0 0
      %1758 = vmatpush2.bf16.msra.mxu0 0
      %1759 = vmatprep.subr.bf16.mxu0 0
      %1760 = vmatpush2.bf16.msra.mxu0 0
      %1761 = vmatprep.mubr.bf16.mxu0 0
      %1762 = vmatmul.mubr.bf16.gmra.mxu0 %v1063
      %v1763 = vpop.f32.mrf.mxu0
      %v1764 = vadd.f32 0.0, %v1763
      %v1765 = vpop.f32.mrf.mxu0
      %v1766 = vpop.f32.mrf.mxu0
      %v1767 = vadd.f32 0.0, %v1766
      %v1768 = vpop.f32.mrf.mxu0
      %1769 = vmatprep.mubr.bf16.mxu0 0
      %1770 = vmatmul.mubr.bf16.gmra.mxu0 %v1066
      %v1771 = vpop.f32.mrf.mxu0
      %v1772 = vadd.f32 0.0, %v1771
      %v1773 = vpop.f32.mrf.mxu0
      %v1774 = vpop.f32.mrf.mxu0
      %v1775 = vadd.f32 0.0, %v1774
      %v1776 = vpop.f32.mrf.mxu0
      %1777 = vmatprep.mubr.bf16.mxu0 0
      %1778 = vmatmul.mubr.bf16.gmra.mxu0 %v1069
      %v1779 = vpop.f32.mrf.mxu0
      %v1780 = vadd.f32 0.0, %v1779
      %v1781 = vpop.f32.mrf.mxu0
      %v1782 = vpop.f32.mrf.mxu0
      %v1783 = vadd.f32 0.0, %v1782
      %v1784 = vpop.f32.mrf.mxu0
      %1785 = vmatprep.mubr.bf16.mxu0 0
      %1786 = vmatmul.mubr.bf16.gmra.mxu0 %v1072
      %v1787 = vpop.f32.mrf.mxu0
      %v1788 = vadd.f32 0.0, %v1787
      %v1789 = vpop.f32.mrf.mxu0
      %v1790 = vpop.f32.mrf.mxu0
      %v1791 = vadd.f32 0.0, %v1790
      %v1792 = vpop.f32.mrf.mxu0
      %1793 = vmatprep.mubr.bf16.mxu0 0
      %1794 = vmatmul.mubr.bf16.gmra.mxu0 %v1075
      %v1795 = vpop.f32.mrf.mxu0
      %v1796 = vadd.f32 0.0, %v1795
      %v1797 = vpop.f32.mrf.mxu0
      %v1798 = vpop.f32.mrf.mxu0
      %v1799 = vadd.f32 0.0, %v1798
      %v1800 = vpop.f32.mrf.mxu0
      %1801 = vmatprep.mubr.bf16.mxu0 0
      %1802 = vmatmul.mubr.bf16.gmra.mxu0 %v1078
      %v1803 = vpop.f32.mrf.mxu0
      %v1804 = vadd.f32 0.0, %v1803
      %v1805 = vpop.f32.mrf.mxu0
      %v1806 = vpop.f32.mrf.mxu0
      %v1807 = vadd.f32 0.0, %v1806
      %v1808 = vpop.f32.mrf.mxu0
      %1809 = vmatprep.mubr.bf16.mxu0 0
      %1810 = vmatmul.mubr.bf16.gmra.mxu0 %v1081
      %v1811 = vpop.f32.mrf.mxu0
      %v1812 = vadd.f32 0.0, %v1811
      %v1813 = vpop.f32.mrf.mxu0
      %v1814 = vpop.f32.mrf.mxu0
      %v1815 = vadd.f32 0.0, %v1814
      %v1816 = vpop.f32.mrf.mxu0
      %1817 = vmatprep.mubr.bf16.mxu0 0
      %1818 = vmatmul.mubr.bf16.gmra.mxu0 %v1084
      %v1819 = vpop.f32.mrf.mxu0
      %v1820 = vadd.f32 0.0, %v1819
      %v1821 = vpop.f32.mrf.mxu0
      %v1822 = vpop.f32.mrf.mxu0
      %v1823 = vadd.f32 0.0, %v1822
      %v1824 = vpop.f32.mrf.mxu0
      %1825 = vmatprep.mubr.bf16.mxu0 0
      %1826 = vmatmul.mubr.bf16.gmra.mxu0 %v1087
      %v1827 = vpop.f32.mrf.mxu0
      %v1828 = vadd.f32 0.0, %v1827
      %v1829 = vpop.f32.mrf.mxu0
      %v1830 = vpop.f32.mrf.mxu0
      %v1831 = vadd.f32 0.0, %v1830
      %v1832 = vpop.f32.mrf.mxu0
      %1833 = vmatprep.mubr.bf16.mxu0 0
      %1834 = vmatmul.mubr.bf16.gmra.mxu0 %v1090
      %v1835 = vpop.f32.mrf.mxu0
      %v1836 = vadd.f32 0.0, %v1835
      %v1837 = vpop.f32.mrf.mxu0
      %v1838 = vpop.f32.mrf.mxu0
      %v1839 = vadd.f32 0.0, %v1838
      %v1840 = vpop.f32.mrf.mxu0
      %1841 = vmatprep.mubr.bf16.mxu0 0
      %1842 = vmatmul.mubr.bf16.gmra.mxu0 %v1093
      %v1843 = vpop.f32.mrf.mxu0
      %v1844 = vadd.f32 0.0, %v1843
      %v1845 = vpop.f32.mrf.mxu0
      %v1846 = vpop.f32.mrf.mxu0
      %v1847 = vadd.f32 0.0, %v1846
      %v1848 = vpop.f32.mrf.mxu0
      %1849 = vmatprep.mubr.bf16.mxu0 0
      %1850 = vmatmul.mubr.bf16.gmra.mxu0 %v1096
      %v1851 = vpop.f32.mrf.mxu0
      %v1852 = vadd.f32 0.0, %v1851
      %v1853 = vpop.f32.mrf.mxu0
      %v1854 = vpop.f32.mrf.mxu0
      %v1855 = vadd.f32 0.0, %v1854
      %v1856 = vpop.f32.mrf.mxu0
      %1857 = vmatprep.mubr.bf16.mxu0 0
      %1858 = vmatmul.mubr.bf16.gmra.mxu0 %v1099
      %v1859 = vpop.f32.mrf.mxu0
      %v1860 = vadd.f32 0.0, %v1859
      %v1861 = vpop.f32.mrf.mxu0
      %v1862 = vpop.f32.mrf.mxu0
      %v1863 = vadd.f32 0.0, %v1862
      %v1864 = vpop.f32.mrf.mxu0
      %1865 = vmatprep.mubr.bf16.mxu0 0
      %1866 = vmatmul.mubr.bf16.gmra.mxu0 %v1102
      %v1867 = vpop.f32.mrf.mxu0
      %v1868 = vadd.f32 0.0, %v1867
      %v1869 = vpop.f32.mrf.mxu0
      %v1870 = vpop.f32.mrf.mxu0
      %v1871 = vadd.f32 0.0, %v1870
      %v1872 = vpop.f32.mrf.mxu0
      %1873 = vmatprep.mubr.bf16.mxu0 0
      %1874 = vmatmul.mubr.bf16.gmra.mxu0 %v1105
      %v1875 = vpop.f32.mrf.mxu0
      %v1876 = vadd.f32 0.0, %v1875
      %v1877 = vpop.f32.mrf.mxu0
      %v1878 = vpop.f32.mrf.mxu0
      %v1879 = vadd.f32 0.0, %v1878
      %v1880 = vpop.f32.mrf.mxu0
      %1881 = vmatprep.mubr.bf16.mxu0 0
      %1882 = vmatmul.mubr.bf16.gmra.mxu0 %v1724
      %v1883 = vpop.f32.mrf.mxu0
      %v1884 = vadd.f32 0.0, %v1883
      %v1885 = vpop.f32.mrf.mxu0
      %v1886 = vpop.f32.mrf.mxu0
      %v1887 = vadd.f32 0.0, %v1886
      %v1888 = vpop.f32.mrf.mxu0
      %1889 = vdwg.mxu0
      %v1890 = vadd.f32 %v1684, %v1764
      %v1891 = vadd.f32 %v1685, %v1767
      %v1892 = vadd.f32 %v1686, %v1772
      %v1893 = vadd.f32 %v1687, %v1775
      %v1894 = vadd.f32 %v1688, %v1780
      %v1895 = vadd.f32 %v1689, %v1783
      %v1896 = vadd.f32 %v1690, %v1788
      %v1897 = vadd.f32 %v1691, %v1791
      %v1898 = vadd.f32 %v1692, %v1796
      %v1899 = vadd.f32 %v1693, %v1799
      %v1900 = vadd.f32 %v1694, %v1804
      %v1901 = vadd.f32 %v1695, %v1807
      %v1902 = vadd.f32 %v1696, %v1812
      %v1903 = vadd.f32 %v1697, %v1815
      %v1904 = vadd.f32 %v1698, %v1820
      %v1905 = vadd.f32 %v1699, %v1823
      %v1906 = vadd.f32 %v1700, %v1828
      %v1907 = vadd.f32 %v1701, %v1831
      %v1908 = vadd.f32 %v1702, %v1836
      %v1909 = vadd.f32 %v1703, %v1839
      %v1910 = vadd.f32 %v1704, %v1844
      %v1911 = vadd.f32 %v1705, %v1847
      %v1912 = vadd.f32 %v1706, %v1852
      %v1913 = vadd.f32 %v1707, %v1855
      %v1914 = vadd.f32 %v1708, %v1860
      %v1915 = vadd.f32 %v1709, %v1863
      %v1916 = vadd.f32 %v1710, %v1868
      %v1917 = vadd.f32 %v1711, %v1871
      %v1918 = vadd.f32 %v1712, %v1876
      %v1919 = vadd.f32 %v1713, %v1879
      %v1920 = vadd.f32 %v1714, %v1884
      %v1921 = vadd.f32 %v1715, %v1887
      %s1922 = scalar_lea.vmem %s1, 12
      %v1923 = vld [vmem:[%s1922] sm:$0x3]
      %v1925 = vsel %vm566, %v368, 0
      %v1928 = vsel %vm615, %v1923, 0
      %1930 = vmatprep.subr.bf16.mxu0 0
      %1931 = vmatpush1.bf16.msra.mxu0 0
      %1932 = vmatprep.subr.bf16.mxu0 0
      %1933 = vmatpush1.bf16.msra.mxu0 0
      %1934 = vmatprep.subr.bf16.mxu0 0
      %1935 = vmatpush1.bf16.msra.mxu0 0
      %1936 = vmatprep.subr.bf16.mxu0 0
      %1937 = vmatpush1.bf16.msra.mxu0 0
      %1938 = vmatprep.subr.bf16.mxu0 0
      %1939 = vmatpush1.bf16.msra.mxu0 0
      %1940 = vmatprep.subr.bf16.mxu0 0
      %1941 = vmatpush1.bf16.msra.mxu0 0
      %1942 = vmatprep.subr.bf16.mxu0 0
      %1943 = vmatpush1.bf16.msra.mxu0 0
      %1944 = vmatprep.subr.bf16.mxu0 0
      %1945 = vmatpush1.bf16.msra.mxu0 %v1928
      %1946 = vmatprep.subr.bf16.mxu0 0
      %1947 = vmatpush2.bf16.msra.mxu0 0
      %1948 = vmatprep.subr.bf16.mxu0 0
      %1949 = vmatpush2.bf16.msra.mxu0 0
      %1950 = vmatprep.subr.bf16.mxu0 0
      %1951 = vmatpush2.bf16.msra.mxu0 0
      %1952 = vmatprep.subr.bf16.mxu0 0
      %1953 = vmatpush2.bf16.msra.mxu0 0
      %1954 = vmatprep.subr.bf16.mxu0 0
      %1955 = vmatpush2.bf16.msra.mxu0 0
      %1956 = vmatprep.subr.bf16.mxu0 0
      %1957 = vmatpush2.bf16.msra.mxu0 0
      %1958 = vmatprep.subr.bf16.mxu0 0
      %1959 = vmatpush2.bf16.msra.mxu0 0
      %1960 = vmatprep.subr.bf16.mxu0 0
      %1961 = vmatpush2.bf16.msra.mxu0 0
      %1962 = vmatprep.mubr.bf16.mxu0 0
      %1963 = vmatmul.mubr.bf16.gmra.mxu0 %v784
      %v1964 = vpop.f32.mrf.mxu0
      %v1965 = vadd.f32 0.0, %v1964
      %v1966 = vpop.f32.mrf.mxu0
      %v1967 = vpop.f32.mrf.mxu0
      %v1968 = vadd.f32 0.0, %v1967
      %v1969 = vpop.f32.mrf.mxu0
      %1970 = vmatprep.mubr.bf16.mxu0 0
      %1971 = vmatmul.mubr.bf16.gmra.mxu0 %v786
      %v1972 = vpop.f32.mrf.mxu0
      %v1973 = vadd.f32 0.0, %v1972
      %v1974 = vpop.f32.mrf.mxu0
      %v1975 = vpop.f32.mrf.mxu0
      %v1976 = vadd.f32 0.0, %v1975
      %v1977 = vpop.f32.mrf.mxu0
      %1978 = vmatprep.mubr.bf16.mxu0 0
      %1979 = vmatmul.mubr.bf16.gmra.mxu0 %v788
      %v1980 = vpop.f32.mrf.mxu0
      %v1981 = vadd.f32 0.0, %v1980
      %v1982 = vpop.f32.mrf.mxu0
      %v1983 = vpop.f32.mrf.mxu0
      %v1984 = vadd.f32 0.0, %v1983
      %v1985 = vpop.f32.mrf.mxu0
      %1986 = vmatprep.mubr.bf16.mxu0 0
      %1987 = vmatmul.mubr.bf16.gmra.mxu0 %v790
      %v1988 = vpop.f32.mrf.mxu0
      %v1989 = vadd.f32 0.0, %v1988
      %v1990 = vpop.f32.mrf.mxu0
      %v1991 = vpop.f32.mrf.mxu0
      %v1992 = vadd.f32 0.0, %v1991
      %v1993 = vpop.f32.mrf.mxu0
      %1994 = vmatprep.mubr.bf16.mxu0 0
      %1995 = vmatmul.mubr.bf16.gmra.mxu0 %v792
      %v1996 = vpop.f32.mrf.mxu0
      %v1997 = vadd.f32 0.0, %v1996
      %v1998 = vpop.f32.mrf.mxu0
      %v1999 = vpop.f32.mrf.mxu0
      %v2000 = vadd.f32 0.0, %v1999
      %v2001 = vpop.f32.mrf.mxu0
      %2002 = vmatprep.mubr.bf16.mxu0 0
      %2003 = vmatmul.mubr.bf16.gmra.mxu0 %v794
      %v2004 = vpop.f32.mrf.mxu0
      %v2005 = vadd.f32 0.0, %v2004
      %v2006 = vpop.f32.mrf.mxu0
      %v2007 = vpop.f32.mrf.mxu0
      %v2008 = vadd.f32 0.0, %v2007
      %v2009 = vpop.f32.mrf.mxu0
      %2010 = vmatprep.mubr.bf16.mxu0 0
      %2011 = vmatmul.mubr.bf16.gmra.mxu0 %v796
      %v2012 = vpop.f32.mrf.mxu0
      %v2013 = vadd.f32 0.0, %v2012
      %v2014 = vpop.f32.mrf.mxu0
      %v2015 = vpop.f32.mrf.mxu0
      %v2016 = vadd.f32 0.0, %v2015
      %v2017 = vpop.f32.mrf.mxu0
      %2018 = vmatprep.mubr.bf16.mxu0 0
      %2019 = vmatmul.mubr.bf16.gmra.mxu0 %v798
      %v2020 = vpop.f32.mrf.mxu0
      %v2021 = vadd.f32 0.0, %v2020
      %v2022 = vpop.f32.mrf.mxu0
      %v2023 = vpop.f32.mrf.mxu0
      %v2024 = vadd.f32 0.0, %v2023
      %v2025 = vpop.f32.mrf.mxu0
      %2026 = vmatprep.mubr.bf16.mxu0 0
      %2027 = vmatmul.mubr.bf16.gmra.mxu0 %v800
      %v2028 = vpop.f32.mrf.mxu0
      %v2029 = vadd.f32 0.0, %v2028
      %v2030 = vpop.f32.mrf.mxu0
      %v2031 = vpop.f32.mrf.mxu0
      %v2032 = vadd.f32 0.0, %v2031
      %v2033 = vpop.f32.mrf.mxu0
      %2034 = vmatprep.mubr.bf16.mxu0 0
      %2035 = vmatmul.mubr.bf16.gmra.mxu0 %v802
      %v2036 = vpop.f32.mrf.mxu0
      %v2037 = vadd.f32 0.0, %v2036
      %v2038 = vpop.f32.mrf.mxu0
      %v2039 = vpop.f32.mrf.mxu0
      %v2040 = vadd.f32 0.0, %v2039
      %v2041 = vpop.f32.mrf.mxu0
      %2042 = vmatprep.mubr.bf16.mxu0 0
      %2043 = vmatmul.mubr.bf16.gmra.mxu0 %v804
      %v2044 = vpop.f32.mrf.mxu0
      %v2045 = vadd.f32 0.0, %v2044
      %v2046 = vpop.f32.mrf.mxu0
      %v2047 = vpop.f32.mrf.mxu0
      %v2048 = vadd.f32 0.0, %v2047
      %v2049 = vpop.f32.mrf.mxu0
      %2050 = vmatprep.mubr.bf16.mxu0 0
      %2051 = vmatmul.mubr.bf16.gmra.mxu0 %v806
      %v2052 = vpop.f32.mrf.mxu0
      %v2053 = vadd.f32 0.0, %v2052
      %v2054 = vpop.f32.mrf.mxu0
      %v2055 = vpop.f32.mrf.mxu0
      %v2056 = vadd.f32 0.0, %v2055
      %v2057 = vpop.f32.mrf.mxu0
      %2058 = vmatprep.mubr.bf16.mxu0 0
      %2059 = vmatmul.mubr.bf16.gmra.mxu0 %v808
      %v2060 = vpop.f32.mrf.mxu0
      %v2061 = vadd.f32 0.0, %v2060
      %v2062 = vpop.f32.mrf.mxu0
      %v2063 = vpop.f32.mrf.mxu0
      %v2064 = vadd.f32 0.0, %v2063
      %v2065 = vpop.f32.mrf.mxu0
      %2066 = vmatprep.mubr.bf16.mxu0 0
      %2067 = vmatmul.mubr.bf16.gmra.mxu0 %v810
      %v2068 = vpop.f32.mrf.mxu0
      %v2069 = vadd.f32 0.0, %v2068
      %v2070 = vpop.f32.mrf.mxu0
      %v2071 = vpop.f32.mrf.mxu0
      %v2072 = vadd.f32 0.0, %v2071
      %v2073 = vpop.f32.mrf.mxu0
      %2074 = vmatprep.mubr.bf16.mxu0 0
      %2075 = vmatmul.mubr.bf16.gmra.mxu0 %v1306
      %v2076 = vpop.f32.mrf.mxu0
      %v2077 = vadd.f32 0.0, %v2076
      %v2078 = vpop.f32.mrf.mxu0
      %v2079 = vpop.f32.mrf.mxu0
      %v2080 = vadd.f32 0.0, %v2079
      %v2081 = vpop.f32.mrf.mxu0
      %2082 = vmatprep.mubr.bf16.mxu0 0
      %2083 = vmatmul.mubr.bf16.gmra.mxu0 %v1925
      %v2084 = vpop.f32.mrf.mxu0
      %v2085 = vadd.f32 0.0, %v2084
      %v2086 = vpop.f32.mrf.mxu0
      %v2087 = vpop.f32.mrf.mxu0
      %v2088 = vadd.f32 0.0, %v2087
      %v2089 = vpop.f32.mrf.mxu0
      %2090 = vdwg.mxu0
      %v2091 = vadd.f32 %v1890, %v1965
      %v2092 = vadd.f32 %v1891, %v1968
      %v2093 = vadd.f32 %v1892, %v1973
      %v2094 = vadd.f32 %v1893, %v1976
      %v2095 = vadd.f32 %v1894, %v1981
      %v2096 = vadd.f32 %v1895, %v1984
      %v2097 = vadd.f32 %v1896, %v1989
      %v2098 = vadd.f32 %v1897, %v1992
      %v2099 = vadd.f32 %v1898, %v1997
      %v2100 = vadd.f32 %v1899, %v2000
      %v2101 = vadd.f32 %v1900, %v2005
      %v2102 = vadd.f32 %v1901, %v2008
      %v2103 = vadd.f32 %v1902, %v2013
      %v2104 = vadd.f32 %v1903, %v2016
      %v2105 = vadd.f32 %v1904, %v2021
      %v2106 = vadd.f32 %v1905, %v2024
      %v2107 = vadd.f32 %v1906, %v2029
      %v2108 = vadd.f32 %v1907, %v2032
      %v2109 = vadd.f32 %v1908, %v2037
      %v2110 = vadd.f32 %v1909, %v2040
      %v2111 = vadd.f32 %v1910, %v2045
      %v2112 = vadd.f32 %v1911, %v2048
      %v2113 = vadd.f32 %v1912, %v2053
      %v2114 = vadd.f32 %v1913, %v2056
      %v2115 = vadd.f32 %v1914, %v2061
      %v2116 = vadd.f32 %v1915, %v2064
      %v2117 = vadd.f32 %v1916, %v2069
      %v2118 = vadd.f32 %v1917, %v2072
      %v2119 = vadd.f32 %v1918, %v2077
      %v2120 = vadd.f32 %v1919, %v2080
      %v2121 = vadd.f32 %v1920, %v2085
      %v2122 = vadd.f32 %v1921, %v2088
      %v2123 = vshrl.u32 %v368, 16
      %v2125 = vshll.u32 %v368, 16
      %v2127 = vrot.slane %v2125, 1
      %v2128 = vor.u32 %v2123, %v2127
      %v2130 = vshll.u32 %v369, 16
      %v2132 = vrot.slane %v2130, 1
      %v2133 = vsel %vm371, %v2128, %v2132
      %s2134 = scalar_lea.vmem %s1, 14
      %v2135 = vld [vmem:[%s2134] sm:$0x3]
      %v2137 = vsel %vm566, %v2133, 0
      %v2140 = vsel %vm615, %v2135, 0
      %2142 = vmatprep.subr.bf16.mxu0 0
      %2143 = vmatpush1.bf16.msra.mxu0 0
      %2144 = vmatprep.subr.bf16.mxu0 0
      %2145 = vmatpush1.bf16.msra.mxu0 0
      %2146 = vmatprep.subr.bf16.mxu0 0
      %2147 = vmatpush1.bf16.msra.mxu0 0
      %2148 = vmatprep.subr.bf16.mxu0 0
      %2149 = vmatpush1.bf16.msra.mxu0 0
      %2150 = vmatprep.subr.bf16.mxu0 0
      %2151 = vmatpush1.bf16.msra.mxu0 0
      %2152 = vmatprep.subr.bf16.mxu0 0
      %2153 = vmatpush1.bf16.msra.mxu0 0
      %2154 = vmatprep.subr.bf16.mxu0 0
      %2155 = vmatpush1.bf16.msra.mxu0 0
      %2156 = vmatprep.subr.bf16.mxu0 0
      %2157 = vmatpush1.bf16.msra.mxu0 %v2140
      %2158 = vmatprep.subr.bf16.mxu0 0
      %2159 = vmatpush2.bf16.msra.mxu0 0
      %2160 = vmatprep.subr.bf16.mxu0 0
      %2161 = vmatpush2.bf16.msra.mxu0 0
      %2162 = vmatprep.subr.bf16.mxu0 0
      %2163 = vmatpush2.bf16.msra.mxu0 0
      %2164 = vmatprep.subr.bf16.mxu0 0
      %2165 = vmatpush2.bf16.msra.mxu0 0
      %2166 = vmatprep.subr.bf16.mxu0 0
      %2167 = vmatpush2.bf16.msra.mxu0 0
      %2168 = vmatprep.subr.bf16.mxu0 0
      %2169 = vmatpush2.bf16.msra.mxu0 0
      %2170 = vmatprep.subr.bf16.mxu0 0
      %2171 = vmatpush2.bf16.msra.mxu0 0
      %2172 = vmatprep.subr.bf16.mxu0 0
      %2173 = vmatpush2.bf16.msra.mxu0 0
      %2174 = vmatprep.mubr.bf16.mxu0 0
      %2175 = vmatmul.mubr.bf16.gmra.mxu0 %v574
      %v2176 = vpop.f32.mrf.mxu0
      %v2177 = vadd.f32 0.0, %v2176
      %v2178 = vpop.f32.mrf.mxu0
      %v2179 = vpop.f32.mrf.mxu0
      %v2180 = vadd.f32 0.0, %v2179
      %v2181 = vpop.f32.mrf.mxu0
      %2182 = vmatprep.mubr.bf16.mxu0 0
      %2183 = vmatmul.mubr.bf16.gmra.mxu0 %v577
      %v2184 = vpop.f32.mrf.mxu0
      %v2185 = vadd.f32 0.0, %v2184
      %v2186 = vpop.f32.mrf.mxu0
      %v2187 = vpop.f32.mrf.mxu0
      %v2188 = vadd.f32 0.0, %v2187
      %v2189 = vpop.f32.mrf.mxu0
      %2190 = vmatprep.mubr.bf16.mxu0 0
      %2191 = vmatmul.mubr.bf16.gmra.mxu0 %v580
      %v2192 = vpop.f32.mrf.mxu0
      %v2193 = vadd.f32 0.0, %v2192
      %v2194 = vpop.f32.mrf.mxu0
      %v2195 = vpop.f32.mrf.mxu0
      %v2196 = vadd.f32 0.0, %v2195
      %v2197 = vpop.f32.mrf.mxu0
      %2198 = vmatprep.mubr.bf16.mxu0 0
      %2199 = vmatmul.mubr.bf16.gmra.mxu0 %v583
      %v2200 = vpop.f32.mrf.mxu0
      %v2201 = vadd.f32 0.0, %v2200
      %v2202 = vpop.f32.mrf.mxu0
      %v2203 = vpop.f32.mrf.mxu0
      %v2204 = vadd.f32 0.0, %v2203
      %v2205 = vpop.f32.mrf.mxu0
      %2206 = vmatprep.mubr.bf16.mxu0 0
      %2207 = vmatmul.mubr.bf16.gmra.mxu0 %v586
      %v2208 = vpop.f32.mrf.mxu0
      %v2209 = vadd.f32 0.0, %v2208
      %v2210 = vpop.f32.mrf.mxu0
      %v2211 = vpop.f32.mrf.mxu0
      %v2212 = vadd.f32 0.0, %v2211
      %v2213 = vpop.f32.mrf.mxu0
      %2214 = vmatprep.mubr.bf16.mxu0 0
      %2215 = vmatmul.mubr.bf16.gmra.mxu0 %v589
      %v2216 = vpop.f32.mrf.mxu0
      %v2217 = vadd.f32 0.0, %v2216
      %v2218 = vpop.f32.mrf.mxu0
      %v2219 = vpop.f32.mrf.mxu0
      %v2220 = vadd.f32 0.0, %v2219
      %v2221 = vpop.f32.mrf.mxu0
      %2222 = vmatprep.mubr.bf16.mxu0 0
      %2223 = vmatmul.mubr.bf16.gmra.mxu0 %v592
      %v2224 = vpop.f32.mrf.mxu0
      %v2225 = vadd.f32 0.0, %v2224
      %v2226 = vpop.f32.mrf.mxu0
      %v2227 = vpop.f32.mrf.mxu0
      %v2228 = vadd.f32 0.0, %v2227
      %v2229 = vpop.f32.mrf.mxu0
      %2230 = vmatprep.mubr.bf16.mxu0 0
      %2231 = vmatmul.mubr.bf16.gmra.mxu0 %v595
      %v2232 = vpop.f32.mrf.mxu0
      %v2233 = vadd.f32 0.0, %v2232
      %v2234 = vpop.f32.mrf.mxu0
      %v2235 = vpop.f32.mrf.mxu0
      %v2236 = vadd.f32 0.0, %v2235
      %v2237 = vpop.f32.mrf.mxu0
      %2238 = vmatprep.mubr.bf16.mxu0 0
      %2239 = vmatmul.mubr.bf16.gmra.mxu0 %v598
      %v2240 = vpop.f32.mrf.mxu0
      %v2241 = vadd.f32 0.0, %v2240
      %v2242 = vpop.f32.mrf.mxu0
      %v2243 = vpop.f32.mrf.mxu0
      %v2244 = vadd.f32 0.0, %v2243
      %v2245 = vpop.f32.mrf.mxu0
      %2246 = vmatprep.mubr.bf16.mxu0 0
      %2247 = vmatmul.mubr.bf16.gmra.mxu0 %v601
      %v2248 = vpop.f32.mrf.mxu0
      %v2249 = vadd.f32 0.0, %v2248
      %v2250 = vpop.f32.mrf.mxu0
      %v2251 = vpop.f32.mrf.mxu0
      %v2252 = vadd.f32 0.0, %v2251
      %v2253 = vpop.f32.mrf.mxu0
      %2254 = vmatprep.mubr.bf16.mxu0 0
      %2255 = vmatmul.mubr.bf16.gmra.mxu0 %v604
      %v2256 = vpop.f32.mrf.mxu0
      %v2257 = vadd.f32 0.0, %v2256
      %v2258 = vpop.f32.mrf.mxu0
      %v2259 = vpop.f32.mrf.mxu0
      %v2260 = vadd.f32 0.0, %v2259
      %v2261 = vpop.f32.mrf.mxu0
      %2262 = vmatprep.mubr.bf16.mxu0 0
      %2263 = vmatmul.mubr.bf16.gmra.mxu0 %v607
      %v2264 = vpop.f32.mrf.mxu0
      %v2265 = vadd.f32 0.0, %v2264
      %v2266 = vpop.f32.mrf.mxu0
      %v2267 = vpop.f32.mrf.mxu0
      %v2268 = vadd.f32 0.0, %v2267
      %v2269 = vpop.f32.mrf.mxu0
      %2270 = vmatprep.mubr.bf16.mxu0 0
      %2271 = vmatmul.mubr.bf16.gmra.mxu0 %v610
      %v2272 = vpop.f32.mrf.mxu0
      %v2273 = vadd.f32 0.0, %v2272
      %v2274 = vpop.f32.mrf.mxu0
      %v2275 = vpop.f32.mrf.mxu0
      %v2276 = vadd.f32 0.0, %v2275
      %v2277 = vpop.f32.mrf.mxu0
      %2278 = vmatprep.mubr.bf16.mxu0 0
      %2279 = vmatmul.mubr.bf16.gmra.mxu0 %v613
      %v2280 = vpop.f32.mrf.mxu0
      %v2281 = vadd.f32 0.0, %v2280
      %v2282 = vpop.f32.mrf.mxu0
      %v2283 = vpop.f32.mrf.mxu0
      %v2284 = vadd.f32 0.0, %v2283
      %v2285 = vpop.f32.mrf.mxu0
      %2286 = vmatprep.mubr.bf16.mxu0 0
      %2287 = vmatmul.mubr.bf16.gmra.mxu0 %v1518
      %v2288 = vpop.f32.mrf.mxu0
      %v2289 = vadd.f32 0.0, %v2288
      %v2290 = vpop.f32.mrf.mxu0
      %v2291 = vpop.f32.mrf.mxu0
      %v2292 = vadd.f32 0.0, %v2291
      %v2293 = vpop.f32.mrf.mxu0
      %2294 = vmatprep.mubr.bf16.mxu0 0
      %2295 = vmatmul.mubr.bf16.gmra.mxu0 %v2137
      %v2296 = vpop.f32.mrf.mxu0
      %v2297 = vadd.f32 0.0, %v2296
      %v2298 = vpop.f32.mrf.mxu0
      %v2299 = vpop.f32.mrf.mxu0
      %v2300 = vadd.f32 0.0, %v2299
      %v2301 = vpop.f32.mrf.mxu0
      %2302 = vdwg.mxu0
      %v2303 = vadd.f32 %v2091, %v2177
      %v2304 = vadd.f32 %v2092, %v2180
      %v2305 = vadd.f32 %v2093, %v2185
      %v2306 = vadd.f32 %v2094, %v2188
      %v2307 = vadd.f32 %v2095, %v2193
      %v2308 = vadd.f32 %v2096, %v2196
      %v2309 = vadd.f32 %v2097, %v2201
      %v2310 = vadd.f32 %v2098, %v2204
      %v2311 = vadd.f32 %v2099, %v2209
      %v2312 = vadd.f32 %v2100, %v2212
      %v2313 = vadd.f32 %v2101, %v2217
      %v2314 = vadd.f32 %v2102, %v2220
      %v2315 = vadd.f32 %v2103, %v2225
      %v2316 = vadd.f32 %v2104, %v2228
      %v2317 = vadd.f32 %v2105, %v2233
      %v2318 = vadd.f32 %v2106, %v2236
      %v2319 = vadd.f32 %v2107, %v2241
      %v2320 = vadd.f32 %v2108, %v2244
      %v2321 = vadd.f32 %v2109, %v2249
      %v2322 = vadd.f32 %v2110, %v2252
      %v2323 = vadd.f32 %v2111, %v2257
      %v2324 = vadd.f32 %v2112, %v2260
      %v2325 = vadd.f32 %v2113, %v2265
      %v2326 = vadd.f32 %v2114, %v2268
      %v2327 = vadd.f32 %v2115, %v2273
      %v2328 = vadd.f32 %v2116, %v2276
      %v2329 = vadd.f32 %v2117, %v2281
      %v2330 = vadd.f32 %v2118, %v2284
      %v2331 = vadd.f32 %v2119, %v2289
      %v2332 = vadd.f32 %v2120, %v2292
      %v2333 = vadd.f32 %v2121, %v2297
      %v2334 = vadd.f32 %v2122, %v2300
      %v2337 = vrot.slane %v368, 1
      %v2338 = vrot.slane %v369, 1
      %v2339 = vsel %vm1008, %v2337, %v2338
      %s2340 = scalar_lea.vmem %s1, 16
      %v2341 = vld [vmem:[%s2340] sm:$0x3]
      %v2343 = vsel %vm566, %v2339, 0
      %v2346 = vsel %vm615, %v2341, 0
      %2348 = vmatprep.subr.bf16.mxu0 0
      %2349 = vmatpush1.bf16.msra.mxu0 0
      %2350 = vmatprep.subr.bf16.mxu0 0
      %2351 = vmatpush1.bf16.msra.mxu0 0
      %2352 = vmatprep.subr.bf16.mxu0 0
      %2353 = vmatpush1.bf16.msra.mxu0 0
      %2354 = vmatprep.subr.bf16.mxu0 0
      %2355 = vmatpush1.bf16.msra.mxu0 0
      %2356 = vmatprep.subr.bf16.mxu0 0
      %2357 = vmatpush1.bf16.msra.mxu0 0
      %2358 = vmatprep.subr.bf16.mxu0 0
      %2359 = vmatpush1.bf16.msra.mxu0 0
      %2360 = vmatprep.subr.bf16.mxu0 0
      %2361 = vmatpush1.bf16.msra.mxu0 0
      %2362 = vmatprep.subr.bf16.mxu0 0
      %2363 = vmatpush1.bf16.msra.mxu0 %v2346
      %2364 = vmatprep.subr.bf16.mxu0 0
      %2365 = vmatpush2.bf16.msra.mxu0 0
      %2366 = vmatprep.subr.bf16.mxu0 0
      %2367 = vmatpush2.bf16.msra.mxu0 0
      %2368 = vmatprep.subr.bf16.mxu0 0
      %2369 = vmatpush2.bf16.msra.mxu0 0
      %2370 = vmatprep.subr.bf16.mxu0 0
      %2371 = vmatpush2.bf16.msra.mxu0 0
      %2372 = vmatprep.subr.bf16.mxu0 0
      %2373 = vmatpush2.bf16.msra.mxu0 0
      %2374 = vmatprep.subr.bf16.mxu0 0
      %2375 = vmatpush2.bf16.msra.mxu0 0
      %2376 = vmatprep.subr.bf16.mxu0 0
      %2377 = vmatpush2.bf16.msra.mxu0 0
      %2378 = vmatprep.subr.bf16.mxu0 0
      %2379 = vmatpush2.bf16.msra.mxu0 0
      %2380 = vmatprep.mubr.bf16.mxu0 0
      %2381 = vmatmul.mubr.bf16.gmra.mxu0 %v1066
      %v2382 = vpop.f32.mrf.mxu0
      %v2383 = vadd.f32 0.0, %v2382
      %v2384 = vpop.f32.mrf.mxu0
      %v2385 = vpop.f32.mrf.mxu0
      %v2386 = vadd.f32 0.0, %v2385
      %v2387 = vpop.f32.mrf.mxu0
      %2388 = vmatprep.mubr.bf16.mxu0 0
      %2389 = vmatmul.mubr.bf16.gmra.mxu0 %v1069
      %v2390 = vpop.f32.mrf.mxu0
      %v2391 = vadd.f32 0.0, %v2390
      %v2392 = vpop.f32.mrf.mxu0
      %v2393 = vpop.f32.mrf.mxu0
      %v2394 = vadd.f32 0.0, %v2393
      %v2395 = vpop.f32.mrf.mxu0
      %2396 = vmatprep.mubr.bf16.mxu0 0
      %2397 = vmatmul.mubr.bf16.gmra.mxu0 %v1072
      %v2398 = vpop.f32.mrf.mxu0
      %v2399 = vadd.f32 0.0, %v2398
      %v2400 = vpop.f32.mrf.mxu0
      %v2401 = vpop.f32.mrf.mxu0
      %v2402 = vadd.f32 0.0, %v2401
      %v2403 = vpop.f32.mrf.mxu0
      %2404 = vmatprep.mubr.bf16.mxu0 0
      %2405 = vmatmul.mubr.bf16.gmra.mxu0 %v1075
      %v2406 = vpop.f32.mrf.mxu0
      %v2407 = vadd.f32 0.0, %v2406
      %v2408 = vpop.f32.mrf.mxu0
      %v2409 = vpop.f32.mrf.mxu0
      %v2410 = vadd.f32 0.0, %v2409
      %v2411 = vpop.f32.mrf.mxu0
      %2412 = vmatprep.mubr.bf16.mxu0 0
      %2413 = vmatmul.mubr.bf16.gmra.mxu0 %v1078
      %v2414 = vpop.f32.mrf.mxu0
      %v2415 = vadd.f32 0.0, %v2414
      %v2416 = vpop.f32.mrf.mxu0
      %v2417 = vpop.f32.mrf.mxu0
      %v2418 = vadd.f32 0.0, %v2417
      %v2419 = vpop.f32.mrf.mxu0
      %2420 = vmatprep.mubr.bf16.mxu0 0
      %2421 = vmatmul.mubr.bf16.gmra.mxu0 %v1081
      %v2422 = vpop.f32.mrf.mxu0
      %v2423 = vadd.f32 0.0, %v2422
      %v2424 = vpop.f32.mrf.mxu0
      %v2425 = vpop.f32.mrf.mxu0
      %v2426 = vadd.f32 0.0, %v2425
      %v2427 = vpop.f32.mrf.mxu0
      %2428 = vmatprep.mubr.bf16.mxu0 0
      %2429 = vmatmul.mubr.bf16.gmra.mxu0 %v1084
      %v2430 = vpop.f32.mrf.mxu0
      %v2431 = vadd.f32 0.0, %v2430
      %v2432 = vpop.f32.mrf.mxu0
      %v2433 = vpop.f32.mrf.mxu0
      %v2434 = vadd.f32 0.0, %v2433
      %v2435 = vpop.f32.mrf.mxu0
      %2436 = vmatprep.mubr.bf16.mxu0 0
      %2437 = vmatmul.mubr.bf16.gmra.mxu0 %v1087
      %v2438 = vpop.f32.mrf.mxu0
      %v2439 = vadd.f32 0.0, %v2438
      %v2440 = vpop.f32.mrf.mxu0
      %v2441 = vpop.f32.mrf.mxu0
      %v2442 = vadd.f32 0.0, %v2441
      %v2443 = vpop.f32.mrf.mxu0
      %2444 = vmatprep.mubr.bf16.mxu0 0
      %2445 = vmatmul.mubr.bf16.gmra.mxu0 %v1090
      %v2446 = vpop.f32.mrf.mxu0
      %v2447 = vadd.f32 0.0, %v2446
      %v2448 = vpop.f32.mrf.mxu0
      %v2449 = vpop.f32.mrf.mxu0
      %v2450 = vadd.f32 0.0, %v2449
      %v2451 = vpop.f32.mrf.mxu0
      %2452 = vmatprep.mubr.bf16.mxu0 0
      %2453 = vmatmul.mubr.bf16.gmra.mxu0 %v1093
      %v2454 = vpop.f32.mrf.mxu0
      %v2455 = vadd.f32 0.0, %v2454
      %v2456 = vpop.f32.mrf.mxu0
      %v2457 = vpop.f32.mrf.mxu0
      %v2458 = vadd.f32 0.0, %v2457
      %v2459 = vpop.f32.mrf.mxu0
      %2460 = vmatprep.mubr.bf16.mxu0 0
      %2461 = vmatmul.mubr.bf16.gmra.mxu0 %v1096
      %v2462 = vpop.f32.mrf.mxu0
      %v2463 = vadd.f32 0.0, %v2462
      %v2464 = vpop.f32.mrf.mxu0
      %v2465 = vpop.f32.mrf.mxu0
      %v2466 = vadd.f32 0.0, %v2465
      %v2467 = vpop.f32.mrf.mxu0
      %2468 = vmatprep.mubr.bf16.mxu0 0
      %2469 = vmatmul.mubr.bf16.gmra.mxu0 %v1099
      %v2470 = vpop.f32.mrf.mxu0
      %v2471 = vadd.f32 0.0, %v2470
      %v2472 = vpop.f32.mrf.mxu0
      %v2473 = vpop.f32.mrf.mxu0
      %v2474 = vadd.f32 0.0, %v2473
      %v2475 = vpop.f32.mrf.mxu0
      %2476 = vmatprep.mubr.bf16.mxu0 0
      %2477 = vmatmul.mubr.bf16.gmra.mxu0 %v1102
      %v2478 = vpop.f32.mrf.mxu0
      %v2479 = vadd.f32 0.0, %v2478
      %v2480 = vpop.f32.mrf.mxu0
      %v2481 = vpop.f32.mrf.mxu0
      %v2482 = vadd.f32 0.0, %v2481
      %v2483 = vpop.f32.mrf.mxu0
      %2484 = vmatprep.mubr.bf16.mxu0 0
      %2485 = vmatmul.mubr.bf16.gmra.mxu0 %v1105
      %v2486 = vpop.f32.mrf.mxu0
      %v2487 = vadd.f32 0.0, %v2486
      %v2488 = vpop.f32.mrf.mxu0
      %v2489 = vpop.f32.mrf.mxu0
      %v2490 = vadd.f32 0.0, %v2489
      %v2491 = vpop.f32.mrf.mxu0
      %2492 = vmatprep.mubr.bf16.mxu0 0
      %2493 = vmatmul.mubr.bf16.gmra.mxu0 %v1724
      %v2494 = vpop.f32.mrf.mxu0
      %v2495 = vadd.f32 0.0, %v2494
      %v2496 = vpop.f32.mrf.mxu0
      %v2497 = vpop.f32.mrf.mxu0
      %v2498 = vadd.f32 0.0, %v2497
      %v2499 = vpop.f32.mrf.mxu0
      %2500 = vmatprep.mubr.bf16.mxu0 0
      %2501 = vmatmul.mubr.bf16.gmra.mxu0 %v2343
      %v2502 = vpop.f32.mrf.mxu0
      %v2503 = vadd.f32 0.0, %v2502
      %v2504 = vpop.f32.mrf.mxu0
      %v2505 = vpop.f32.mrf.mxu0
      %v2506 = vadd.f32 0.0, %v2505
      %v2507 = vpop.f32.mrf.mxu0
      %2508 = vdwg.mxu0
      %v2509 = vadd.f32 %v2303, %v2383
      %v2510 = vadd.f32 %v2304, %v2386
      %v2511 = vadd.f32 %v2305, %v2391
      %v2512 = vadd.f32 %v2306, %v2394
      %v2513 = vadd.f32 %v2307, %v2399
      %v2514 = vadd.f32 %v2308, %v2402
      %v2515 = vadd.f32 %v2309, %v2407
      %v2516 = vadd.f32 %v2310, %v2410
      %v2517 = vadd.f32 %v2311, %v2415
      %v2518 = vadd.f32 %v2312, %v2418
      %v2519 = vadd.f32 %v2313, %v2423
      %v2520 = vadd.f32 %v2314, %v2426
      %v2521 = vadd.f32 %v2315, %v2431
      %v2522 = vadd.f32 %v2316, %v2434
      %v2523 = vadd.f32 %v2317, %v2439
      %v2524 = vadd.f32 %v2318, %v2442
      %v2525 = vadd.f32 %v2319, %v2447
      %v2526 = vadd.f32 %v2320, %v2450
      %v2527 = vadd.f32 %v2321, %v2455
      %v2528 = vadd.f32 %v2322, %v2458
      %v2529 = vadd.f32 %v2323, %v2463
      %v2530 = vadd.f32 %v2324, %v2466
      %v2531 = vadd.f32 %v2325, %v2471
      %v2532 = vadd.f32 %v2326, %v2474
      %v2533 = vadd.f32 %v2327, %v2479
      %v2534 = vadd.f32 %v2328, %v2482
      %v2535 = vadd.f32 %v2329, %v2487
      %v2536 = vadd.f32 %v2330, %v2490
      %v2537 = vadd.f32 %v2331, %v2495
      %v2538 = vadd.f32 %v2332, %v2498
      %v2539 = vadd.f32 %v2333, %v2503
      %v2540 = vadd.f32 %v2334, %v2506
      %v2541 = vld [vmem:[%s2] sm:$0x1]
      %v2543 = vlaneseq
      %v2544 = vshrl.u32 %v2543, 7
      %v2545 = vsub.s32 0, %v2544
      %v2546 = vrot.slane %v2541, %v2545
      %v2548 = vmul.f32 %v2509, %v2546
      %v2549 = vmul.f32 %v2510, %v2546
      %v2550 = vmul.f32 %v2511, %v2546
      %v2551 = vmul.f32 %v2512, %v2546
      %v2552 = vmul.f32 %v2513, %v2546
      %v2553 = vmul.f32 %v2514, %v2546
      %v2554 = vmul.f32 %v2515, %v2546
      %v2555 = vmul.f32 %v2516, %v2546
      %v2556 = vmul.f32 %v2517, %v2546
      %v2557 = vmul.f32 %v2518, %v2546
      %v2558 = vmul.f32 %v2519, %v2546
      %v2559 = vmul.f32 %v2520, %v2546
      %v2560 = vmul.f32 %v2521, %v2546
      %v2561 = vmul.f32 %v2522, %v2546
      %v2562 = vmul.f32 %v2523, %v2546
      %v2563 = vmul.f32 %v2524, %v2546
      %v2564 = vmul.f32 %v2525, %v2546
      %v2565 = vmul.f32 %v2526, %v2546
      %v2566 = vmul.f32 %v2527, %v2546
      %v2567 = vmul.f32 %v2528, %v2546
      %v2568 = vmul.f32 %v2529, %v2546
      %v2569 = vmul.f32 %v2530, %v2546
      %v2570 = vmul.f32 %v2531, %v2546
      %v2571 = vmul.f32 %v2532, %v2546
      %v2572 = vmul.f32 %v2533, %v2546
      %v2573 = vmul.f32 %v2534, %v2546
      %v2574 = vmul.f32 %v2535, %v2546
      %v2575 = vmul.f32 %v2536, %v2546
      %v2576 = vmul.f32 %v2537, %v2546
      %v2577 = vmul.f32 %v2538, %v2546
      %v2578 = vmul.f32 %v2539, %v2546
      %v2579 = vmul.f32 %v2540, %v2546
      %v2580 = vld [vmem:[%s3] sm:$0x1]
      %v2582 = vlaneseq
      %v2583 = vshrl.u32 %v2582, 7
      %v2584 = vsub.s32 0, %v2583
      %v2585 = vrot.slane %v2580, %v2584
      %v2587 = vadd.f32 %v2548, %v2585
      %v2588 = vadd.f32 %v2549, %v2585
      %v2589 = vadd.f32 %v2550, %v2585
      %v2590 = vadd.f32 %v2551, %v2585
      %v2591 = vadd.f32 %v2552, %v2585
      %v2592 = vadd.f32 %v2553, %v2585
      %v2593 = vadd.f32 %v2554, %v2585
      %v2594 = vadd.f32 %v2555, %v2585
      %v2595 = vadd.f32 %v2556, %v2585
      %v2596 = vadd.f32 %v2557, %v2585
      %v2597 = vadd.f32 %v2558, %v2585
      %v2598 = vadd.f32 %v2559, %v2585
      %v2599 = vadd.f32 %v2560, %v2585
      %v2600 = vadd.f32 %v2561, %v2585
      %v2601 = vadd.f32 %v2562, %v2585
      %v2602 = vadd.f32 %v2563, %v2585
      %v2603 = vadd.f32 %v2564, %v2585
      %v2604 = vadd.f32 %v2565, %v2585
      %v2605 = vadd.f32 %v2566, %v2585
      %v2606 = vadd.f32 %v2567, %v2585
      %v2607 = vadd.f32 %v2568, %v2585
      %v2608 = vadd.f32 %v2569, %v2585
      %v2609 = vadd.f32 %v2570, %v2585
      %v2610 = vadd.f32 %v2571, %v2585
      %v2611 = vadd.f32 %v2572, %v2585
      %v2612 = vadd.f32 %v2573, %v2585
      %v2613 = vadd.f32 %v2574, %v2585
      %v2614 = vadd.f32 %v2575, %v2585
      %v2615 = vadd.f32 %v2576, %v2585
      %v2616 = vadd.f32 %v2577, %v2585
      %v2617 = vadd.f32 %v2578, %v2585
      %v2618 = vadd.f32 %v2579, %v2585
      %v2619 = vmax.f32 %v2587, 0.0
      %v2620 = vmax.f32 %v2588, 0.0
      %v2621 = vmax.f32 %v2589, 0.0
      %v2622 = vmax.f32 %v2590, 0.0
      %v2623 = vmax.f32 %v2591, 0.0
      %v2624 = vmax.f32 %v2592, 0.0
      %v2625 = vmax.f32 %v2593, 0.0
      %v2626 = vmax.f32 %v2594, 0.0
      %v2627 = vmax.f32 %v2595, 0.0
      %v2628 = vmax.f32 %v2596, 0.0
      %v2629 = vmax.f32 %v2597, 0.0
      %v2630 = vmax.f32 %v2598, 0.0
      %v2631 = vmax.f32 %v2599, 0.0
      %v2632 = vmax.f32 %v2600, 0.0
      %v2633 = vmax.f32 %v2601, 0.0
      %v2634 = vmax.f32 %v2602, 0.0
      %v2635 = vmax.f32 %v2603, 0.0
      %v2636 = vmax.f32 %v2604, 0.0
      %v2637 = vmax.f32 %v2605, 0.0
      %v2638 = vmax.f32 %v2606, 0.0
      %v2639 = vmax.f32 %v2607, 0.0
      %v2640 = vmax.f32 %v2608, 0.0
      %v2641 = vmax.f32 %v2609, 0.0
      %v2642 = vmax.f32 %v2610, 0.0
      %v2643 = vmax.f32 %v2611, 0.0
      %v2644 = vmax.f32 %v2612, 0.0
      %v2645 = vmax.f32 %v2613, 0.0
      %v2646 = vmax.f32 %v2614, 0.0
      %v2647 = vmax.f32 %v2615, 0.0
      %v2648 = vmax.f32 %v2616, 0.0
      %v2649 = vmax.f32 %v2617, 0.0
      %v2650 = vmax.f32 %v2618, 0.0
      %2651 = vst.msk [vmem:[#allocation2] sm:$0xff] %vm566, 0.0
      %2652 = vst.msk [vmem:[#allocation2 + $0x8] sm:$0xff] %vm566, 0.0
      %vm2653 = vcmask 25600
      %2654 = vst.msk [vmem:[#allocation2 + $0x10] sm:$0x3] %vm2653, 0.0
      %2655 = vst.msk [vmem:[#allocation2 + $0x18] sm:$0xff] %vm566, 0.0
      %2656 = vst.msk [vmem:[#allocation2 + $0x20] sm:$0xff] %vm566, 0.0
      %2657 = vst.msk [vmem:[#allocation2 + $0x28] sm:$0x3] %vm2653, 0.0
      %2658 = vst.msk [vmem:[#allocation2 + $0x30] sm:$0xff] %vm566, 0.0
      %2659 = vst.msk [vmem:[#allocation2 + $0x38] sm:$0xff] %vm566, 0.0
      %2660 = vst.msk [vmem:[#allocation2 + $0x40] sm:$0x3] %vm2653, 0.0
      %2661 = vst.msk [vmem:[#allocation2 + $0x48] sm:$0xff] %vm566, 0.0
      %2662 = vst.msk [vmem:[#allocation2 + $0x50] sm:$0xff] %vm566, 0.0
      %2663 = vst.msk [vmem:[#allocation2 + $0x58] sm:$0x3] %vm2653, 0.0
      %2664 = vst.msk [vmem:[#allocation2 + $0x60] sm:$0xff] %vm566, 0.0
      %2665 = vst.msk [vmem:[#allocation2 + $0x68] sm:$0xff] %vm566, 0.0
      %2666 = vst.msk [vmem:[#allocation2 + $0x70] sm:$0x3] %vm2653, 0.0
      %2667 = vst.msk [vmem:[#allocation2 + $0x78] sm:$0xff] %vm566, 0.0
      %2668 = vst.msk [vmem:[#allocation2 + $0x80] sm:$0xff] %vm566, 0.0
      %2669 = vst.msk [vmem:[#allocation2 + $0x88] sm:$0x3] %vm2653, 0.0
      %2670 = vst.msk [vmem:[#allocation2 + $0x90] sm:$0xff] %vm566, 0.0
      %2671 = vst.msk [vmem:[#allocation2 + $0x98] sm:$0xff] %vm566, 0.0
      %2672 = vst.msk [vmem:[#allocation2 + $0xa0] sm:$0x3] %vm2653, 0.0
      %2673 = vst.msk [vmem:[#allocation2 + $0xa8] sm:$0xff] %vm566, 0.0
      %2674 = vst.msk [vmem:[#allocation2 + $0xb0] sm:$0xff] %vm566, 0.0
      %2675 = vst.msk [vmem:[#allocation2 + $0xb8] sm:$0x3] %vm2653, 0.0
      %2676 = vst.msk [vmem:[#allocation2 + $0xc0] sm:$0xff] %vm566, 0.0
      %2677 = vst.msk [vmem:[#allocation2 + $0xc8] sm:$0xff] %vm566, 0.0
      %2678 = vst.msk [vmem:[#allocation2 + $0xd0] sm:$0x3] %vm2653, 0.0
      %2679 = vst.msk [vmem:[#allocation2 + $0xd8] sm:$0xff] %vm566, 0.0
      %2680 = vst.msk [vmem:[#allocation2 + $0xe0] sm:$0xff] %vm566, 0.0
      %2681 = vst.msk [vmem:[#allocation2 + $0xe8] sm:$0x3] %vm2653, 0.0
      %2682 = vst.msk [vmem:[#allocation2 + $0xf0] sm:$0xff] %vm566, 0.0
      %2683 = vst.msk [vmem:[#allocation2 + $0xf8] sm:$0xff] %vm566, 0.0
      %2684 = vst.msk [vmem:[#allocation2 + $0x100] sm:$0x3] %vm2653, 0.0
      %2685 = vst.msk [vmem:[#allocation2 + $0x108] sm:$0xff] %vm566, 0.0
      %2686 = vst.msk [vmem:[#allocation2 + $0x110] sm:$0xff] %vm566, 0.0
      %2687 = vst.msk [vmem:[#allocation2 + $0x118] sm:$0x3] %vm2653, 0.0
      %2688 = vst.msk [vmem:[#allocation2 + $0x120] sm:$0xff] %vm566, 0.0
      %2689 = vst.msk [vmem:[#allocation2 + $0x128] sm:$0xff] %vm566, 0.0
      %2690 = vst.msk [vmem:[#allocation2 + $0x130] sm:$0x3] %vm2653, 0.0
      %2691 = vst.msk [vmem:[#allocation2 + $0x138] sm:$0xff] %vm566, 0.0
      %2692 = vst.msk [vmem:[#allocation2 + $0x140] sm:$0xff] %vm566, 0.0
      %2693 = vst.msk [vmem:[#allocation2 + $0x148] sm:$0x3] %vm2653, 0.0
      %2694 = vst.msk [vmem:[#allocation2 + $0x150] sm:$0xff] %vm566, 0.0
      %2695 = vst.msk [vmem:[#allocation2 + $0x158] sm:$0xff] %vm566, 0.0
      %2696 = vst.msk [vmem:[#allocation2 + $0x160] sm:$0x3] %vm2653, 0.0
      %2697 = vst.msk [vmem:[#allocation2 + $0x168] sm:$0xff] %vm566, 0.0
      %2698 = vst.msk [vmem:[#allocation2 + $0x170] sm:$0xff] %vm566, 0.0
      %2699 = vst.msk [vmem:[#allocation2 + $0x178] sm:$0x3] %vm2653, 0.0
      %2700 = vst.msk [vmem:[#allocation2 + $0x180] sm:$0xff] %vm566, 0.0
      %2701 = vst.msk [vmem:[#allocation2 + $0x188] sm:$0xff] %vm566, 0.0
      %2702 = vst.msk [vmem:[#allocation2 + $0x190] sm:$0x3] %vm2653, 0.0
      %2703 = vst.msk [vmem:[#allocation2 + $0x198] sm:$0xff] %vm566, 0.0
      %2704 = vst.msk [vmem:[#allocation2 + $0x1a0] sm:$0xff] %vm566, 0.0
      %2705 = vst.msk [vmem:[#allocation2 + $0x1a8] sm:$0x3] %vm2653, 0.0
      %s2706 = scalar_lea.vmem [#allocation2], 24
      %2707 = vst.msk [vmem:[%s2706 + $0x1] sm:$0xff] %vm566, %v2619
      %2708 = vst.msk [vmem:[%s2706 + $0x9] sm:$0xff] %vm566, %v2620
      %2709 = vst.msk [vmem:[%s2706 + $0x19] sm:$0xff] %vm566, %v2621
      %2710 = vst.msk [vmem:[%s2706 + $0x21] sm:$0xff] %vm566, %v2622
      %2711 = vst.msk [vmem:[%s2706 + $0x31] sm:$0xff] %vm566, %v2623
      %2712 = vst.msk [vmem:[%s2706 + $0x39] sm:$0xff] %vm566, %v2624
      %2713 = vst.msk [vmem:[%s2706 + $0x49] sm:$0xff] %vm566, %v2625
      %2714 = vst.msk [vmem:[%s2706 + $0x51] sm:$0xff] %vm566, %v2626
      %2715 = vst.msk [vmem:[%s2706 + $0x61] sm:$0xff] %vm566, %v2627
      %2716 = vst.msk [vmem:[%s2706 + $0x69] sm:$0xff] %vm566, %v2628
      %2717 = vst.msk [vmem:[%s2706 + $0x79] sm:$0xff] %vm566, %v2629
      %2718 = vst.msk [vmem:[%s2706 + $0x81] sm:$0xff] %vm566, %v2630
      %2719 = vst.msk [vmem:[%s2706 + $0x91] sm:$0xff] %vm566, %v2631
      %2720 = vst.msk [vmem:[%s2706 + $0x99] sm:$0xff] %vm566, %v2632
      %2721 = vst.msk [vmem:[%s2706 + $0xa9] sm:$0xff] %vm566, %v2633
      %2722 = vst.msk [vmem:[%s2706 + $0xb1] sm:$0xff] %vm566, %v2634
      %2723 = vst.msk [vmem:[%s2706 + $0xc1] sm:$0xff] %vm566, %v2635
      %2724 = vst.msk [vmem:[%s2706 + $0xc9] sm:$0xff] %vm566, %v2636
      %2725 = vst.msk [vmem:[%s2706 + $0xd9] sm:$0xff] %vm566, %v2637
      %2726 = vst.msk [vmem:[%s2706 + $0xe1] sm:$0xff] %vm566, %v2638
      %2727 = vst.msk [vmem:[%s2706 + $0xf1] sm:$0xff] %vm566, %v2639
      %2728 = vst.msk [vmem:[%s2706 + $0xf9] sm:$0xff] %vm566, %v2640
      %2729 = vst.msk [vmem:[%s2706 + $0x109] sm:$0xff] %vm566, %v2641
      %2730 = vst.msk [vmem:[%s2706 + $0x111] sm:$0xff] %vm566, %v2642
      %2731 = vst.msk [vmem:[%s2706 + $0x121] sm:$0xff] %vm566, %v2643
      %2732 = vst.msk [vmem:[%s2706 + $0x129] sm:$0xff] %vm566, %v2644
      %2733 = vst.msk [vmem:[%s2706 + $0x139] sm:$0xff] %vm566, %v2645
      %2734 = vst.msk [vmem:[%s2706 + $0x141] sm:$0xff] %vm566, %v2646
      %2735 = vst.msk [vmem:[%s2706 + $0x151] sm:$0xff] %vm566, %v2647
      %2736 = vst.msk [vmem:[%s2706 + $0x159] sm:$0xff] %vm566, %v2648
      %2737 = vst.msk [vmem:[%s2706 + $0x169] sm:$0xff] %vm566, %v2649
      %2738 = vst.msk [vmem:[%s2706 + $0x171] sm:$0xff] %vm566, %v2650
      %v2739 = vld [vmem:[#allocation2] sm:$0xff]
      %v2740 = vld [vmem:[#allocation2 + $0x8] sm:$0xff]
      %v2741 = vld [vmem:[#allocation2 + $0x10] sm:$0x3]
      %v2742 = vld [vmem:[#allocation2 + $0x18] sm:$0xff]
      %v2743 = vld [vmem:[#allocation2 + $0x20] sm:$0xff]
      %v2744 = vld [vmem:[#allocation2 + $0x28] sm:$0x3]
      %v2745 = vld [vmem:[#allocation2 + $0x30] sm:$0xff]
      %v2746 = vld [vmem:[#allocation2 + $0x38] sm:$0xff]
      %v2747 = vld [vmem:[#allocation2 + $0x40] sm:$0x3]
      %v2748 = vld [vmem:[#allocation2 + $0x48] sm:$0xff]
      %v2749 = vld [vmem:[#allocation2 + $0x50] sm:$0xff]
      %v2750 = vld [vmem:[#allocation2 + $0x58] sm:$0x3]
      %v2751 = vld [vmem:[#allocation2 + $0x60] sm:$0xff]
      %v2752 = vld [vmem:[#allocation2 + $0x68] sm:$0xff]
      %v2753 = vld [vmem:[#allocation2 + $0x70] sm:$0x3]
      %v2754 = vld [vmem:[#allocation2 + $0x78] sm:$0xff]
      %v2755 = vld [vmem:[#allocation2 + $0x80] sm:$0xff]
      %v2756 = vld [vmem:[#allocation2 + $0x88] sm:$0x3]
      %v2757 = vld [vmem:[#allocation2 + $0x90] sm:$0xff]
      %v2758 = vld [vmem:[#allocation2 + $0x98] sm:$0xff]
      %v2759 = vld [vmem:[#allocation2 + $0xa0] sm:$0x3]
      %v2760 = vld [vmem:[#allocation2 + $0xa8] sm:$0xff]
      %v2761 = vld [vmem:[#allocation2 + $0xb0] sm:$0xff]
      %v2762 = vld [vmem:[#allocation2 + $0xb8] sm:$0x3]
      %v2763 = vld [vmem:[#allocation2 + $0xc0] sm:$0xff]
      %v2764 = vld [vmem:[#allocation2 + $0xc8] sm:$0xff]
      %v2765 = vld [vmem:[#allocation2 + $0xd0] sm:$0x3]
      %v2766 = vld [vmem:[#allocation2 + $0xd8] sm:$0xff]
      %v2767 = vld [vmem:[#allocation2 + $0xe0] sm:$0xff]
      %v2768 = vld [vmem:[#allocation2 + $0xe8] sm:$0x3]
      %v2769 = vld [vmem:[#allocation2 + $0xf0] sm:$0xff]
      %v2770 = vld [vmem:[#allocation2 + $0xf8] sm:$0xff]
      %v2771 = vld [vmem:[#allocation2 + $0x100] sm:$0x3]
      %v2772 = vld [vmem:[#allocation2 + $0x108] sm:$0xff]
      %v2773 = vld [vmem:[#allocation2 + $0x110] sm:$0xff]
      %v2774 = vld [vmem:[#allocation2 + $0x118] sm:$0x3]
      %v2775 = vld [vmem:[#allocation2 + $0x120] sm:$0xff]
      %v2776 = vld [vmem:[#allocation2 + $0x128] sm:$0xff]
      %v2777 = vld [vmem:[#allocation2 + $0x130] sm:$0x3]
      %v2778 = vld [vmem:[#allocation2 + $0x138] sm:$0xff]
      %v2779 = vld [vmem:[#allocation2 + $0x140] sm:$0xff]
      %v2780 = vld [vmem:[#allocation2 + $0x148] sm:$0x3]
      %v2781 = vld [vmem:[#allocation2 + $0x150] sm:$0xff]
      %v2782 = vld [vmem:[#allocation2 + $0x158] sm:$0xff]
      %v2783 = vld [vmem:[#allocation2 + $0x160] sm:$0x3]
      %v2784 = vld [vmem:[#allocation2 + $0x168] sm:$0xff]
      %v2785 = vld [vmem:[#allocation2 + $0x170] sm:$0xff]
      %v2786 = vld [vmem:[#allocation2 + $0x178] sm:$0x3]
      %v2787 = vld [vmem:[#allocation2 + $0x180] sm:$0xff]
      %v2788 = vld [vmem:[#allocation2 + $0x188] sm:$0xff]
      %v2789 = vld [vmem:[#allocation2 + $0x190] sm:$0x3]
      %v2790 = vld [vmem:[#allocation2 + $0x198] sm:$0xff]
      %v2791 = vld [vmem:[#allocation2 + $0x1a0] sm:$0xff]
      %v2792 = vld [vmem:[#allocation2 + $0x1a8] sm:$0x3]
      %v2793 = vpack.c.bf16 %v2740, %v2739
      %v2794 = vpack.c.bf16 %v2741, %v2741
      %v2795 = vpack.c.bf16 %v2743, %v2742
      %v2796 = vpack.c.bf16 %v2744, %v2744
      %v2797 = vpack.c.bf16 %v2746, %v2745
      %v2798 = vpack.c.bf16 %v2747, %v2747
      %v2799 = vpack.c.bf16 %v2749, %v2748
      %v2800 = vpack.c.bf16 %v2750, %v2750
      %v2801 = vpack.c.bf16 %v2752, %v2751
      %v2802 = vpack.c.bf16 %v2753, %v2753
      %v2803 = vpack.c.bf16 %v2755, %v2754
      %v2804 = vpack.c.bf16 %v2756, %v2756
      %v2805 = vpack.c.bf16 %v2758, %v2757
      %v2806 = vpack.c.bf16 %v2759, %v2759
      %v2807 = vpack.c.bf16 %v2761, %v2760
      %v2808 = vpack.c.bf16 %v2762, %v2762
      %v2809 = vpack.c.bf16 %v2764, %v2763
      %v2810 = vpack.c.bf16 %v2765, %v2765
      %v2811 = vpack.c.bf16 %v2767, %v2766
      %v2812 = vpack.c.bf16 %v2768, %v2768
      %v2813 = vpack.c.bf16 %v2770, %v2769
      %v2814 = vpack.c.bf16 %v2771, %v2771
      %v2815 = vpack.c.bf16 %v2773, %v2772
      %v2816 = vpack.c.bf16 %v2774, %v2774
      %v2817 = vpack.c.bf16 %v2776, %v2775
      %v2818 = vpack.c.bf16 %v2777, %v2777
      %v2819 = vpack.c.bf16 %v2779, %v2778
      %v2820 = vpack.c.bf16 %v2780, %v2780
      %v2821 = vpack.c.bf16 %v2782, %v2781
      %v2822 = vpack.c.bf16 %v2783, %v2783
      %v2823 = vpack.c.bf16 %v2785, %v2784
      %v2824 = vpack.c.bf16 %v2786, %v2786
      %v2825 = vpack.c.bf16 %v2788, %v2787
      %v2826 = vpack.c.bf16 %v2789, %v2789
      %v2827 = vpack.c.bf16 %v2791, %v2790
      %v2828 = vpack.c.bf16 %v2792, %v2792
      %v2829 = vld [vmem:[%s4] sm:$0x3]
      %v2831 = vshrl.u32 %v2793, 16
      %v2833 = vshll.u32 %v2793, 16
      %v2835 = vrot.slane %v2833, 1
      %v2836 = vor.u32 %v2831, %v2835
      %v2838 = vshll.u32 %v2794, 16
      %v2840 = vrot.slane %v2838, 1
      %v2841 = vsel %vm371, %v2836, %v2840
      %v2843 = vshrl.u32 %v2795, 16
      %v2845 = vshll.u32 %v2795, 16
      %v2847 = vrot.slane %v2845, 1
      %v2848 = vor.u32 %v2843, %v2847
      %v2850 = vshll.u32 %v2796, 16
      %v2852 = vrot.slane %v2850, 1
      %v2853 = vsel %vm371, %v2848, %v2852
      %v2855 = vshrl.u32 %v2797, 16
      %v2857 = vshll.u32 %v2797, 16
      %v2859 = vrot.slane %v2857, 1
      %v2860 = vor.u32 %v2855, %v2859
      %v2862 = vshll.u32 %v2798, 16
      %v2864 = vrot.slane %v2862, 1
      %v2865 = vsel %vm371, %v2860, %v2864
      %v2867 = vshrl.u32 %v2799, 16
      %v2869 = vshll.u32 %v2799, 16
      %v2871 = vrot.slane %v2869, 1
      %v2872 = vor.u32 %v2867, %v2871
      %v2874 = vshll.u32 %v2800, 16
      %v2876 = vrot.slane %v2874, 1
      %v2877 = vsel %vm371, %v2872, %v2876
      %v2879 = vshrl.u32 %v2801, 16
      %v2881 = vshll.u32 %v2801, 16
      %v2883 = vrot.slane %v2881, 1
      %v2884 = vor.u32 %v2879, %v2883
      %v2886 = vshll.u32 %v2802, 16
      %v2888 = vrot.slane %v2886, 1
      %v2889 = vsel %vm371, %v2884, %v2888
      %v2891 = vshrl.u32 %v2803, 16
      %v2893 = vshll.u32 %v2803, 16
      %v2895 = vrot.slane %v2893, 1
      %v2896 = vor.u32 %v2891, %v2895
      %v2898 = vshll.u32 %v2804, 16
      %v2900 = vrot.slane %v2898, 1
      %v2901 = vsel %vm371, %v2896, %v2900
      %v2903 = vshrl.u32 %v2805, 16
      %v2905 = vshll.u32 %v2805, 16
      %v2907 = vrot.slane %v2905, 1
      %v2908 = vor.u32 %v2903, %v2907
      %v2910 = vshll.u32 %v2806, 16
      %v2912 = vrot.slane %v2910, 1
      %v2913 = vsel %vm371, %v2908, %v2912
      %v2915 = vshrl.u32 %v2807, 16
      %v2917 = vshll.u32 %v2807, 16
      %v2919 = vrot.slane %v2917, 1
      %v2920 = vor.u32 %v2915, %v2919
      %v2922 = vshll.u32 %v2808, 16
      %v2924 = vrot.slane %v2922, 1
      %v2925 = vsel %vm371, %v2920, %v2924
      %v2927 = vshrl.u32 %v2809, 16
      %v2929 = vshll.u32 %v2809, 16
      %v2931 = vrot.slane %v2929, 1
      %v2932 = vor.u32 %v2927, %v2931
      %v2934 = vshll.u32 %v2810, 16
      %v2936 = vrot.slane %v2934, 1
      %v2937 = vsel %vm371, %v2932, %v2936
      %v2939 = vshrl.u32 %v2811, 16
      %v2941 = vshll.u32 %v2811, 16
      %v2943 = vrot.slane %v2941, 1
      %v2944 = vor.u32 %v2939, %v2943
      %v2946 = vshll.u32 %v2812, 16
      %v2948 = vrot.slane %v2946, 1
      %v2949 = vsel %vm371, %v2944, %v2948
      %v2951 = vshrl.u32 %v2813, 16
      %v2953 = vshll.u32 %v2813, 16
      %v2955 = vrot.slane %v2953, 1
      %v2956 = vor.u32 %v2951, %v2955
      %v2958 = vshll.u32 %v2814, 16
      %v2960 = vrot.slane %v2958, 1
      %v2961 = vsel %vm371, %v2956, %v2960
      %v2963 = vshrl.u32 %v2815, 16
      %v2965 = vshll.u32 %v2815, 16
      %v2967 = vrot.slane %v2965, 1
      %v2968 = vor.u32 %v2963, %v2967
      %v2970 = vshll.u32 %v2816, 16
      %v2972 = vrot.slane %v2970, 1
      %v2973 = vsel %vm371, %v2968, %v2972
      %v2975 = vshrl.u32 %v2817, 16
      %v2977 = vshll.u32 %v2817, 16
      %v2979 = vrot.slane %v2977, 1
      %v2980 = vor.u32 %v2975, %v2979
      %v2982 = vshll.u32 %v2818, 16
      %v2984 = vrot.slane %v2982, 1
      %v2985 = vsel %vm371, %v2980, %v2984
      %v2987 = vshrl.u32 %v2819, 16
      %v2989 = vshll.u32 %v2819, 16
      %v2991 = vrot.slane %v2989, 1
      %v2992 = vor.u32 %v2987, %v2991
      %v2994 = vshll.u32 %v2820, 16
      %v2996 = vrot.slane %v2994, 1
      %v2997 = vsel %vm371, %v2992, %v2996
      %v2999 = vshrl.u32 %v2821, 16
      %v3001 = vshll.u32 %v2821, 16
      %v3003 = vrot.slane %v3001, 1
      %v3004 = vor.u32 %v2999, %v3003
      %v3006 = vshll.u32 %v2822, 16
      %v3008 = vrot.slane %v3006, 1
      %v3009 = vsel %vm371, %v3004, %v3008
      %v3011 = vshrl.u32 %v2823, 16
      %v3013 = vshll.u32 %v2823, 16
      %v3015 = vrot.slane %v3013, 1
      %v3016 = vor.u32 %v3011, %v3015
      %v3018 = vshll.u32 %v2824, 16
      %v3020 = vrot.slane %v3018, 1
      %v3021 = vsel %vm371, %v3016, %v3020
      %s3022 = scalar_lea.vmem %s4, 2
      %v3023 = vld [vmem:[%s3022] sm:$0x3]
      %v3025 = vsel %vm566, %v2841, 0
      %v3028 = vsel %vm566, %v2853, 0
      %v3031 = vsel %vm566, %v2865, 0
      %v3034 = vsel %vm566, %v2877, 0
      %v3037 = vsel %vm566, %v2889, 0
      %v3040 = vsel %vm566, %v2901, 0
      %v3043 = vsel %vm566, %v2913, 0
      %v3046 = vsel %vm566, %v2925, 0
      %v3049 = vsel %vm566, %v2937, 0
      %v3052 = vsel %vm566, %v2949, 0
      %v3055 = vsel %vm566, %v2961, 0
      %v3058 = vsel %vm566, %v2973, 0
      %v3061 = vsel %vm566, %v2985, 0
      %v3064 = vsel %vm566, %v2997, 0
      %v3067 = vsel %vm566, %v3009, 0
      %v3070 = vsel %vm566, %v3021, 0
      %v3073 = vsel %vm615, %v3023, 0
      %3075 = vmatprep.subr.bf16.mxu0 0
      %3076 = vmatpush1.bf16.msra.mxu0 0
      %3077 = vmatprep.subr.bf16.mxu0 0
      %3078 = vmatpush1.bf16.msra.mxu0 0
      %3079 = vmatprep.subr.bf16.mxu0 0
      %3080 = vmatpush1.bf16.msra.mxu0 0
      %3081 = vmatprep.subr.bf16.mxu0 0
      %3082 = vmatpush1.bf16.msra.mxu0 0
      %3083 = vmatprep.subr.bf16.mxu0 0
      %3084 = vmatpush1.bf16.msra.mxu0 0
      %3085 = vmatprep.subr.bf16.mxu0 0
      %3086 = vmatpush1.bf16.msra.mxu0 0
      %3087 = vmatprep.subr.bf16.mxu0 0
      %3088 = vmatpush1.bf16.msra.mxu0 0
      %3089 = vmatprep.subr.bf16.mxu0 0
      %3090 = vmatpush1.bf16.msra.mxu0 %v3073
      %3091 = vmatprep.subr.bf16.mxu0 0
      %3092 = vmatpush2.bf16.msra.mxu0 0
      %3093 = vmatprep.subr.bf16.mxu0 0
      %3094 = vmatpush2.bf16.msra.mxu0 0
      %3095 = vmatprep.subr.bf16.mxu0 0
      %3096 = vmatpush2.bf16.msra.mxu0 0
      %3097 = vmatprep.subr.bf16.mxu0 0
      %3098 = vmatpush2.bf16.msra.mxu0 0
      %3099 = vmatprep.subr.bf16.mxu0 0
      %3100 = vmatpush2.bf16.msra.mxu0 0
      %3101 = vmatprep.subr.bf16.mxu0 0
      %3102 = vmatpush2.bf16.msra.mxu0 0
      %3103 = vmatprep.subr.bf16.mxu0 0
      %3104 = vmatpush2.bf16.msra.mxu0 0
      %3105 = vmatprep.subr.bf16.mxu0 0
      %3106 = vmatpush2.bf16.msra.mxu0 0
      %3107 = vmatprep.mubr.bf16.mxu0 0
      %3108 = vmatmul.mubr.bf16.gmra.mxu0 %v3025
      %v3109 = vpop.f32.mrf.mxu0
      %v3110 = vadd.f32 0.0, %v3109
      %v3111 = vpop.f32.mrf.mxu0
      %v3112 = vpop.f32.mrf.mxu0
      %v3113 = vadd.f32 0.0, %v3112
      %v3114 = vpop.f32.mrf.mxu0
      %3115 = vmatprep.mubr.bf16.mxu0 0
      %3116 = vmatmul.mubr.bf16.gmra.mxu0 %v3028
      %v3117 = vpop.f32.mrf.mxu0
      %v3118 = vadd.f32 0.0, %v3117
      %v3119 = vpop.f32.mrf.mxu0
      %v3120 = vpop.f32.mrf.mxu0
      %v3121 = vadd.f32 0.0, %v3120
      %v3122 = vpop.f32.mrf.mxu0
      %3123 = vmatprep.mubr.bf16.mxu0 0
      %3124 = vmatmul.mubr.bf16.gmra.mxu0 %v3031
      %v3125 = vpop.f32.mrf.mxu0
      %v3126 = vadd.f32 0.0, %v3125
      %v3127 = vpop.f32.mrf.mxu0
      %v3128 = vpop.f32.mrf.mxu0
      %v3129 = vadd.f32 0.0, %v3128
      %v3130 = vpop.f32.mrf.mxu0
      %3131 = vmatprep.mubr.bf16.mxu0 0
      %3132 = vmatmul.mubr.bf16.gmra.mxu0 %v3034
      %v3133 = vpop.f32.mrf.mxu0
      %v3134 = vadd.f32 0.0, %v3133
      %v3135 = vpop.f32.mrf.mxu0
      %v3136 = vpop.f32.mrf.mxu0
      %v3137 = vadd.f32 0.0, %v3136
      %v3138 = vpop.f32.mrf.mxu0
      %3139 = vmatprep.mubr.bf16.mxu0 0
      %3140 = vmatmul.mubr.bf16.gmra.mxu0 %v3037
      %v3141 = vpop.f32.mrf.mxu0
      %v3142 = vadd.f32 0.0, %v3141
      %v3143 = vpop.f32.mrf.mxu0
      %v3144 = vpop.f32.mrf.mxu0
      %v3145 = vadd.f32 0.0, %v3144
      %v3146 = vpop.f32.mrf.mxu0
      %3147 = vmatprep.mubr.bf16.mxu0 0
      %3148 = vmatmul.mubr.bf16.gmra.mxu0 %v3040
      %v3149 = vpop.f32.mrf.mxu0
      %v3150 = vadd.f32 0.0, %v3149
      %v3151 = vpop.f32.mrf.mxu0
      %v3152 = vpop.f32.mrf.mxu0
      %v3153 = vadd.f32 0.0, %v3152
      %v3154 = vpop.f32.mrf.mxu0
      %3155 = vmatprep.mubr.bf16.mxu0 0
      %3156 = vmatmul.mubr.bf16.gmra.mxu0 %v3043
      %v3157 = vpop.f32.mrf.mxu0
      %v3158 = vadd.f32 0.0, %v3157
      %v3159 = vpop.f32.mrf.mxu0
      %v3160 = vpop.f32.mrf.mxu0
      %v3161 = vadd.f32 0.0, %v3160
      %v3162 = vpop.f32.mrf.mxu0
      %3163 = vmatprep.mubr.bf16.mxu0 0
      %3164 = vmatmul.mubr.bf16.gmra.mxu0 %v3046
      %v3165 = vpop.f32.mrf.mxu0
      %v3166 = vadd.f32 0.0, %v3165
      %v3167 = vpop.f32.mrf.mxu0
      %v3168 = vpop.f32.mrf.mxu0
      %v3169 = vadd.f32 0.0, %v3168
      %v3170 = vpop.f32.mrf.mxu0
      %3171 = vmatprep.mubr.bf16.mxu0 0
      %3172 = vmatmul.mubr.bf16.gmra.mxu0 %v3049
      %v3173 = vpop.f32.mrf.mxu0
      %v3174 = vadd.f32 0.0, %v3173
      %v3175 = vpop.f32.mrf.mxu0
      %v3176 = vpop.f32.mrf.mxu0
      %v3177 = vadd.f32 0.0, %v3176
      %v3178 = vpop.f32.mrf.mxu0
      %3179 = vmatprep.mubr.bf16.mxu0 0
      %3180 = vmatmul.mubr.bf16.gmra.mxu0 %v3052
      %v3181 = vpop.f32.mrf.mxu0
      %v3182 = vadd.f32 0.0, %v3181
      %v3183 = vpop.f32.mrf.mxu0
      %v3184 = vpop.f32.mrf.mxu0
      %v3185 = vadd.f32 0.0, %v3184
      %v3186 = vpop.f32.mrf.mxu0
      %3187 = vmatprep.mubr.bf16.mxu0 0
      %3188 = vmatmul.mubr.bf16.gmra.mxu0 %v3055
      %v3189 = vpop.f32.mrf.mxu0
      %v3190 = vadd.f32 0.0, %v3189
      %v3191 = vpop.f32.mrf.mxu0
      %v3192 = vpop.f32.mrf.mxu0
      %v3193 = vadd.f32 0.0, %v3192
      %v3194 = vpop.f32.mrf.mxu0
      %3195 = vmatprep.mubr.bf16.mxu0 0
      %3196 = vmatmul.mubr.bf16.gmra.mxu0 %v3058
      %v3197 = vpop.f32.mrf.mxu0
      %v3198 = vadd.f32 0.0, %v3197
      %v3199 = vpop.f32.mrf.mxu0
      %v3200 = vpop.f32.mrf.mxu0
      %v3201 = vadd.f32 0.0, %v3200
      %v3202 = vpop.f32.mrf.mxu0
      %3203 = vmatprep.mubr.bf16.mxu0 0
      %3204 = vmatmul.mubr.bf16.gmra.mxu0 %v3061
      %v3205 = vpop.f32.mrf.mxu0
      %v3206 = vadd.f32 0.0, %v3205
      %v3207 = vpop.f32.mrf.mxu0
      %v3208 = vpop.f32.mrf.mxu0
      %v3209 = vadd.f32 0.0, %v3208
      %v3210 = vpop.f32.mrf.mxu0
      %3211 = vmatprep.mubr.bf16.mxu0 0
      %3212 = vmatmul.mubr.bf16.gmra.mxu0 %v3064
      %v3213 = vpop.f32.mrf.mxu0
      %v3214 = vadd.f32 0.0, %v3213
      %v3215 = vpop.f32.mrf.mxu0
      %v3216 = vpop.f32.mrf.mxu0
      %v3217 = vadd.f32 0.0, %v3216
      %v3218 = vpop.f32.mrf.mxu0
      %3219 = vmatprep.mubr.bf16.mxu0 0
      %3220 = vmatmul.mubr.bf16.gmra.mxu0 %v3067
      %v3221 = vpop.f32.mrf.mxu0
      %v3222 = vadd.f32 0.0, %v3221
      %v3223 = vpop.f32.mrf.mxu0
      %v3224 = vpop.f32.mrf.mxu0
      %v3225 = vadd.f32 0.0, %v3224
      %v3226 = vpop.f32.mrf.mxu0
      %3227 = vmatprep.mubr.bf16.mxu0 0
      %3228 = vmatmul.mubr.bf16.gmra.mxu0 %v3070
      %v3229 = vpop.f32.mrf.mxu0
      %v3230 = vadd.f32 0.0, %v3229
      %v3231 = vpop.f32.mrf.mxu0
      %v3232 = vpop.f32.mrf.mxu0
      %v3233 = vadd.f32 0.0, %v3232
      %v3234 = vpop.f32.mrf.mxu0
      %3235 = vdwg.mxu0
      %v3236 = vsel %vm566, %v2793, 0
      %v3238 = vsel %vm566, %v2795, 0
      %v3240 = vsel %vm566, %v2797, 0
      %v3242 = vsel %vm566, %v2799, 0
      %v3244 = vsel %vm566, %v2801, 0
      %v3246 = vsel %vm566, %v2803, 0
      %v3248 = vsel %vm566, %v2805, 0
      %v3250 = vsel %vm566, %v2807, 0
      %v3252 = vsel %vm566, %v2809, 0
      %v3254 = vsel %vm566, %v2811, 0
      %v3256 = vsel %vm566, %v2813, 0
      %v3258 = vsel %vm566, %v2815, 0
      %v3260 = vsel %vm566, %v2817, 0
      %v3262 = vsel %vm566, %v2819, 0
      %v3264 = vsel %vm566, %v2821, 0
      %v3266 = vsel %vm566, %v2823, 0
      %v3269 = vsel %vm615, %v2829, 0
      %3271 = vmatprep.subr.bf16.mxu0 0
      %3272 = vmatpush1.bf16.msra.mxu0 0
      %3273 = vmatprep.subr.bf16.mxu0 0
      %3274 = vmatpush1.bf16.msra.mxu0 0
      %3275 = vmatprep.subr.bf16.mxu0 0
      %3276 = vmatpush1.bf16.msra.mxu0 0
      %3277 = vmatprep.subr.bf16.mxu0 0
      %3278 = vmatpush1.bf16.msra.mxu0 0
      %3279 = vmatprep.subr.bf16.mxu0 0
      %3280 = vmatpush1.bf16.msra.mxu0 0
      %3281 = vmatprep.subr.bf16.mxu0 0
      %3282 = vmatpush1.bf16.msra.mxu0 0
      %3283 = vmatprep.subr.bf16.mxu0 0
      %3284 = vmatpush1.bf16.msra.mxu0 0
      %3285 = vmatprep.subr.bf16.mxu0 0
      %3286 = vmatpush1.bf16.msra.mxu0 %v3269
      %3287 = vmatprep.subr.bf16.mxu0 0
      %3288 = vmatpush2.bf16.msra.mxu0 0
      %3289 = vmatprep.subr.bf16.mxu0 0
      %3290 = vmatpush2.bf16.msra.mxu0 0
      %3291 = vmatprep.subr.bf16.mxu0 0
      %3292 = vmatpush2.bf16.msra.mxu0 0
      %3293 = vmatprep.subr.bf16.mxu0 0
      %3294 = vmatpush2.bf16.msra.mxu0 0
      %3295 = vmatprep.subr.bf16.mxu0 0
      %3296 = vmatpush2.bf16.msra.mxu0 0
      %3297 = vmatprep.subr.bf16.mxu0 0
      %3298 = vmatpush2.bf16.msra.mxu0 0
      %3299 = vmatprep.subr.bf16.mxu0 0
      %3300 = vmatpush2.bf16.msra.mxu0 0
      %3301 = vmatprep.subr.bf16.mxu0 0
      %3302 = vmatpush2.bf16.msra.mxu0 0
      %3303 = vmatprep.mubr.bf16.mxu0 0
      %3304 = vmatmul.mubr.bf16.gmra.mxu0 %v3236
      %v3305 = vpop.f32.mrf.mxu0
      %v3306 = vadd.f32 %v3110, %v3305
      %v3307 = vpop.f32.mrf.mxu0
      %v3308 = vpop.f32.mrf.mxu0
      %v3309 = vadd.f32 %v3113, %v3308
      %v3310 = vpop.f32.mrf.mxu0
      %3311 = vmatprep.mubr.bf16.mxu0 0
      %3312 = vmatmul.mubr.bf16.gmra.mxu0 %v3238
      %v3313 = vpop.f32.mrf.mxu0
      %v3314 = vadd.f32 %v3118, %v3313
      %v3315 = vpop.f32.mrf.mxu0
      %v3316 = vpop.f32.mrf.mxu0
      %v3317 = vadd.f32 %v3121, %v3316
      %v3318 = vpop.f32.mrf.mxu0
      %3319 = vmatprep.mubr.bf16.mxu0 0
      %3320 = vmatmul.mubr.bf16.gmra.mxu0 %v3240
      %v3321 = vpop.f32.mrf.mxu0
      %v3322 = vadd.f32 %v3126, %v3321
      %v3323 = vpop.f32.mrf.mxu0
      %v3324 = vpop.f32.mrf.mxu0
      %v3325 = vadd.f32 %v3129, %v3324
      %v3326 = vpop.f32.mrf.mxu0
      %3327 = vmatprep.mubr.bf16.mxu0 0
      %3328 = vmatmul.mubr.bf16.gmra.mxu0 %v3242
      %v3329 = vpop.f32.mrf.mxu0
      %v3330 = vadd.f32 %v3134, %v3329
      %v3331 = vpop.f32.mrf.mxu0
      %v3332 = vpop.f32.mrf.mxu0
      %v3333 = vadd.f32 %v3137, %v3332
      %v3334 = vpop.f32.mrf.mxu0
      %3335 = vmatprep.mubr.bf16.mxu0 0
      %3336 = vmatmul.mubr.bf16.gmra.mxu0 %v3244
      %v3337 = vpop.f32.mrf.mxu0
      %v3338 = vadd.f32 %v3142, %v3337
      %v3339 = vpop.f32.mrf.mxu0
      %v3340 = vpop.f32.mrf.mxu0
      %v3341 = vadd.f32 %v3145, %v3340
      %v3342 = vpop.f32.mrf.mxu0
      %3343 = vmatprep.mubr.bf16.mxu0 0
      %3344 = vmatmul.mubr.bf16.gmra.mxu0 %v3246
      %v3345 = vpop.f32.mrf.mxu0
      %v3346 = vadd.f32 %v3150, %v3345
      %v3347 = vpop.f32.mrf.mxu0
      %v3348 = vpop.f32.mrf.mxu0
      %v3349 = vadd.f32 %v3153, %v3348
      %v3350 = vpop.f32.mrf.mxu0
      %3351 = vmatprep.mubr.bf16.mxu0 0
      %3352 = vmatmul.mubr.bf16.gmra.mxu0 %v3248
      %v3353 = vpop.f32.mrf.mxu0
      %v3354 = vadd.f32 %v3158, %v3353
      %v3355 = vpop.f32.mrf.mxu0
      %v3356 = vpop.f32.mrf.mxu0
      %v3357 = vadd.f32 %v3161, %v3356
      %v3358 = vpop.f32.mrf.mxu0
      %3359 = vmatprep.mubr.bf16.mxu0 0
      %3360 = vmatmul.mubr.bf16.gmra.mxu0 %v3250
      %v3361 = vpop.f32.mrf.mxu0
      %v3362 = vadd.f32 %v3166, %v3361
      %v3363 = vpop.f32.mrf.mxu0
      %v3364 = vpop.f32.mrf.mxu0
      %v3365 = vadd.f32 %v3169, %v3364
      %v3366 = vpop.f32.mrf.mxu0
      %3367 = vmatprep.mubr.bf16.mxu0 0
      %3368 = vmatmul.mubr.bf16.gmra.mxu0 %v3252
      %v3369 = vpop.f32.mrf.mxu0
      %v3370 = vadd.f32 %v3174, %v3369
      %v3371 = vpop.f32.mrf.mxu0
      %v3372 = vpop.f32.mrf.mxu0
      %v3373 = vadd.f32 %v3177, %v3372
      %v3374 = vpop.f32.mrf.mxu0
      %3375 = vmatprep.mubr.bf16.mxu0 0
      %3376 = vmatmul.mubr.bf16.gmra.mxu0 %v3254
      %v3377 = vpop.f32.mrf.mxu0
      %v3378 = vadd.f32 %v3182, %v3377
      %v3379 = vpop.f32.mrf.mxu0
      %v3380 = vpop.f32.mrf.mxu0
      %v3381 = vadd.f32 %v3185, %v3380
      %v3382 = vpop.f32.mrf.mxu0
      %3383 = vmatprep.mubr.bf16.mxu0 0
      %3384 = vmatmul.mubr.bf16.gmra.mxu0 %v3256
      %v3385 = vpop.f32.mrf.mxu0
      %v3386 = vadd.f32 %v3190, %v3385
      %v3387 = vpop.f32.mrf.mxu0
      %v3388 = vpop.f32.mrf.mxu0
      %v3389 = vadd.f32 %v3193, %v3388
      %v3390 = vpop.f32.mrf.mxu0
      %3391 = vmatprep.mubr.bf16.mxu0 0
      %3392 = vmatmul.mubr.bf16.gmra.mxu0 %v3258
      %v3393 = vpop.f32.mrf.mxu0
      %v3394 = vadd.f32 %v3198, %v3393
      %v3395 = vpop.f32.mrf.mxu0
      %v3396 = vpop.f32.mrf.mxu0
      %v3397 = vadd.f32 %v3201, %v3396
      %v3398 = vpop.f32.mrf.mxu0
      %3399 = vmatprep.mubr.bf16.mxu0 0
      %3400 = vmatmul.mubr.bf16.gmra.mxu0 %v3260
      %v3401 = vpop.f32.mrf.mxu0
      %v3402 = vadd.f32 %v3206, %v3401
      %v3403 = vpop.f32.mrf.mxu0
      %v3404 = vpop.f32.mrf.mxu0
      %v3405 = vadd.f32 %v3209, %v3404
      %v3406 = vpop.f32.mrf.mxu0
      %3407 = vmatprep.mubr.bf16.mxu0 0
      %3408 = vmatmul.mubr.bf16.gmra.mxu0 %v3262
      %v3409 = vpop.f32.mrf.mxu0
      %v3410 = vadd.f32 %v3214, %v3409
      %v3411 = vpop.f32.mrf.mxu0
      %v3412 = vpop.f32.mrf.mxu0
      %v3413 = vadd.f32 %v3217, %v3412
      %v3414 = vpop.f32.mrf.mxu0
      %3415 = vmatprep.mubr.bf16.mxu0 0
      %3416 = vmatmul.mubr.bf16.gmra.mxu0 %v3264
      %v3417 = vpop.f32.mrf.mxu0
      %v3418 = vadd.f32 %v3222, %v3417
      %v3419 = vpop.f32.mrf.mxu0
      %v3420 = vpop.f32.mrf.mxu0
      %v3421 = vadd.f32 %v3225, %v3420
      %v3422 = vpop.f32.mrf.mxu0
      %3423 = vmatprep.mubr.bf16.mxu0 0
      %3424 = vmatmul.mubr.bf16.gmra.mxu0 %v3266
      %v3425 = vpop.f32.mrf.mxu0
      %v3426 = vadd.f32 %v3230, %v3425
      %v3427 = vpop.f32.mrf.mxu0
      %v3428 = vpop.f32.mrf.mxu0
      %v3429 = vadd.f32 %v3233, %v3428
      %v3430 = vpop.f32.mrf.mxu0
      %3431 = vdwg.mxu0
      %v3464 = vrot.slane %v2793, 1
      %v3465 = vrot.slane %v2794, 1
      %v3466 = vsel %vm1008, %v3464, %v3465
      %v3467 = vrot.slane %v2795, 1
      %v3468 = vrot.slane %v2796, 1
      %v3469 = vsel %vm1008, %v3467, %v3468
      %v3470 = vrot.slane %v2797, 1
      %v3471 = vrot.slane %v2798, 1
      %v3472 = vsel %vm1008, %v3470, %v3471
      %v3473 = vrot.slane %v2799, 1
      %v3474 = vrot.slane %v2800, 1
      %v3475 = vsel %vm1008, %v3473, %v3474
      %v3476 = vrot.slane %v2801, 1
      %v3477 = vrot.slane %v2802, 1
      %v3478 = vsel %vm1008, %v3476, %v3477
      %v3479 = vrot.slane %v2803, 1
      %v3480 = vrot.slane %v2804, 1
      %v3481 = vsel %vm1008, %v3479, %v3480
      %v3482 = vrot.slane %v2805, 1
      %v3483 = vrot.slane %v2806, 1
      %v3484 = vsel %vm1008, %v3482, %v3483
      %v3485 = vrot.slane %v2807, 1
      %v3486 = vrot.slane %v2808, 1
      %v3487 = vsel %vm1008, %v3485, %v3486
      %v3488 = vrot.slane %v2809, 1
      %v3489 = vrot.slane %v2810, 1
      %v3490 = vsel %vm1008, %v3488, %v3489
      %v3491 = vrot.slane %v2811, 1
      %v3492 = vrot.slane %v2812, 1
      %v3493 = vsel %vm1008, %v3491, %v3492
      %v3494 = vrot.slane %v2813, 1
      %v3495 = vrot.slane %v2814, 1
      %v3496 = vsel %vm1008, %v3494, %v3495
      %v3497 = vrot.slane %v2815, 1
      %v3498 = vrot.slane %v2816, 1
      %v3499 = vsel %vm1008, %v3497, %v3498
      %v3500 = vrot.slane %v2817, 1
      %v3501 = vrot.slane %v2818, 1
      %v3502 = vsel %vm1008, %v3500, %v3501
      %v3503 = vrot.slane %v2819, 1
      %v3504 = vrot.slane %v2820, 1
      %v3505 = vsel %vm1008, %v3503, %v3504
      %v3506 = vrot.slane %v2821, 1
      %v3507 = vrot.slane %v2822, 1
      %v3508 = vsel %vm1008, %v3506, %v3507
      %v3509 = vrot.slane %v2823, 1
      %v3510 = vrot.slane %v2824, 1
      %v3511 = vsel %vm1008, %v3509, %v3510
      %s3512 = scalar_lea.vmem %s4, 4
      %v3513 = vld [vmem:[%s3512] sm:$0x3]
      %v3515 = vsel %vm566, %v3466, 0
      %v3518 = vsel %vm566, %v3469, 0
      %v3521 = vsel %vm566, %v3472, 0
      %v3524 = vsel %vm566, %v3475, 0
      %v3527 = vsel %vm566, %v3478, 0
      %v3530 = vsel %vm566, %v3481, 0
      %v3533 = vsel %vm566, %v3484, 0
      %v3536 = vsel %vm566, %v3487, 0
      %v3539 = vsel %vm566, %v3490, 0
      %v3542 = vsel %vm566, %v3493, 0
      %v3545 = vsel %vm566, %v3496, 0
      %v3548 = vsel %vm566, %v3499, 0
      %v3551 = vsel %vm566, %v3502, 0
      %v3554 = vsel %vm566, %v3505, 0
      %v3557 = vsel %vm566, %v3508, 0
      %v3560 = vsel %vm566, %v3511, 0
      %v3563 = vsel %vm615, %v3513, 0
      %3565 = vmatprep.subr.bf16.mxu0 0
      %3566 = vmatpush1.bf16.msra.mxu0 0
      %3567 = vmatprep.subr.bf16.mxu0 0
      %3568 = vmatpush1.bf16.msra.mxu0 0
      %3569 = vmatprep.subr.bf16.mxu0 0
      %3570 = vmatpush1.bf16.msra.mxu0 0
      %3571 = vmatprep.subr.bf16.mxu0 0
      %3572 = vmatpush1.bf16.msra.mxu0 0
      %3573 = vmatprep.subr.bf16.mxu0 0
      %3574 = vmatpush1.bf16.msra.mxu0 0
      %3575 = vmatprep.subr.bf16.mxu0 0
      %3576 = vmatpush1.bf16.msra.mxu0 0
      %3577 = vmatprep.subr.bf16.mxu0 0
      %3578 = vmatpush1.bf16.msra.mxu0 0
      %3579 = vmatprep.subr.bf16.mxu0 0
      %3580 = vmatpush1.bf16.msra.mxu0 %v3563
      %3581 = vmatprep.subr.bf16.mxu0 0
      %3582 = vmatpush2.bf16.msra.mxu0 0
      %3583 = vmatprep.subr.bf16.mxu0 0
      %3584 = vmatpush2.bf16.msra.mxu0 0
      %3585 = vmatprep.subr.bf16.mxu0 0
      %3586 = vmatpush2.bf16.msra.mxu0 0
      %3587 = vmatprep.subr.bf16.mxu0 0
      %3588 = vmatpush2.bf16.msra.mxu0 0
      %3589 = vmatprep.subr.bf16.mxu0 0
      %3590 = vmatpush2.bf16.msra.mxu0 0
      %3591 = vmatprep.subr.bf16.mxu0 0
      %3592 = vmatpush2.bf16.msra.mxu0 0
      %3593 = vmatprep.subr.bf16.mxu0 0
      %3594 = vmatpush2.bf16.msra.mxu0 0
      %3595 = vmatprep.subr.bf16.mxu0 0
      %3596 = vmatpush2.bf16.msra.mxu0 0
      %3597 = vmatprep.mubr.bf16.mxu0 0
      %3598 = vmatmul.mubr.bf16.gmra.mxu0 %v3515
      %v3599 = vpop.f32.mrf.mxu0
      %v3600 = vadd.f32 0.0, %v3599
      %v3601 = vpop.f32.mrf.mxu0
      %v3602 = vpop.f32.mrf.mxu0
      %v3603 = vadd.f32 0.0, %v3602
      %v3604 = vpop.f32.mrf.mxu0
      %3605 = vmatprep.mubr.bf16.mxu0 0
      %3606 = vmatmul.mubr.bf16.gmra.mxu0 %v3518
      %v3607 = vpop.f32.mrf.mxu0
      %v3608 = vadd.f32 0.0, %v3607
      %v3609 = vpop.f32.mrf.mxu0
      %v3610 = vpop.f32.mrf.mxu0
      %v3611 = vadd.f32 0.0, %v3610
      %v3612 = vpop.f32.mrf.mxu0
      %3613 = vmatprep.mubr.bf16.mxu0 0
      %3614 = vmatmul.mubr.bf16.gmra.mxu0 %v3521
      %v3615 = vpop.f32.mrf.mxu0
      %v3616 = vadd.f32 0.0, %v3615
      %v3617 = vpop.f32.mrf.mxu0
      %v3618 = vpop.f32.mrf.mxu0
      %v3619 = vadd.f32 0.0, %v3618
      %v3620 = vpop.f32.mrf.mxu0
      %3621 = vmatprep.mubr.bf16.mxu0 0
      %3622 = vmatmul.mubr.bf16.gmra.mxu0 %v3524
      %v3623 = vpop.f32.mrf.mxu0
      %v3624 = vadd.f32 0.0, %v3623
      %v3625 = vpop.f32.mrf.mxu0
      %v3626 = vpop.f32.mrf.mxu0
      %v3627 = vadd.f32 0.0, %v3626
      %v3628 = vpop.f32.mrf.mxu0
      %3629 = vmatprep.mubr.bf16.mxu0 0
      %3630 = vmatmul.mubr.bf16.gmra.mxu0 %v3527
      %v3631 = vpop.f32.mrf.mxu0
      %v3632 = vadd.f32 0.0, %v3631
      %v3633 = vpop.f32.mrf.mxu0
      %v3634 = vpop.f32.mrf.mxu0
      %v3635 = vadd.f32 0.0, %v3634
      %v3636 = vpop.f32.mrf.mxu0
      %3637 = vmatprep.mubr.bf16.mxu0 0
      %3638 = vmatmul.mubr.bf16.gmra.mxu0 %v3530
      %v3639 = vpop.f32.mrf.mxu0
      %v3640 = vadd.f32 0.0, %v3639
      %v3641 = vpop.f32.mrf.mxu0
      %v3642 = vpop.f32.mrf.mxu0
      %v3643 = vadd.f32 0.0, %v3642
      %v3644 = vpop.f32.mrf.mxu0
      %3645 = vmatprep.mubr.bf16.mxu0 0
      %3646 = vmatmul.mubr.bf16.gmra.mxu0 %v3533
      %v3647 = vpop.f32.mrf.mxu0
      %v3648 = vadd.f32 0.0, %v3647
      %v3649 = vpop.f32.mrf.mxu0
      %v3650 = vpop.f32.mrf.mxu0
      %v3651 = vadd.f32 0.0, %v3650
      %v3652 = vpop.f32.mrf.mxu0
      %3653 = vmatprep.mubr.bf16.mxu0 0
      %3654 = vmatmul.mubr.bf16.gmra.mxu0 %v3536
      %v3655 = vpop.f32.mrf.mxu0
      %v3656 = vadd.f32 0.0, %v3655
      %v3657 = vpop.f32.mrf.mxu0
      %v3658 = vpop.f32.mrf.mxu0
      %v3659 = vadd.f32 0.0, %v3658
      %v3660 = vpop.f32.mrf.mxu0
      %3661 = vmatprep.mubr.bf16.mxu0 0
      %3662 = vmatmul.mubr.bf16.gmra.mxu0 %v3539
      %v3663 = vpop.f32.mrf.mxu0
      %v3664 = vadd.f32 0.0, %v3663
      %v3665 = vpop.f32.mrf.mxu0
      %v3666 = vpop.f32.mrf.mxu0
      %v3667 = vadd.f32 0.0, %v3666
      %v3668 = vpop.f32.mrf.mxu0
      %3669 = vmatprep.mubr.bf16.mxu0 0
      %3670 = vmatmul.mubr.bf16.gmra.mxu0 %v3542
      %v3671 = vpop.f32.mrf.mxu0
      %v3672 = vadd.f32 0.0, %v3671
      %v3673 = vpop.f32.mrf.mxu0
      %v3674 = vpop.f32.mrf.mxu0
      %v3675 = vadd.f32 0.0, %v3674
      %v3676 = vpop.f32.mrf.mxu0
      %3677 = vmatprep.mubr.bf16.mxu0 0
      %3678 = vmatmul.mubr.bf16.gmra.mxu0 %v3545
      %v3679 = vpop.f32.mrf.mxu0
      %v3680 = vadd.f32 0.0, %v3679
      %v3681 = vpop.f32.mrf.mxu0
      %v3682 = vpop.f32.mrf.mxu0
      %v3683 = vadd.f32 0.0, %v3682
      %v3684 = vpop.f32.mrf.mxu0
      %3685 = vmatprep.mubr.bf16.mxu0 0
      %3686 = vmatmul.mubr.bf16.gmra.mxu0 %v3548
      %v3687 = vpop.f32.mrf.mxu0
      %v3688 = vadd.f32 0.0, %v3687
      %v3689 = vpop.f32.mrf.mxu0
      %v3690 = vpop.f32.mrf.mxu0
      %v3691 = vadd.f32 0.0, %v3690
      %v3692 = vpop.f32.mrf.mxu0
      %3693 = vmatprep.mubr.bf16.mxu0 0
      %3694 = vmatmul.mubr.bf16.gmra.mxu0 %v3551
      %v3695 = vpop.f32.mrf.mxu0
      %v3696 = vadd.f32 0.0, %v3695
      %v3697 = vpop.f32.mrf.mxu0
      %v3698 = vpop.f32.mrf.mxu0
      %v3699 = vadd.f32 0.0, %v3698
      %v3700 = vpop.f32.mrf.mxu0
      %3701 = vmatprep.mubr.bf16.mxu0 0
      %3702 = vmatmul.mubr.bf16.gmra.mxu0 %v3554
      %v3703 = vpop.f32.mrf.mxu0
      %v3704 = vadd.f32 0.0, %v3703
      %v3705 = vpop.f32.mrf.mxu0
      %v3706 = vpop.f32.mrf.mxu0
      %v3707 = vadd.f32 0.0, %v3706
      %v3708 = vpop.f32.mrf.mxu0
      %3709 = vmatprep.mubr.bf16.mxu0 0
      %3710 = vmatmul.mubr.bf16.gmra.mxu0 %v3557
      %v3711 = vpop.f32.mrf.mxu0
      %v3712 = vadd.f32 0.0, %v3711
      %v3713 = vpop.f32.mrf.mxu0
      %v3714 = vpop.f32.mrf.mxu0
      %v3715 = vadd.f32 0.0, %v3714
      %v3716 = vpop.f32.mrf.mxu0
      %3717 = vmatprep.mubr.bf16.mxu0 0
      %3718 = vmatmul.mubr.bf16.gmra.mxu0 %v3560
      %v3719 = vpop.f32.mrf.mxu0
      %v3720 = vadd.f32 0.0, %v3719
      %v3721 = vpop.f32.mrf.mxu0
      %v3722 = vpop.f32.mrf.mxu0
      %v3723 = vadd.f32 0.0, %v3722
      %v3724 = vpop.f32.mrf.mxu0
      %3725 = vdwg.mxu0
      %v3726 = vadd.f32 %v3306, %v3600
      %v3727 = vadd.f32 %v3309, %v3603
      %v3728 = vadd.f32 %v3314, %v3608
      %v3729 = vadd.f32 %v3317, %v3611
      %v3730 = vadd.f32 %v3322, %v3616
      %v3731 = vadd.f32 %v3325, %v3619
      %v3732 = vadd.f32 %v3330, %v3624
      %v3733 = vadd.f32 %v3333, %v3627
      %v3734 = vadd.f32 %v3338, %v3632
      %v3735 = vadd.f32 %v3341, %v3635
      %v3736 = vadd.f32 %v3346, %v3640
      %v3737 = vadd.f32 %v3349, %v3643
      %v3738 = vadd.f32 %v3354, %v3648
      %v3739 = vadd.f32 %v3357, %v3651
      %v3740 = vadd.f32 %v3362, %v3656
      %v3741 = vadd.f32 %v3365, %v3659
      %v3742 = vadd.f32 %v3370, %v3664
      %v3743 = vadd.f32 %v3373, %v3667
      %v3744 = vadd.f32 %v3378, %v3672
      %v3745 = vadd.f32 %v3381, %v3675
      %v3746 = vadd.f32 %v3386, %v3680
      %v3747 = vadd.f32 %v3389, %v3683
      %v3748 = vadd.f32 %v3394, %v3688
      %v3749 = vadd.f32 %v3397, %v3691
      %v3750 = vadd.f32 %v3402, %v3696
      %v3751 = vadd.f32 %v3405, %v3699
      %v3752 = vadd.f32 %v3410, %v3704
      %v3753 = vadd.f32 %v3413, %v3707
      %v3754 = vadd.f32 %v3418, %v3712
      %v3755 = vadd.f32 %v3421, %v3715
      %v3756 = vadd.f32 %v3426, %v3720
      %v3757 = vadd.f32 %v3429, %v3723
      %s3758 = scalar_lea.vmem %s4, 6
      %v3759 = vld [vmem:[%s3758] sm:$0x3]
      %v3761 = vsel %vm566, %v2825, 0
      %v3764 = vsel %vm615, %v3759, 0
      %3766 = vmatprep.subr.bf16.mxu0 0
      %3767 = vmatpush1.bf16.msra.mxu0 0
      %3768 = vmatprep.subr.bf16.mxu0 0
      %3769 = vmatpush1.bf16.msra.mxu0 0
      %3770 = vmatprep.subr.bf16.mxu0 0
      %3771 = vmatpush1.bf16.msra.mxu0 0
      %3772 = vmatprep.subr.bf16.mxu0 0
      %3773 = vmatpush1.bf16.msra.mxu0 0
      %3774 = vmatprep.subr.bf16.mxu0 0
      %3775 = vmatpush1.bf16.msra.mxu0 0
      %3776 = vmatprep.subr.bf16.mxu0 0
      %3777 = vmatpush1.bf16.msra.mxu0 0
      %3778 = vmatprep.subr.bf16.mxu0 0
      %3779 = vmatpush1.bf16.msra.mxu0 0
      %3780 = vmatprep.subr.bf16.mxu0 0
      %3781 = vmatpush1.bf16.msra.mxu0 %v3764
      %3782 = vmatprep.subr.bf16.mxu0 0
      %3783 = vmatpush2.bf16.msra.mxu0 0
      %3784 = vmatprep.subr.bf16.mxu0 0
      %3785 = vmatpush2.bf16.msra.mxu0 0
      %3786 = vmatprep.subr.bf16.mxu0 0
      %3787 = vmatpush2.bf16.msra.mxu0 0
      %3788 = vmatprep.subr.bf16.mxu0 0
      %3789 = vmatpush2.bf16.msra.mxu0 0
      %3790 = vmatprep.subr.bf16.mxu0 0
      %3791 = vmatpush2.bf16.msra.mxu0 0
      %3792 = vmatprep.subr.bf16.mxu0 0
      %3793 = vmatpush2.bf16.msra.mxu0 0
      %3794 = vmatprep.subr.bf16.mxu0 0
      %3795 = vmatpush2.bf16.msra.mxu0 0
      %3796 = vmatprep.subr.bf16.mxu0 0
      %3797 = vmatpush2.bf16.msra.mxu0 0
      %3798 = vmatprep.mubr.bf16.mxu0 0
      %3799 = vmatmul.mubr.bf16.gmra.mxu0 %v3238
      %v3800 = vpop.f32.mrf.mxu0
      %v3801 = vadd.f32 0.0, %v3800
      %v3802 = vpop.f32.mrf.mxu0
      %v3803 = vpop.f32.mrf.mxu0
      %v3804 = vadd.f32 0.0, %v3803
      %v3805 = vpop.f32.mrf.mxu0
      %3806 = vmatprep.mubr.bf16.mxu0 0
      %3807 = vmatmul.mubr.bf16.gmra.mxu0 %v3240
      %v3808 = vpop.f32.mrf.mxu0
      %v3809 = vadd.f32 0.0, %v3808
      %v3810 = vpop.f32.mrf.mxu0
      %v3811 = vpop.f32.mrf.mxu0
      %v3812 = vadd.f32 0.0, %v3811
      %v3813 = vpop.f32.mrf.mxu0
      %3814 = vmatprep.mubr.bf16.mxu0 0
      %3815 = vmatmul.mubr.bf16.gmra.mxu0 %v3242
      %v3816 = vpop.f32.mrf.mxu0
      %v3817 = vadd.f32 0.0, %v3816
      %v3818 = vpop.f32.mrf.mxu0
      %v3819 = vpop.f32.mrf.mxu0
      %v3820 = vadd.f32 0.0, %v3819
      %v3821 = vpop.f32.mrf.mxu0
      %3822 = vmatprep.mubr.bf16.mxu0 0
      %3823 = vmatmul.mubr.bf16.gmra.mxu0 %v3244
      %v3824 = vpop.f32.mrf.mxu0
      %v3825 = vadd.f32 0.0, %v3824
      %v3826 = vpop.f32.mrf.mxu0
      %v3827 = vpop.f32.mrf.mxu0
      %v3828 = vadd.f32 0.0, %v3827
      %v3829 = vpop.f32.mrf.mxu0
      %3830 = vmatprep.mubr.bf16.mxu0 0
      %3831 = vmatmul.mubr.bf16.gmra.mxu0 %v3246
      %v3832 = vpop.f32.mrf.mxu0
      %v3833 = vadd.f32 0.0, %v3832
      %v3834 = vpop.f32.mrf.mxu0
      %v3835 = vpop.f32.mrf.mxu0
      %v3836 = vadd.f32 0.0, %v3835
      %v3837 = vpop.f32.mrf.mxu0
      %3838 = vmatprep.mubr.bf16.mxu0 0
      %3839 = vmatmul.mubr.bf16.gmra.mxu0 %v3248
      %v3840 = vpop.f32.mrf.mxu0
      %v3841 = vadd.f32 0.0, %v3840
      %v3842 = vpop.f32.mrf.mxu0
      %v3843 = vpop.f32.mrf.mxu0
      %v3844 = vadd.f32 0.0, %v3843
      %v3845 = vpop.f32.mrf.mxu0
      %3846 = vmatprep.mubr.bf16.mxu0 0
      %3847 = vmatmul.mubr.bf16.gmra.mxu0 %v3250
      %v3848 = vpop.f32.mrf.mxu0
      %v3849 = vadd.f32 0.0, %v3848
      %v3850 = vpop.f32.mrf.mxu0
      %v3851 = vpop.f32.mrf.mxu0
      %v3852 = vadd.f32 0.0, %v3851
      %v3853 = vpop.f32.mrf.mxu0
      %3854 = vmatprep.mubr.bf16.mxu0 0
      %3855 = vmatmul.mubr.bf16.gmra.mxu0 %v3252
      %v3856 = vpop.f32.mrf.mxu0
      %v3857 = vadd.f32 0.0, %v3856
      %v3858 = vpop.f32.mrf.mxu0
      %v3859 = vpop.f32.mrf.mxu0
      %v3860 = vadd.f32 0.0, %v3859
      %v3861 = vpop.f32.mrf.mxu0
      %3862 = vmatprep.mubr.bf16.mxu0 0
      %3863 = vmatmul.mubr.bf16.gmra.mxu0 %v3254
      %v3864 = vpop.f32.mrf.mxu0
      %v3865 = vadd.f32 0.0, %v3864
      %v3866 = vpop.f32.mrf.mxu0
      %v3867 = vpop.f32.mrf.mxu0
      %v3868 = vadd.f32 0.0, %v3867
      %v3869 = vpop.f32.mrf.mxu0
      %3870 = vmatprep.mubr.bf16.mxu0 0
      %3871 = vmatmul.mubr.bf16.gmra.mxu0 %v3256
      %v3872 = vpop.f32.mrf.mxu0
      %v3873 = vadd.f32 0.0, %v3872
      %v3874 = vpop.f32.mrf.mxu0
      %v3875 = vpop.f32.mrf.mxu0
      %v3876 = vadd.f32 0.0, %v3875
      %v3877 = vpop.f32.mrf.mxu0
      %3878 = vmatprep.mubr.bf16.mxu0 0
      %3879 = vmatmul.mubr.bf16.gmra.mxu0 %v3258
      %v3880 = vpop.f32.mrf.mxu0
      %v3881 = vadd.f32 0.0, %v3880
      %v3882 = vpop.f32.mrf.mxu0
      %v3883 = vpop.f32.mrf.mxu0
      %v3884 = vadd.f32 0.0, %v3883
      %v3885 = vpop.f32.mrf.mxu0
      %3886 = vmatprep.mubr.bf16.mxu0 0
      %3887 = vmatmul.mubr.bf16.gmra.mxu0 %v3260
      %v3888 = vpop.f32.mrf.mxu0
      %v3889 = vadd.f32 0.0, %v3888
      %v3890 = vpop.f32.mrf.mxu0
      %v3891 = vpop.f32.mrf.mxu0
      %v3892 = vadd.f32 0.0, %v3891
      %v3893 = vpop.f32.mrf.mxu0
      %3894 = vmatprep.mubr.bf16.mxu0 0
      %3895 = vmatmul.mubr.bf16.gmra.mxu0 %v3262
      %v3896 = vpop.f32.mrf.mxu0
      %v3897 = vadd.f32 0.0, %v3896
      %v3898 = vpop.f32.mrf.mxu0
      %v3899 = vpop.f32.mrf.mxu0
      %v3900 = vadd.f32 0.0, %v3899
      %v3901 = vpop.f32.mrf.mxu0
      %3902 = vmatprep.mubr.bf16.mxu0 0
      %3903 = vmatmul.mubr.bf16.gmra.mxu0 %v3264
      %v3904 = vpop.f32.mrf.mxu0
      %v3905 = vadd.f32 0.0, %v3904
      %v3906 = vpop.f32.mrf.mxu0
      %v3907 = vpop.f32.mrf.mxu0
      %v3908 = vadd.f32 0.0, %v3907
      %v3909 = vpop.f32.mrf.mxu0
      %3910 = vmatprep.mubr.bf16.mxu0 0
      %3911 = vmatmul.mubr.bf16.gmra.mxu0 %v3266
      %v3912 = vpop.f32.mrf.mxu0
      %v3913 = vadd.f32 0.0, %v3912
      %v3914 = vpop.f32.mrf.mxu0
      %v3915 = vpop.f32.mrf.mxu0
      %v3916 = vadd.f32 0.0, %v3915
      %v3917 = vpop.f32.mrf.mxu0
      %3918 = vmatprep.mubr.bf16.mxu0 0
      %3919 = vmatmul.mubr.bf16.gmra.mxu0 %v3761
      %v3920 = vpop.f32.mrf.mxu0
      %v3921 = vadd.f32 0.0, %v3920
      %v3922 = vpop.f32.mrf.mxu0
      %v3923 = vpop.f32.mrf.mxu0
      %v3924 = vadd.f32 0.0, %v3923
      %v3925 = vpop.f32.mrf.mxu0
      %3926 = vdwg.mxu0
      %v3927 = vadd.f32 %v3726, %v3801
      %v3928 = vadd.f32 %v3727, %v3804
      %v3929 = vadd.f32 %v3728, %v3809
      %v3930 = vadd.f32 %v3729, %v3812
      %v3931 = vadd.f32 %v3730, %v3817
      %v3932 = vadd.f32 %v3731, %v3820
      %v3933 = vadd.f32 %v3732, %v3825
      %v3934 = vadd.f32 %v3733, %v3828
      %v3935 = vadd.f32 %v3734, %v3833
      %v3936 = vadd.f32 %v3735, %v3836
      %v3937 = vadd.f32 %v3736, %v3841
      %v3938 = vadd.f32 %v3737, %v3844
      %v3939 = vadd.f32 %v3738, %v3849
      %v3940 = vadd.f32 %v3739, %v3852
      %v3941 = vadd.f32 %v3740, %v3857
      %v3942 = vadd.f32 %v3741, %v3860
      %v3943 = vadd.f32 %v3742, %v3865
      %v3944 = vadd.f32 %v3743, %v3868
      %v3945 = vadd.f32 %v3744, %v3873
      %v3946 = vadd.f32 %v3745, %v3876
      %v3947 = vadd.f32 %v3746, %v3881
      %v3948 = vadd.f32 %v3747, %v3884
      %v3949 = vadd.f32 %v3748, %v3889
      %v3950 = vadd.f32 %v3749, %v3892
      %v3951 = vadd.f32 %v3750, %v3897
      %v3952 = vadd.f32 %v3751, %v3900
      %v3953 = vadd.f32 %v3752, %v3905
      %v3954 = vadd.f32 %v3753, %v3908
      %v3955 = vadd.f32 %v3754, %v3913
      %v3956 = vadd.f32 %v3755, %v3916
      %v3957 = vadd.f32 %v3756, %v3921
      %v3958 = vadd.f32 %v3757, %v3924
      %v3959 = vshrl.u32 %v2825, 16
      %v3961 = vshll.u32 %v2825, 16
      %v3963 = vrot.slane %v3961, 1
      %v3964 = vor.u32 %v3959, %v3963
      %v3966 = vshll.u32 %v2826, 16
      %v3968 = vrot.slane %v3966, 1
      %v3969 = vsel %vm371, %v3964, %v3968
      %s3970 = scalar_lea.vmem %s4, 8
      %v3971 = vld [vmem:[%s3970] sm:$0x3]
      %v3973 = vsel %vm566, %v3969, 0
      %v3976 = vsel %vm615, %v3971, 0
      %3978 = vmatprep.subr.bf16.mxu0 0
      %3979 = vmatpush1.bf16.msra.mxu0 0
      %3980 = vmatprep.subr.bf16.mxu0 0
      %3981 = vmatpush1.bf16.msra.mxu0 0
      %3982 = vmatprep.subr.bf16.mxu0 0
      %3983 = vmatpush1.bf16.msra.mxu0 0
      %3984 = vmatprep.subr.bf16.mxu0 0
      %3985 = vmatpush1.bf16.msra.mxu0 0
      %3986 = vmatprep.subr.bf16.mxu0 0
      %3987 = vmatpush1.bf16.msra.mxu0 0
      %3988 = vmatprep.subr.bf16.mxu0 0
      %3989 = vmatpush1.bf16.msra.mxu0 0
      %3990 = vmatprep.subr.bf16.mxu0 0
      %3991 = vmatpush1.bf16.msra.mxu0 0
      %3992 = vmatprep.subr.bf16.mxu0 0
      %3993 = vmatpush1.bf16.msra.mxu0 %v3976
      %3994 = vmatprep.subr.bf16.mxu0 0
      %3995 = vmatpush2.bf16.msra.mxu0 0
      %3996 = vmatprep.subr.bf16.mxu0 0
      %3997 = vmatpush2.bf16.msra.mxu0 0
      %3998 = vmatprep.subr.bf16.mxu0 0
      %3999 = vmatpush2.bf16.msra.mxu0 0
      %4000 = vmatprep.subr.bf16.mxu0 0
      %4001 = vmatpush2.bf16.msra.mxu0 0
      %4002 = vmatprep.subr.bf16.mxu0 0
      %4003 = vmatpush2.bf16.msra.mxu0 0
      %4004 = vmatprep.subr.bf16.mxu0 0
      %4005 = vmatpush2.bf16.msra.mxu0 0
      %4006 = vmatprep.subr.bf16.mxu0 0
      %4007 = vmatpush2.bf16.msra.mxu0 0
      %4008 = vmatprep.subr.bf16.mxu0 0
      %4009 = vmatpush2.bf16.msra.mxu0 0
      %4010 = vmatprep.mubr.bf16.mxu0 0
      %4011 = vmatmul.mubr.bf16.gmra.mxu0 %v3028
      %v4012 = vpop.f32.mrf.mxu0
      %v4013 = vadd.f32 0.0, %v4012
      %v4014 = vpop.f32.mrf.mxu0
      %v4015 = vpop.f32.mrf.mxu0
      %v4016 = vadd.f32 0.0, %v4015
      %v4017 = vpop.f32.mrf.mxu0
      %4018 = vmatprep.mubr.bf16.mxu0 0
      %4019 = vmatmul.mubr.bf16.gmra.mxu0 %v3031
      %v4020 = vpop.f32.mrf.mxu0
      %v4021 = vadd.f32 0.0, %v4020
      %v4022 = vpop.f32.mrf.mxu0
      %v4023 = vpop.f32.mrf.mxu0
      %v4024 = vadd.f32 0.0, %v4023
      %v4025 = vpop.f32.mrf.mxu0
      %4026 = vmatprep.mubr.bf16.mxu0 0
      %4027 = vmatmul.mubr.bf16.gmra.mxu0 %v3034
      %v4028 = vpop.f32.mrf.mxu0
      %v4029 = vadd.f32 0.0, %v4028
      %v4030 = vpop.f32.mrf.mxu0
      %v4031 = vpop.f32.mrf.mxu0
      %v4032 = vadd.f32 0.0, %v4031
      %v4033 = vpop.f32.mrf.mxu0
      %4034 = vmatprep.mubr.bf16.mxu0 0
      %4035 = vmatmul.mubr.bf16.gmra.mxu0 %v3037
      %v4036 = vpop.f32.mrf.mxu0
      %v4037 = vadd.f32 0.0, %v4036
      %v4038 = vpop.f32.mrf.mxu0
      %v4039 = vpop.f32.mrf.mxu0
      %v4040 = vadd.f32 0.0, %v4039
      %v4041 = vpop.f32.mrf.mxu0
      %4042 = vmatprep.mubr.bf16.mxu0 0
      %4043 = vmatmul.mubr.bf16.gmra.mxu0 %v3040
      %v4044 = vpop.f32.mrf.mxu0
      %v4045 = vadd.f32 0.0, %v4044
      %v4046 = vpop.f32.mrf.mxu0
      %v4047 = vpop.f32.mrf.mxu0
      %v4048 = vadd.f32 0.0, %v4047
      %v4049 = vpop.f32.mrf.mxu0
      %4050 = vmatprep.mubr.bf16.mxu0 0
      %4051 = vmatmul.mubr.bf16.gmra.mxu0 %v3043
      %v4052 = vpop.f32.mrf.mxu0
      %v4053 = vadd.f32 0.0, %v4052
      %v4054 = vpop.f32.mrf.mxu0
      %v4055 = vpop.f32.mrf.mxu0
      %v4056 = vadd.f32 0.0, %v4055
      %v4057 = vpop.f32.mrf.mxu0
      %4058 = vmatprep.mubr.bf16.mxu0 0
      %4059 = vmatmul.mubr.bf16.gmra.mxu0 %v3046
      %v4060 = vpop.f32.mrf.mxu0
      %v4061 = vadd.f32 0.0, %v4060
      %v4062 = vpop.f32.mrf.mxu0
      %v4063 = vpop.f32.mrf.mxu0
      %v4064 = vadd.f32 0.0, %v4063
      %v4065 = vpop.f32.mrf.mxu0
      %4066 = vmatprep.mubr.bf16.mxu0 0
      %4067 = vmatmul.mubr.bf16.gmra.mxu0 %v3049
      %v4068 = vpop.f32.mrf.mxu0
      %v4069 = vadd.f32 0.0, %v4068
      %v4070 = vpop.f32.mrf.mxu0
      %v4071 = vpop.f32.mrf.mxu0
      %v4072 = vadd.f32 0.0, %v4071
      %v4073 = vpop.f32.mrf.mxu0
      %4074 = vmatprep.mubr.bf16.mxu0 0
      %4075 = vmatmul.mubr.bf16.gmra.mxu0 %v3052
      %v4076 = vpop.f32.mrf.mxu0
      %v4077 = vadd.f32 0.0, %v4076
      %v4078 = vpop.f32.mrf.mxu0
      %v4079 = vpop.f32.mrf.mxu0
      %v4080 = vadd.f32 0.0, %v4079
      %v4081 = vpop.f32.mrf.mxu0
      %4082 = vmatprep.mubr.bf16.mxu0 0
      %4083 = vmatmul.mubr.bf16.gmra.mxu0 %v3055
      %v4084 = vpop.f32.mrf.mxu0
      %v4085 = vadd.f32 0.0, %v4084
      %v4086 = vpop.f32.mrf.mxu0
      %v4087 = vpop.f32.mrf.mxu0
      %v4088 = vadd.f32 0.0, %v4087
      %v4089 = vpop.f32.mrf.mxu0
      %4090 = vmatprep.mubr.bf16.mxu0 0
      %4091 = vmatmul.mubr.bf16.gmra.mxu0 %v3058
      %v4092 = vpop.f32.mrf.mxu0
      %v4093 = vadd.f32 0.0, %v4092
      %v4094 = vpop.f32.mrf.mxu0
      %v4095 = vpop.f32.mrf.mxu0
      %v4096 = vadd.f32 0.0, %v4095
      %v4097 = vpop.f32.mrf.mxu0
      %4098 = vmatprep.mubr.bf16.mxu0 0
      %4099 = vmatmul.mubr.bf16.gmra.mxu0 %v3061
      %v4100 = vpop.f32.mrf.mxu0
      %v4101 = vadd.f32 0.0, %v4100
      %v4102 = vpop.f32.mrf.mxu0
      %v4103 = vpop.f32.mrf.mxu0
      %v4104 = vadd.f32 0.0, %v4103
      %v4105 = vpop.f32.mrf.mxu0
      %4106 = vmatprep.mubr.bf16.mxu0 0
      %4107 = vmatmul.mubr.bf16.gmra.mxu0 %v3064
      %v4108 = vpop.f32.mrf.mxu0
      %v4109 = vadd.f32 0.0, %v4108
      %v4110 = vpop.f32.mrf.mxu0
      %v4111 = vpop.f32.mrf.mxu0
      %v4112 = vadd.f32 0.0, %v4111
      %v4113 = vpop.f32.mrf.mxu0
      %4114 = vmatprep.mubr.bf16.mxu0 0
      %4115 = vmatmul.mubr.bf16.gmra.mxu0 %v3067
      %v4116 = vpop.f32.mrf.mxu0
      %v4117 = vadd.f32 0.0, %v4116
      %v4118 = vpop.f32.mrf.mxu0
      %v4119 = vpop.f32.mrf.mxu0
      %v4120 = vadd.f32 0.0, %v4119
      %v4121 = vpop.f32.mrf.mxu0
      %4122 = vmatprep.mubr.bf16.mxu0 0
      %4123 = vmatmul.mubr.bf16.gmra.mxu0 %v3070
      %v4124 = vpop.f32.mrf.mxu0
      %v4125 = vadd.f32 0.0, %v4124
      %v4126 = vpop.f32.mrf.mxu0
      %v4127 = vpop.f32.mrf.mxu0
      %v4128 = vadd.f32 0.0, %v4127
      %v4129 = vpop.f32.mrf.mxu0
      %4130 = vmatprep.mubr.bf16.mxu0 0
      %4131 = vmatmul.mubr.bf16.gmra.mxu0 %v3973
      %v4132 = vpop.f32.mrf.mxu0
      %v4133 = vadd.f32 0.0, %v4132
      %v4134 = vpop.f32.mrf.mxu0
      %v4135 = vpop.f32.mrf.mxu0
      %v4136 = vadd.f32 0.0, %v4135
      %v4137 = vpop.f32.mrf.mxu0
      %4138 = vdwg.mxu0
      %v4139 = vadd.f32 %v3927, %v4013
      %v4140 = vadd.f32 %v3928, %v4016
      %v4141 = vadd.f32 %v3929, %v4021
      %v4142 = vadd.f32 %v3930, %v4024
      %v4143 = vadd.f32 %v3931, %v4029
      %v4144 = vadd.f32 %v3932, %v4032
      %v4145 = vadd.f32 %v3933, %v4037
      %v4146 = vadd.f32 %v3934, %v4040
      %v4147 = vadd.f32 %v3935, %v4045
      %v4148 = vadd.f32 %v3936, %v4048
      %v4149 = vadd.f32 %v3937, %v4053
      %v4150 = vadd.f32 %v3938, %v4056
      %v4151 = vadd.f32 %v3939, %v4061
      %v4152 = vadd.f32 %v3940, %v4064
      %v4153 = vadd.f32 %v3941, %v4069
      %v4154 = vadd.f32 %v3942, %v4072
      %v4155 = vadd.f32 %v3943, %v4077
      %v4156 = vadd.f32 %v3944, %v4080
      %v4157 = vadd.f32 %v3945, %v4085
      %v4158 = vadd.f32 %v3946, %v4088
      %v4159 = vadd.f32 %v3947, %v4093
      %v4160 = vadd.f32 %v3948, %v4096
      %v4161 = vadd.f32 %v3949, %v4101
      %v4162 = vadd.f32 %v3950, %v4104
      %v4163 = vadd.f32 %v3951, %v4109
      %v4164 = vadd.f32 %v3952, %v4112
      %v4165 = vadd.f32 %v3953, %v4117
      %v4166 = vadd.f32 %v3954, %v4120
      %v4167 = vadd.f32 %v3955, %v4125
      %v4168 = vadd.f32 %v3956, %v4128
      %v4169 = vadd.f32 %v3957, %v4133
      %v4170 = vadd.f32 %v3958, %v4136
      %v4173 = vrot.slane %v2825, 1
      %v4174 = vrot.slane %v2826, 1
      %v4175 = vsel %vm1008, %v4173, %v4174
      %s4176 = scalar_lea.vmem %s4, 10
      %v4177 = vld [vmem:[%s4176] sm:$0x3]
      %v4179 = vsel %vm566, %v4175, 0
      %v4182 = vsel %vm615, %v4177, 0
      %4184 = vmatprep.subr.bf16.mxu0 0
      %4185 = vmatpush1.bf16.msra.mxu0 0
      %4186 = vmatprep.subr.bf16.mxu0 0
      %4187 = vmatpush1.bf16.msra.mxu0 0
      %4188 = vmatprep.subr.bf16.mxu0 0
      %4189 = vmatpush1.bf16.msra.mxu0 0
      %4190 = vmatprep.subr.bf16.mxu0 0
      %4191 = vmatpush1.bf16.msra.mxu0 0
      %4192 = vmatprep.subr.bf16.mxu0 0
      %4193 = vmatpush1.bf16.msra.mxu0 0
      %4194 = vmatprep.subr.bf16.mxu0 0
      %4195 = vmatpush1.bf16.msra.mxu0 0
      %4196 = vmatprep.subr.bf16.mxu0 0
      %4197 = vmatpush1.bf16.msra.mxu0 0
      %4198 = vmatprep.subr.bf16.mxu0 0
      %4199 = vmatpush1.bf16.msra.mxu0 %v4182
      %4200 = vmatprep.subr.bf16.mxu0 0
      %4201 = vmatpush2.bf16.msra.mxu0 0
      %4202 = vmatprep.subr.bf16.mxu0 0
      %4203 = vmatpush2.bf16.msra.mxu0 0
      %4204 = vmatprep.subr.bf16.mxu0 0
      %4205 = vmatpush2.bf16.msra.mxu0 0
      %4206 = vmatprep.subr.bf16.mxu0 0
      %4207 = vmatpush2.bf16.msra.mxu0 0
      %4208 = vmatprep.subr.bf16.mxu0 0
      %4209 = vmatpush2.bf16.msra.mxu0 0
      %4210 = vmatprep.subr.bf16.mxu0 0
      %4211 = vmatpush2.bf16.msra.mxu0 0
      %4212 = vmatprep.subr.bf16.mxu0 0
      %4213 = vmatpush2.bf16.msra.mxu0 0
      %4214 = vmatprep.subr.bf16.mxu0 0
      %4215 = vmatpush2.bf16.msra.mxu0 0
      %4216 = vmatprep.mubr.bf16.mxu0 0
      %4217 = vmatmul.mubr.bf16.gmra.mxu0 %v3518
      %v4218 = vpop.f32.mrf.mxu0
      %v4219 = vadd.f32 0.0, %v4218
      %v4220 = vpop.f32.mrf.mxu0
      %v4221 = vpop.f32.mrf.mxu0
      %v4222 = vadd.f32 0.0, %v4221
      %v4223 = vpop.f32.mrf.mxu0
      %4224 = vmatprep.mubr.bf16.mxu0 0
      %4225 = vmatmul.mubr.bf16.gmra.mxu0 %v3521
      %v4226 = vpop.f32.mrf.mxu0
      %v4227 = vadd.f32 0.0, %v4226
      %v4228 = vpop.f32.mrf.mxu0
      %v4229 = vpop.f32.mrf.mxu0
      %v4230 = vadd.f32 0.0, %v4229
      %v4231 = vpop.f32.mrf.mxu0
      %4232 = vmatprep.mubr.bf16.mxu0 0
      %4233 = vmatmul.mubr.bf16.gmra.mxu0 %v3524
      %v4234 = vpop.f32.mrf.mxu0
      %v4235 = vadd.f32 0.0, %v4234
      %v4236 = vpop.f32.mrf.mxu0
      %v4237 = vpop.f32.mrf.mxu0
      %v4238 = vadd.f32 0.0, %v4237
      %v4239 = vpop.f32.mrf.mxu0
      %4240 = vmatprep.mubr.bf16.mxu0 0
      %4241 = vmatmul.mubr.bf16.gmra.mxu0 %v3527
      %v4242 = vpop.f32.mrf.mxu0
      %v4243 = vadd.f32 0.0, %v4242
      %v4244 = vpop.f32.mrf.mxu0
      %v4245 = vpop.f32.mrf.mxu0
      %v4246 = vadd.f32 0.0, %v4245
      %v4247 = vpop.f32.mrf.mxu0
      %4248 = vmatprep.mubr.bf16.mxu0 0
      %4249 = vmatmul.mubr.bf16.gmra.mxu0 %v3530
      %v4250 = vpop.f32.mrf.mxu0
      %v4251 = vadd.f32 0.0, %v4250
      %v4252 = vpop.f32.mrf.mxu0
      %v4253 = vpop.f32.mrf.mxu0
      %v4254 = vadd.f32 0.0, %v4253
      %v4255 = vpop.f32.mrf.mxu0
      %4256 = vmatprep.mubr.bf16.mxu0 0
      %4257 = vmatmul.mubr.bf16.gmra.mxu0 %v3533
      %v4258 = vpop.f32.mrf.mxu0
      %v4259 = vadd.f32 0.0, %v4258
      %v4260 = vpop.f32.mrf.mxu0
      %v4261 = vpop.f32.mrf.mxu0
      %v4262 = vadd.f32 0.0, %v4261
      %v4263 = vpop.f32.mrf.mxu0
      %4264 = vmatprep.mubr.bf16.mxu0 0
      %4265 = vmatmul.mubr.bf16.gmra.mxu0 %v3536
      %v4266 = vpop.f32.mrf.mxu0
      %v4267 = vadd.f32 0.0, %v4266
      %v4268 = vpop.f32.mrf.mxu0
      %v4269 = vpop.f32.mrf.mxu0
      %v4270 = vadd.f32 0.0, %v4269
      %v4271 = vpop.f32.mrf.mxu0
      %4272 = vmatprep.mubr.bf16.mxu0 0
      %4273 = vmatmul.mubr.bf16.gmra.mxu0 %v3539
      %v4274 = vpop.f32.mrf.mxu0
      %v4275 = vadd.f32 0.0, %v4274
      %v4276 = vpop.f32.mrf.mxu0
      %v4277 = vpop.f32.mrf.mxu0
      %v4278 = vadd.f32 0.0, %v4277
      %v4279 = vpop.f32.mrf.mxu0
      %4280 = vmatprep.mubr.bf16.mxu0 0
      %4281 = vmatmul.mubr.bf16.gmra.mxu0 %v3542
      %v4282 = vpop.f32.mrf.mxu0
      %v4283 = vadd.f32 0.0, %v4282
      %v4284 = vpop.f32.mrf.mxu0
      %v4285 = vpop.f32.mrf.mxu0
      %v4286 = vadd.f32 0.0, %v4285
      %v4287 = vpop.f32.mrf.mxu0
      %4288 = vmatprep.mubr.bf16.mxu0 0
      %4289 = vmatmul.mubr.bf16.gmra.mxu0 %v3545
      %v4290 = vpop.f32.mrf.mxu0
      %v4291 = vadd.f32 0.0, %v4290
      %v4292 = vpop.f32.mrf.mxu0
      %v4293 = vpop.f32.mrf.mxu0
      %v4294 = vadd.f32 0.0, %v4293
      %v4295 = vpop.f32.mrf.mxu0
      %4296 = vmatprep.mubr.bf16.mxu0 0
      %4297 = vmatmul.mubr.bf16.gmra.mxu0 %v3548
      %v4298 = vpop.f32.mrf.mxu0
      %v4299 = vadd.f32 0.0, %v4298
      %v4300 = vpop.f32.mrf.mxu0
      %v4301 = vpop.f32.mrf.mxu0
      %v4302 = vadd.f32 0.0, %v4301
      %v4303 = vpop.f32.mrf.mxu0
      %4304 = vmatprep.mubr.bf16.mxu0 0
      %4305 = vmatmul.mubr.bf16.gmra.mxu0 %v3551
      %v4306 = vpop.f32.mrf.mxu0
      %v4307 = vadd.f32 0.0, %v4306
      %v4308 = vpop.f32.mrf.mxu0
      %v4309 = vpop.f32.mrf.mxu0
      %v4310 = vadd.f32 0.0, %v4309
      %v4311 = vpop.f32.mrf.mxu0
      %4312 = vmatprep.mubr.bf16.mxu0 0
      %4313 = vmatmul.mubr.bf16.gmra.mxu0 %v3554
      %v4314 = vpop.f32.mrf.mxu0
      %v4315 = vadd.f32 0.0, %v4314
      %v4316 = vpop.f32.mrf.mxu0
      %v4317 = vpop.f32.mrf.mxu0
      %v4318 = vadd.f32 0.0, %v4317
      %v4319 = vpop.f32.mrf.mxu0
      %4320 = vmatprep.mubr.bf16.mxu0 0
      %4321 = vmatmul.mubr.bf16.gmra.mxu0 %v3557
      %v4322 = vpop.f32.mrf.mxu0
      %v4323 = vadd.f32 0.0, %v4322
      %v4324 = vpop.f32.mrf.mxu0
      %v4325 = vpop.f32.mrf.mxu0
      %v4326 = vadd.f32 0.0, %v4325
      %v4327 = vpop.f32.mrf.mxu0
      %4328 = vmatprep.mubr.bf16.mxu0 0
      %4329 = vmatmul.mubr.bf16.gmra.mxu0 %v3560
      %v4330 = vpop.f32.mrf.mxu0
      %v4331 = vadd.f32 0.0, %v4330
      %v4332 = vpop.f32.mrf.mxu0
      %v4333 = vpop.f32.mrf.mxu0
      %v4334 = vadd.f32 0.0, %v4333
      %v4335 = vpop.f32.mrf.mxu0
      %4336 = vmatprep.mubr.bf16.mxu0 0
      %4337 = vmatmul.mubr.bf16.gmra.mxu0 %v4179
      %v4338 = vpop.f32.mrf.mxu0
      %v4339 = vadd.f32 0.0, %v4338
      %v4340 = vpop.f32.mrf.mxu0
      %v4341 = vpop.f32.mrf.mxu0
      %v4342 = vadd.f32 0.0, %v4341
      %v4343 = vpop.f32.mrf.mxu0
      %4344 = vdwg.mxu0
      %v4345 = vadd.f32 %v4139, %v4219
      %v4346 = vadd.f32 %v4140, %v4222
      %v4347 = vadd.f32 %v4141, %v4227
      %v4348 = vadd.f32 %v4142, %v4230
      %v4349 = vadd.f32 %v4143, %v4235
      %v4350 = vadd.f32 %v4144, %v4238
      %v4351 = vadd.f32 %v4145, %v4243
      %v4352 = vadd.f32 %v4146, %v4246
      %v4353 = vadd.f32 %v4147, %v4251
      %v4354 = vadd.f32 %v4148, %v4254
      %v4355 = vadd.f32 %v4149, %v4259
      %v4356 = vadd.f32 %v4150, %v4262
      %v4357 = vadd.f32 %v4151, %v4267
      %v4358 = vadd.f32 %v4152, %v4270
      %v4359 = vadd.f32 %v4153, %v4275
      %v4360 = vadd.f32 %v4154, %v4278
      %v4361 = vadd.f32 %v4155, %v4283
      %v4362 = vadd.f32 %v4156, %v4286
      %v4363 = vadd.f32 %v4157, %v4291
      %v4364 = vadd.f32 %v4158, %v4294
      %v4365 = vadd.f32 %v4159, %v4299
      %v4366 = vadd.f32 %v4160, %v4302
      %v4367 = vadd.f32 %v4161, %v4307
      %v4368 = vadd.f32 %v4162, %v4310
      %v4369 = vadd.f32 %v4163, %v4315
      %v4370 = vadd.f32 %v4164, %v4318
      %v4371 = vadd.f32 %v4165, %v4323
      %v4372 = vadd.f32 %v4166, %v4326
      %v4373 = vadd.f32 %v4167, %v4331
      %v4374 = vadd.f32 %v4168, %v4334
      %v4375 = vadd.f32 %v4169, %v4339
      %v4376 = vadd.f32 %v4170, %v4342
      %s4377 = scalar_lea.vmem %s4, 12
      %v4378 = vld [vmem:[%s4377] sm:$0x3]
      %v4380 = vsel %vm566, %v2827, 0
      %v4383 = vsel %vm615, %v4378, 0
      %4385 = vmatprep.subr.bf16.mxu0 0
      %4386 = vmatpush1.bf16.msra.mxu0 0
      %4387 = vmatprep.subr.bf16.mxu0 0
      %4388 = vmatpush1.bf16.msra.mxu0 0
      %4389 = vmatprep.subr.bf16.mxu0 0
      %4390 = vmatpush1.bf16.msra.mxu0 0
      %4391 = vmatprep.subr.bf16.mxu0 0
      %4392 = vmatpush1.bf16.msra.mxu0 0
      %4393 = vmatprep.subr.bf16.mxu0 0
      %4394 = vmatpush1.bf16.msra.mxu0 0
      %4395 = vmatprep.subr.bf16.mxu0 0
      %4396 = vmatpush1.bf16.msra.mxu0 0
      %4397 = vmatprep.subr.bf16.mxu0 0
      %4398 = vmatpush1.bf16.msra.mxu0 0
      %4399 = vmatprep.subr.bf16.mxu0 0
      %4400 = vmatpush1.bf16.msra.mxu0 %v4383
      %4401 = vmatprep.subr.bf16.mxu0 0
      %4402 = vmatpush2.bf16.msra.mxu0 0
      %4403 = vmatprep.subr.bf16.mxu0 0
      %4404 = vmatpush2.bf16.msra.mxu0 0
      %4405 = vmatprep.subr.bf16.mxu0 0
      %4406 = vmatpush2.bf16.msra.mxu0 0
      %4407 = vmatprep.subr.bf16.mxu0 0
      %4408 = vmatpush2.bf16.msra.mxu0 0
      %4409 = vmatprep.subr.bf16.mxu0 0
      %4410 = vmatpush2.bf16.msra.mxu0 0
      %4411 = vmatprep.subr.bf16.mxu0 0
      %4412 = vmatpush2.bf16.msra.mxu0 0
      %4413 = vmatprep.subr.bf16.mxu0 0
      %4414 = vmatpush2.bf16.msra.mxu0 0
      %4415 = vmatprep.subr.bf16.mxu0 0
      %4416 = vmatpush2.bf16.msra.mxu0 0
      %4417 = vmatprep.mubr.bf16.mxu0 0
      %4418 = vmatmul.mubr.bf16.gmra.mxu0 %v3240
      %v4419 = vpop.f32.mrf.mxu0
      %v4420 = vadd.f32 0.0, %v4419
      %v4421 = vpop.f32.mrf.mxu0
      %v4422 = vpop.f32.mrf.mxu0
      %v4423 = vadd.f32 0.0, %v4422
      %v4424 = vpop.f32.mrf.mxu0
      %4425 = vmatprep.mubr.bf16.mxu0 0
      %4426 = vmatmul.mubr.bf16.gmra.mxu0 %v3242
      %v4427 = vpop.f32.mrf.mxu0
      %v4428 = vadd.f32 0.0, %v4427
      %v4429 = vpop.f32.mrf.mxu0
      %v4430 = vpop.f32.mrf.mxu0
      %v4431 = vadd.f32 0.0, %v4430
      %v4432 = vpop.f32.mrf.mxu0
      %4433 = vmatprep.mubr.bf16.mxu0 0
      %4434 = vmatmul.mubr.bf16.gmra.mxu0 %v3244
      %v4435 = vpop.f32.mrf.mxu0
      %v4436 = vadd.f32 0.0, %v4435
      %v4437 = vpop.f32.mrf.mxu0
      %v4438 = vpop.f32.mrf.mxu0
      %v4439 = vadd.f32 0.0, %v4438
      %v4440 = vpop.f32.mrf.mxu0
      %4441 = vmatprep.mubr.bf16.mxu0 0
      %4442 = vmatmul.mubr.bf16.gmra.mxu0 %v3246
      %v4443 = vpop.f32.mrf.mxu0
      %v4444 = vadd.f32 0.0, %v4443
      %v4445 = vpop.f32.mrf.mxu0
      %v4446 = vpop.f32.mrf.mxu0
      %v4447 = vadd.f32 0.0, %v4446
      %v4448 = vpop.f32.mrf.mxu0
      %4449 = vmatprep.mubr.bf16.mxu0 0
      %4450 = vmatmul.mubr.bf16.gmra.mxu0 %v3248
      %v4451 = vpop.f32.mrf.mxu0
      %v4452 = vadd.f32 0.0, %v4451
      %v4453 = vpop.f32.mrf.mxu0
      %v4454 = vpop.f32.mrf.mxu0
      %v4455 = vadd.f32 0.0, %v4454
      %v4456 = vpop.f32.mrf.mxu0
      %4457 = vmatprep.mubr.bf16.mxu0 0
      %4458 = vmatmul.mubr.bf16.gmra.mxu0 %v3250
      %v4459 = vpop.f32.mrf.mxu0
      %v4460 = vadd.f32 0.0, %v4459
      %v4461 = vpop.f32.mrf.mxu0
      %v4462 = vpop.f32.mrf.mxu0
      %v4463 = vadd.f32 0.0, %v4462
      %v4464 = vpop.f32.mrf.mxu0
      %4465 = vmatprep.mubr.bf16.mxu0 0
      %4466 = vmatmul.mubr.bf16.gmra.mxu0 %v3252
      %v4467 = vpop.f32.mrf.mxu0
      %v4468 = vadd.f32 0.0, %v4467
      %v4469 = vpop.f32.mrf.mxu0
      %v4470 = vpop.f32.mrf.mxu0
      %v4471 = vadd.f32 0.0, %v4470
      %v4472 = vpop.f32.mrf.mxu0
      %4473 = vmatprep.mubr.bf16.mxu0 0
      %4474 = vmatmul.mubr.bf16.gmra.mxu0 %v3254
      %v4475 = vpop.f32.mrf.mxu0
      %v4476 = vadd.f32 0.0, %v4475
      %v4477 = vpop.f32.mrf.mxu0
      %v4478 = vpop.f32.mrf.mxu0
      %v4479 = vadd.f32 0.0, %v4478
      %v4480 = vpop.f32.mrf.mxu0
      %4481 = vmatprep.mubr.bf16.mxu0 0
      %4482 = vmatmul.mubr.bf16.gmra.mxu0 %v3256
      %v4483 = vpop.f32.mrf.mxu0
      %v4484 = vadd.f32 0.0, %v4483
      %v4485 = vpop.f32.mrf.mxu0
      %v4486 = vpop.f32.mrf.mxu0
      %v4487 = vadd.f32 0.0, %v4486
      %v4488 = vpop.f32.mrf.mxu0
      %4489 = vmatprep.mubr.bf16.mxu0 0
      %4490 = vmatmul.mubr.bf16.gmra.mxu0 %v3258
      %v4491 = vpop.f32.mrf.mxu0
      %v4492 = vadd.f32 0.0, %v4491
      %v4493 = vpop.f32.mrf.mxu0
      %v4494 = vpop.f32.mrf.mxu0
      %v4495 = vadd.f32 0.0, %v4494
      %v4496 = vpop.f32.mrf.mxu0
      %4497 = vmatprep.mubr.bf16.mxu0 0
      %4498 = vmatmul.mubr.bf16.gmra.mxu0 %v3260
      %v4499 = vpop.f32.mrf.mxu0
      %v4500 = vadd.f32 0.0, %v4499
      %v4501 = vpop.f32.mrf.mxu0
      %v4502 = vpop.f32.mrf.mxu0
      %v4503 = vadd.f32 0.0, %v4502
      %v4504 = vpop.f32.mrf.mxu0
      %4505 = vmatprep.mubr.bf16.mxu0 0
      %4506 = vmatmul.mubr.bf16.gmra.mxu0 %v3262
      %v4507 = vpop.f32.mrf.mxu0
      %v4508 = vadd.f32 0.0, %v4507
      %v4509 = vpop.f32.mrf.mxu0
      %v4510 = vpop.f32.mrf.mxu0
      %v4511 = vadd.f32 0.0, %v4510
      %v4512 = vpop.f32.mrf.mxu0
      %4513 = vmatprep.mubr.bf16.mxu0 0
      %4514 = vmatmul.mubr.bf16.gmra.mxu0 %v3264
      %v4515 = vpop.f32.mrf.mxu0
      %v4516 = vadd.f32 0.0, %v4515
      %v4517 = vpop.f32.mrf.mxu0
      %v4518 = vpop.f32.mrf.mxu0
      %v4519 = vadd.f32 0.0, %v4518
      %v4520 = vpop.f32.mrf.mxu0
      %4521 = vmatprep.mubr.bf16.mxu0 0
      %4522 = vmatmul.mubr.bf16.gmra.mxu0 %v3266
      %v4523 = vpop.f32.mrf.mxu0
      %v4524 = vadd.f32 0.0, %v4523
      %v4525 = vpop.f32.mrf.mxu0
      %v4526 = vpop.f32.mrf.mxu0
      %v4527 = vadd.f32 0.0, %v4526
      %v4528 = vpop.f32.mrf.mxu0
      %4529 = vmatprep.mubr.bf16.mxu0 0
      %4530 = vmatmul.mubr.bf16.gmra.mxu0 %v3761
      %v4531 = vpop.f32.mrf.mxu0
      %v4532 = vadd.f32 0.0, %v4531
      %v4533 = vpop.f32.mrf.mxu0
      %v4534 = vpop.f32.mrf.mxu0
      %v4535 = vadd.f32 0.0, %v4534
      %v4536 = vpop.f32.mrf.mxu0
      %4537 = vmatprep.mubr.bf16.mxu0 0
      %4538 = vmatmul.mubr.bf16.gmra.mxu0 %v4380
      %v4539 = vpop.f32.mrf.mxu0
      %v4540 = vadd.f32 0.0, %v4539
      %v4541 = vpop.f32.mrf.mxu0
      %v4542 = vpop.f32.mrf.mxu0
      %v4543 = vadd.f32 0.0, %v4542
      %v4544 = vpop.f32.mrf.mxu0
      %4545 = vdwg.mxu0
      %v4546 = vadd.f32 %v4345, %v4420
      %v4547 = vadd.f32 %v4346, %v4423
      %v4548 = vadd.f32 %v4347, %v4428
      %v4549 = vadd.f32 %v4348, %v4431
      %v4550 = vadd.f32 %v4349, %v4436
      %v4551 = vadd.f32 %v4350, %v4439
      %v4552 = vadd.f32 %v4351, %v4444
      %v4553 = vadd.f32 %v4352, %v4447
      %v4554 = vadd.f32 %v4353, %v4452
      %v4555 = vadd.f32 %v4354, %v4455
      %v4556 = vadd.f32 %v4355, %v4460
      %v4557 = vadd.f32 %v4356, %v4463
      %v4558 = vadd.f32 %v4357, %v4468
      %v4559 = vadd.f32 %v4358, %v4471
      %v4560 = vadd.f32 %v4359, %v4476
      %v4561 = vadd.f32 %v4360, %v4479
      %v4562 = vadd.f32 %v4361, %v4484
      %v4563 = vadd.f32 %v4362, %v4487
      %v4564 = vadd.f32 %v4363, %v4492
      %v4565 = vadd.f32 %v4364, %v4495
      %v4566 = vadd.f32 %v4365, %v4500
      %v4567 = vadd.f32 %v4366, %v4503
      %v4568 = vadd.f32 %v4367, %v4508
      %v4569 = vadd.f32 %v4368, %v4511
      %v4570 = vadd.f32 %v4369, %v4516
      %v4571 = vadd.f32 %v4370, %v4519
      %v4572 = vadd.f32 %v4371, %v4524
      %v4573 = vadd.f32 %v4372, %v4527
      %v4574 = vadd.f32 %v4373, %v4532
      %v4575 = vadd.f32 %v4374, %v4535
      %v4576 = vadd.f32 %v4375, %v4540
      %v4577 = vadd.f32 %v4376, %v4543
      %v4578 = vshrl.u32 %v2827, 16
      %v4580 = vshll.u32 %v2827, 16
      %v4582 = vrot.slane %v4580, 1
      %v4583 = vor.u32 %v4578, %v4582
      %v4585 = vshll.u32 %v2828, 16
      %v4587 = vrot.slane %v4585, 1
      %v4588 = vsel %vm371, %v4583, %v4587
      %s4589 = scalar_lea.vmem %s4, 14
      %v4590 = vld [vmem:[%s4589] sm:$0x3]
      %v4592 = vsel %vm566, %v4588, 0
      %v4595 = vsel %vm615, %v4590, 0
      %4597 = vmatprep.subr.bf16.mxu0 0
      %4598 = vmatpush1.bf16.msra.mxu0 0
      %4599 = vmatprep.subr.bf16.mxu0 0
      %4600 = vmatpush1.bf16.msra.mxu0 0
      %4601 = vmatprep.subr.bf16.mxu0 0
      %4602 = vmatpush1.bf16.msra.mxu0 0
      %4603 = vmatprep.subr.bf16.mxu0 0
      %4604 = vmatpush1.bf16.msra.mxu0 0
      %4605 = vmatprep.subr.bf16.mxu0 0
      %4606 = vmatpush1.bf16.msra.mxu0 0
      %4607 = vmatprep.subr.bf16.mxu0 0
      %4608 = vmatpush1.bf16.msra.mxu0 0
      %4609 = vmatprep.subr.bf16.mxu0 0
      %4610 = vmatpush1.bf16.msra.mxu0 0
      %4611 = vmatprep.subr.bf16.mxu0 0
      %4612 = vmatpush1.bf16.msra.mxu0 %v4595
      %4613 = vmatprep.subr.bf16.mxu0 0
      %4614 = vmatpush2.bf16.msra.mxu0 0
      %4615 = vmatprep.subr.bf16.mxu0 0
      %4616 = vmatpush2.bf16.msra.mxu0 0
      %4617 = vmatprep.subr.bf16.mxu0 0
      %4618 = vmatpush2.bf16.msra.mxu0 0
      %4619 = vmatprep.subr.bf16.mxu0 0
      %4620 = vmatpush2.bf16.msra.mxu0 0
      %4621 = vmatprep.subr.bf16.mxu0 0
      %4622 = vmatpush2.bf16.msra.mxu0 0
      %4623 = vmatprep.subr.bf16.mxu0 0
      %4624 = vmatpush2.bf16.msra.mxu0 0
      %4625 = vmatprep.subr.bf16.mxu0 0
      %4626 = vmatpush2.bf16.msra.mxu0 0
      %4627 = vmatprep.subr.bf16.mxu0 0
      %4628 = vmatpush2.bf16.msra.mxu0 0
      %4629 = vmatprep.mubr.bf16.mxu0 0
      %4630 = vmatmul.mubr.bf16.gmra.mxu0 %v3031
      %v4631 = vpop.f32.mrf.mxu0
      %v4632 = vadd.f32 0.0, %v4631
      %v4633 = vpop.f32.mrf.mxu0
      %v4634 = vpop.f32.mrf.mxu0
      %v4635 = vadd.f32 0.0, %v4634
      %v4636 = vpop.f32.mrf.mxu0
      %4637 = vmatprep.mubr.bf16.mxu0 0
      %4638 = vmatmul.mubr.bf16.gmra.mxu0 %v3034
      %v4639 = vpop.f32.mrf.mxu0
      %v4640 = vadd.f32 0.0, %v4639
      %v4641 = vpop.f32.mrf.mxu0
      %v4642 = vpop.f32.mrf.mxu0
      %v4643 = vadd.f32 0.0, %v4642
      %v4644 = vpop.f32.mrf.mxu0
      %4645 = vmatprep.mubr.bf16.mxu0 0
      %4646 = vmatmul.mubr.bf16.gmra.mxu0 %v3037
      %v4647 = vpop.f32.mrf.mxu0
      %v4648 = vadd.f32 0.0, %v4647
      %v4649 = vpop.f32.mrf.mxu0
      %v4650 = vpop.f32.mrf.mxu0
      %v4651 = vadd.f32 0.0, %v4650
      %v4652 = vpop.f32.mrf.mxu0
      %4653 = vmatprep.mubr.bf16.mxu0 0
      %4654 = vmatmul.mubr.bf16.gmra.mxu0 %v3040
      %v4655 = vpop.f32.mrf.mxu0
      %v4656 = vadd.f32 0.0, %v4655
      %v4657 = vpop.f32.mrf.mxu0
      %v4658 = vpop.f32.mrf.mxu0
      %v4659 = vadd.f32 0.0, %v4658
      %v4660 = vpop.f32.mrf.mxu0
      %4661 = vmatprep.mubr.bf16.mxu0 0
      %4662 = vmatmul.mubr.bf16.gmra.mxu0 %v3043
      %v4663 = vpop.f32.mrf.mxu0
      %v4664 = vadd.f32 0.0, %v4663
      %v4665 = vpop.f32.mrf.mxu0
      %v4666 = vpop.f32.mrf.mxu0
      %v4667 = vadd.f32 0.0, %v4666
      %v4668 = vpop.f32.mrf.mxu0
      %4669 = vmatprep.mubr.bf16.mxu0 0
      %4670 = vmatmul.mubr.bf16.gmra.mxu0 %v3046
      %v4671 = vpop.f32.mrf.mxu0
      %v4672 = vadd.f32 0.0, %v4671
      %v4673 = vpop.f32.mrf.mxu0
      %v4674 = vpop.f32.mrf.mxu0
      %v4675 = vadd.f32 0.0, %v4674
      %v4676 = vpop.f32.mrf.mxu0
      %4677 = vmatprep.mubr.bf16.mxu0 0
      %4678 = vmatmul.mubr.bf16.gmra.mxu0 %v3049
      %v4679 = vpop.f32.mrf.mxu0
      %v4680 = vadd.f32 0.0, %v4679
      %v4681 = vpop.f32.mrf.mxu0
      %v4682 = vpop.f32.mrf.mxu0
      %v4683 = vadd.f32 0.0, %v4682
      %v4684 = vpop.f32.mrf.mxu0
      %4685 = vmatprep.mubr.bf16.mxu0 0
      %4686 = vmatmul.mubr.bf16.gmra.mxu0 %v3052
      %v4687 = vpop.f32.mrf.mxu0
      %v4688 = vadd.f32 0.0, %v4687
      %v4689 = vpop.f32.mrf.mxu0
      %v4690 = vpop.f32.mrf.mxu0
      %v4691 = vadd.f32 0.0, %v4690
      %v4692 = vpop.f32.mrf.mxu0
      %4693 = vmatprep.mubr.bf16.mxu0 0
      %4694 = vmatmul.mubr.bf16.gmra.mxu0 %v3055
      %v4695 = vpop.f32.mrf.mxu0
      %v4696 = vadd.f32 0.0, %v4695
      %v4697 = vpop.f32.mrf.mxu0
      %v4698 = vpop.f32.mrf.mxu0
      %v4699 = vadd.f32 0.0, %v4698
      %v4700 = vpop.f32.mrf.mxu0
      %4701 = vmatprep.mubr.bf16.mxu0 0
      %4702 = vmatmul.mubr.bf16.gmra.mxu0 %v3058
      %v4703 = vpop.f32.mrf.mxu0
      %v4704 = vadd.f32 0.0, %v4703
      %v4705 = vpop.f32.mrf.mxu0
      %v4706 = vpop.f32.mrf.mxu0
      %v4707 = vadd.f32 0.0, %v4706
      %v4708 = vpop.f32.mrf.mxu0
      %4709 = vmatprep.mubr.bf16.mxu0 0
      %4710 = vmatmul.mubr.bf16.gmra.mxu0 %v3061
      %v4711 = vpop.f32.mrf.mxu0
      %v4712 = vadd.f32 0.0, %v4711
      %v4713 = vpop.f32.mrf.mxu0
      %v4714 = vpop.f32.mrf.mxu0
      %v4715 = vadd.f32 0.0, %v4714
      %v4716 = vpop.f32.mrf.mxu0
      %4717 = vmatprep.mubr.bf16.mxu0 0
      %4718 = vmatmul.mubr.bf16.gmra.mxu0 %v3064
      %v4719 = vpop.f32.mrf.mxu0
      %v4720 = vadd.f32 0.0, %v4719
      %v4721 = vpop.f32.mrf.mxu0
      %v4722 = vpop.f32.mrf.mxu0
      %v4723 = vadd.f32 0.0, %v4722
      %v4724 = vpop.f32.mrf.mxu0
      %4725 = vmatprep.mubr.bf16.mxu0 0
      %4726 = vmatmul.mubr.bf16.gmra.mxu0 %v3067
      %v4727 = vpop.f32.mrf.mxu0
      %v4728 = vadd.f32 0.0, %v4727
      %v4729 = vpop.f32.mrf.mxu0
      %v4730 = vpop.f32.mrf.mxu0
      %v4731 = vadd.f32 0.0, %v4730
      %v4732 = vpop.f32.mrf.mxu0
      %4733 = vmatprep.mubr.bf16.mxu0 0
      %4734 = vmatmul.mubr.bf16.gmra.mxu0 %v3070
      %v4735 = vpop.f32.mrf.mxu0
      %v4736 = vadd.f32 0.0, %v4735
      %v4737 = vpop.f32.mrf.mxu0
      %v4738 = vpop.f32.mrf.mxu0
      %v4739 = vadd.f32 0.0, %v4738
      %v4740 = vpop.f32.mrf.mxu0
      %4741 = vmatprep.mubr.bf16.mxu0 0
      %4742 = vmatmul.mubr.bf16.gmra.mxu0 %v3973
      %v4743 = vpop.f32.mrf.mxu0
      %v4744 = vadd.f32 0.0, %v4743
      %v4745 = vpop.f32.mrf.mxu0
      %v4746 = vpop.f32.mrf.mxu0
      %v4747 = vadd.f32 0.0, %v4746
      %v4748 = vpop.f32.mrf.mxu0
      %4749 = vmatprep.mubr.bf16.mxu0 0
      %4750 = vmatmul.mubr.bf16.gmra.mxu0 %v4592
      %v4751 = vpop.f32.mrf.mxu0
      %v4752 = vadd.f32 0.0, %v4751
      %v4753 = vpop.f32.mrf.mxu0
      %v4754 = vpop.f32.mrf.mxu0
      %v4755 = vadd.f32 0.0, %v4754
      %v4756 = vpop.f32.mrf.mxu0
      %4757 = vdwg.mxu0
      %v4758 = vadd.f32 %v4546, %v4632
      %v4759 = vadd.f32 %v4547, %v4635
      %v4760 = vadd.f32 %v4548, %v4640
      %v4761 = vadd.f32 %v4549, %v4643
      %v4762 = vadd.f32 %v4550, %v4648
      %v4763 = vadd.f32 %v4551, %v4651
      %v4764 = vadd.f32 %v4552, %v4656
      %v4765 = vadd.f32 %v4553, %v4659
      %v4766 = vadd.f32 %v4554, %v4664
      %v4767 = vadd.f32 %v4555, %v4667
      %v4768 = vadd.f32 %v4556, %v4672
      %v4769 = vadd.f32 %v4557, %v4675
      %v4770 = vadd.f32 %v4558, %v4680
      %v4771 = vadd.f32 %v4559, %v4683
      %v4772 = vadd.f32 %v4560, %v4688
      %v4773 = vadd.f32 %v4561, %v4691
      %v4774 = vadd.f32 %v4562, %v4696
      %v4775 = vadd.f32 %v4563, %v4699
      %v4776 = vadd.f32 %v4564, %v4704
      %v4777 = vadd.f32 %v4565, %v4707
      %v4778 = vadd.f32 %v4566, %v4712
      %v4779 = vadd.f32 %v4567, %v4715
      %v4780 = vadd.f32 %v4568, %v4720
      %v4781 = vadd.f32 %v4569, %v4723
      %v4782 = vadd.f32 %v4570, %v4728
      %v4783 = vadd.f32 %v4571, %v4731
      %v4784 = vadd.f32 %v4572, %v4736
      %v4785 = vadd.f32 %v4573, %v4739
      %v4786 = vadd.f32 %v4574, %v4744
      %v4787 = vadd.f32 %v4575, %v4747
      %v4788 = vadd.f32 %v4576, %v4752
      %v4789 = vadd.f32 %v4577, %v4755
      %v4792 = vrot.slane %v2827, 1
      %v4793 = vrot.slane %v2828, 1
      %v4794 = vsel %vm1008, %v4792, %v4793
      %s4795 = scalar_lea.vmem %s4, 16
      %v4796 = vld [vmem:[%s4795] sm:$0x3]
      %v4798 = vsel %vm566, %v4794, 0
      %v4801 = vsel %vm615, %v4796, 0
      %4803 = vmatprep.subr.bf16.mxu0 0
      %4804 = vmatpush1.bf16.msra.mxu0 0
      %4805 = vmatprep.subr.bf16.mxu0 0
      %4806 = vmatpush1.bf16.msra.mxu0 0
      %4807 = vmatprep.subr.bf16.mxu0 0
      %4808 = vmatpush1.bf16.msra.mxu0 0
      %4809 = vmatprep.subr.bf16.mxu0 0
      %4810 = vmatpush1.bf16.msra.mxu0 0
      %4811 = vmatprep.subr.bf16.mxu0 0
      %4812 = vmatpush1.bf16.msra.mxu0 0
      %4813 = vmatprep.subr.bf16.mxu0 0
      %4814 = vmatpush1.bf16.msra.mxu0 0
      %4815 = vmatprep.subr.bf16.mxu0 0
      %4816 = vmatpush1.bf16.msra.mxu0 0
      %4817 = vmatprep.subr.bf16.mxu0 0
      %4818 = vmatpush1.bf16.msra.mxu0 %v4801
      %4819 = vmatprep.subr.bf16.mxu0 0
      %4820 = vmatpush2.bf16.msra.mxu0 0
      %4821 = vmatprep.subr.bf16.mxu0 0
      %4822 = vmatpush2.bf16.msra.mxu0 0
      %4823 = vmatprep.subr.bf16.mxu0 0
      %4824 = vmatpush2.bf16.msra.mxu0 0
      %4825 = vmatprep.subr.bf16.mxu0 0
      %4826 = vmatpush2.bf16.msra.mxu0 0
      %4827 = vmatprep.subr.bf16.mxu0 0
      %4828 = vmatpush2.bf16.msra.mxu0 0
      %4829 = vmatprep.subr.bf16.mxu0 0
      %4830 = vmatpush2.bf16.msra.mxu0 0
      %4831 = vmatprep.subr.bf16.mxu0 0
      %4832 = vmatpush2.bf16.msra.mxu0 0
      %4833 = vmatprep.subr.bf16.mxu0 0
      %4834 = vmatpush2.bf16.msra.mxu0 0
      %4835 = vmatprep.mubr.bf16.mxu0 0
      %4836 = vmatmul.mubr.bf16.gmra.mxu0 %v3521
      %v4837 = vpop.f32.mrf.mxu0
      %v4838 = vadd.f32 0.0, %v4837
      %v4839 = vpop.f32.mrf.mxu0
      %v4840 = vpop.f32.mrf.mxu0
      %v4841 = vadd.f32 0.0, %v4840
      %v4842 = vpop.f32.mrf.mxu0
      %4843 = vmatprep.mubr.bf16.mxu0 0
      %4844 = vmatmul.mubr.bf16.gmra.mxu0 %v3524
      %v4845 = vpop.f32.mrf.mxu0
      %v4846 = vadd.f32 0.0, %v4845
      %v4847 = vpop.f32.mrf.mxu0
      %v4848 = vpop.f32.mrf.mxu0
      %v4849 = vadd.f32 0.0, %v4848
      %v4850 = vpop.f32.mrf.mxu0
      %4851 = vmatprep.mubr.bf16.mxu0 0
      %4852 = vmatmul.mubr.bf16.gmra.mxu0 %v3527
      %v4853 = vpop.f32.mrf.mxu0
      %v4854 = vadd.f32 0.0, %v4853
      %v4855 = vpop.f32.mrf.mxu0
      %v4856 = vpop.f32.mrf.mxu0
      %v4857 = vadd.f32 0.0, %v4856
      %v4858 = vpop.f32.mrf.mxu0
      %4859 = vmatprep.mubr.bf16.mxu0 0
      %4860 = vmatmul.mubr.bf16.gmra.mxu0 %v3530
      %v4861 = vpop.f32.mrf.mxu0
      %v4862 = vadd.f32 0.0, %v4861
      %v4863 = vpop.f32.mrf.mxu0
      %v4864 = vpop.f32.mrf.mxu0
      %v4865 = vadd.f32 0.0, %v4864
      %v4866 = vpop.f32.mrf.mxu0
      %4867 = vmatprep.mubr.bf16.mxu0 0
      %4868 = vmatmul.mubr.bf16.gmra.mxu0 %v3533
      %v4869 = vpop.f32.mrf.mxu0
      %v4870 = vadd.f32 0.0, %v4869
      %v4871 = vpop.f32.mrf.mxu0
      %v4872 = vpop.f32.mrf.mxu0
      %v4873 = vadd.f32 0.0, %v4872
      %v4874 = vpop.f32.mrf.mxu0
      %4875 = vmatprep.mubr.bf16.mxu0 0
      %4876 = vmatmul.mubr.bf16.gmra.mxu0 %v3536
      %v4877 = vpop.f32.mrf.mxu0
      %v4878 = vadd.f32 0.0, %v4877
      %v4879 = vpop.f32.mrf.mxu0
      %v4880 = vpop.f32.mrf.mxu0
      %v4881 = vadd.f32 0.0, %v4880
      %v4882 = vpop.f32.mrf.mxu0
      %4883 = vmatprep.mubr.bf16.mxu0 0
      %4884 = vmatmul.mubr.bf16.gmra.mxu0 %v3539
      %v4885 = vpop.f32.mrf.mxu0
      %v4886 = vadd.f32 0.0, %v4885
      %v4887 = vpop.f32.mrf.mxu0
      %v4888 = vpop.f32.mrf.mxu0
      %v4889 = vadd.f32 0.0, %v4888
      %v4890 = vpop.f32.mrf.mxu0
      %4891 = vmatprep.mubr.bf16.mxu0 0
      %4892 = vmatmul.mubr.bf16.gmra.mxu0 %v3542
      %v4893 = vpop.f32.mrf.mxu0
      %v4894 = vadd.f32 0.0, %v4893
      %v4895 = vpop.f32.mrf.mxu0
      %v4896 = vpop.f32.mrf.mxu0
      %v4897 = vadd.f32 0.0, %v4896
      %v4898 = vpop.f32.mrf.mxu0
      %4899 = vmatprep.mubr.bf16.mxu0 0
      %4900 = vmatmul.mubr.bf16.gmra.mxu0 %v3545
      %v4901 = vpop.f32.mrf.mxu0
      %v4902 = vadd.f32 0.0, %v4901
      %v4903 = vpop.f32.mrf.mxu0
      %v4904 = vpop.f32.mrf.mxu0
      %v4905 = vadd.f32 0.0, %v4904
      %v4906 = vpop.f32.mrf.mxu0
      %4907 = vmatprep.mubr.bf16.mxu0 0
      %4908 = vmatmul.mubr.bf16.gmra.mxu0 %v3548
      %v4909 = vpop.f32.mrf.mxu0
      %v4910 = vadd.f32 0.0, %v4909
      %v4911 = vpop.f32.mrf.mxu0
      %v4912 = vpop.f32.mrf.mxu0
      %v4913 = vadd.f32 0.0, %v4912
      %v4914 = vpop.f32.mrf.mxu0
      %4915 = vmatprep.mubr.bf16.mxu0 0
      %4916 = vmatmul.mubr.bf16.gmra.mxu0 %v3551
      %v4917 = vpop.f32.mrf.mxu0
      %v4918 = vadd.f32 0.0, %v4917
      %v4919 = vpop.f32.mrf.mxu0
      %v4920 = vpop.f32.mrf.mxu0
      %v4921 = vadd.f32 0.0, %v4920
      %v4922 = vpop.f32.mrf.mxu0
      %4923 = vmatprep.mubr.bf16.mxu0 0
      %4924 = vmatmul.mubr.bf16.gmra.mxu0 %v3554
      %v4925 = vpop.f32.mrf.mxu0
      %v4926 = vadd.f32 0.0, %v4925
      %v4927 = vpop.f32.mrf.mxu0
      %v4928 = vpop.f32.mrf.mxu0
      %v4929 = vadd.f32 0.0, %v4928
      %v4930 = vpop.f32.mrf.mxu0
      %4931 = vmatprep.mubr.bf16.mxu0 0
      %4932 = vmatmul.mubr.bf16.gmra.mxu0 %v3557
      %v4933 = vpop.f32.mrf.mxu0
      %v4934 = vadd.f32 0.0, %v4933
      %v4935 = vpop.f32.mrf.mxu0
      %v4936 = vpop.f32.mrf.mxu0
      %v4937 = vadd.f32 0.0, %v4936
      %v4938 = vpop.f32.mrf.mxu0
      %4939 = vmatprep.mubr.bf16.mxu0 0
      %4940 = vmatmul.mubr.bf16.gmra.mxu0 %v3560
      %v4941 = vpop.f32.mrf.mxu0
      %v4942 = vadd.f32 0.0, %v4941
      %v4943 = vpop.f32.mrf.mxu0
      %v4944 = vpop.f32.mrf.mxu0
      %v4945 = vadd.f32 0.0, %v4944
      %v4946 = vpop.f32.mrf.mxu0
      %4947 = vmatprep.mubr.bf16.mxu0 0
      %4948 = vmatmul.mubr.bf16.gmra.mxu0 %v4179
      %v4949 = vpop.f32.mrf.mxu0
      %v4950 = vadd.f32 0.0, %v4949
      %v4951 = vpop.f32.mrf.mxu0
      %v4952 = vpop.f32.mrf.mxu0
      %v4953 = vadd.f32 0.0, %v4952
      %v4954 = vpop.f32.mrf.mxu0
      %4955 = vmatprep.mubr.bf16.mxu0 0
      %4956 = vmatmul.mubr.bf16.gmra.mxu0 %v4798
      %v4957 = vpop.f32.mrf.mxu0
      %v4958 = vadd.f32 0.0, %v4957
      %v4959 = vpop.f32.mrf.mxu0
      %v4960 = vpop.f32.mrf.mxu0
      %v4961 = vadd.f32 0.0, %v4960
      %v4962 = vpop.f32.mrf.mxu0
      %4963 = vdwg.mxu0
      %v4964 = vadd.f32 %v4758, %v4838
      %v4965 = vadd.f32 %v4759, %v4841
      %v4966 = vadd.f32 %v4760, %v4846
      %v4967 = vadd.f32 %v4761, %v4849
      %v4968 = vadd.f32 %v4762, %v4854
      %v4969 = vadd.f32 %v4763, %v4857
      %v4970 = vadd.f32 %v4764, %v4862
      %v4971 = vadd.f32 %v4765, %v4865
      %v4972 = vadd.f32 %v4766, %v4870
      %v4973 = vadd.f32 %v4767, %v4873
      %v4974 = vadd.f32 %v4768, %v4878
      %v4975 = vadd.f32 %v4769, %v4881
      %v4976 = vadd.f32 %v4770, %v4886
      %v4977 = vadd.f32 %v4771, %v4889
      %v4978 = vadd.f32 %v4772, %v4894
      %v4979 = vadd.f32 %v4773, %v4897
      %v4980 = vadd.f32 %v4774, %v4902
      %v4981 = vadd.f32 %v4775, %v4905
      %v4982 = vadd.f32 %v4776, %v4910
      %v4983 = vadd.f32 %v4777, %v4913
      %v4984 = vadd.f32 %v4778, %v4918
      %v4985 = vadd.f32 %v4779, %v4921
      %v4986 = vadd.f32 %v4780, %v4926
      %v4987 = vadd.f32 %v4781, %v4929
      %v4988 = vadd.f32 %v4782, %v4934
      %v4989 = vadd.f32 %v4783, %v4937
      %v4990 = vadd.f32 %v4784, %v4942
      %v4991 = vadd.f32 %v4785, %v4945
      %v4992 = vadd.f32 %v4786, %v4950
      %v4993 = vadd.f32 %v4787, %v4953
      %v4994 = vadd.f32 %v4788, %v4958
      %v4995 = vadd.f32 %v4789, %v4961
      %v4996 = vld [vmem:[%s5] sm:$0x1]
      %v4998 = vlaneseq
      %v4999 = vshrl.u32 %v4998, 7
      %v5000 = vsub.s32 0, %v4999
      %v5001 = vrot.slane %v4996, %v5000
      %v5003 = vmul.f32 %v4964, %v5001
      %v5004 = vmul.f32 %v4965, %v5001
      %v5005 = vmul.f32 %v4966, %v5001
      %v5006 = vmul.f32 %v4967, %v5001
      %v5007 = vmul.f32 %v4968, %v5001
      %v5008 = vmul.f32 %v4969, %v5001
      %v5009 = vmul.f32 %v4970, %v5001
      %v5010 = vmul.f32 %v4971, %v5001
      %v5011 = vmul.f32 %v4972, %v5001
      %v5012 = vmul.f32 %v4973, %v5001
      %v5013 = vmul.f32 %v4974, %v5001
      %v5014 = vmul.f32 %v4975, %v5001
      %v5015 = vmul.f32 %v4976, %v5001
      %v5016 = vmul.f32 %v4977, %v5001
      %v5017 = vmul.f32 %v4978, %v5001
      %v5018 = vmul.f32 %v4979, %v5001
      %v5019 = vmul.f32 %v4980, %v5001
      %v5020 = vmul.f32 %v4981, %v5001
      %v5021 = vmul.f32 %v4982, %v5001
      %v5022 = vmul.f32 %v4983, %v5001
      %v5023 = vmul.f32 %v4984, %v5001
      %v5024 = vmul.f32 %v4985, %v5001
      %v5025 = vmul.f32 %v4986, %v5001
      %v5026 = vmul.f32 %v4987, %v5001
      %v5027 = vmul.f32 %v4988, %v5001
      %v5028 = vmul.f32 %v4989, %v5001
      %v5029 = vmul.f32 %v4990, %v5001
      %v5030 = vmul.f32 %v4991, %v5001
      %v5031 = vmul.f32 %v4992, %v5001
      %v5032 = vmul.f32 %v4993, %v5001
      %v5033 = vmul.f32 %v4994, %v5001
      %v5034 = vmul.f32 %v4995, %v5001
      %v5035 = vld [vmem:[%s6] sm:$0x1]
      %v5037 = vlaneseq
      %v5038 = vshrl.u32 %v5037, 7
      %v5039 = vsub.s32 0, %v5038
      %v5040 = vrot.slane %v5035, %v5039
      %v5042 = vadd.f32 %v5003, %v5040
      %v5043 = vadd.f32 %v5004, %v5040
      %v5044 = vadd.f32 %v5005, %v5040
      %v5045 = vadd.f32 %v5006, %v5040
      %v5046 = vadd.f32 %v5007, %v5040
      %v5047 = vadd.f32 %v5008, %v5040
      %v5048 = vadd.f32 %v5009, %v5040
      %v5049 = vadd.f32 %v5010, %v5040
      %v5050 = vadd.f32 %v5011, %v5040
      %v5051 = vadd.f32 %v5012, %v5040
      %v5052 = vadd.f32 %v5013, %v5040
      %v5053 = vadd.f32 %v5014, %v5040
      %v5054 = vadd.f32 %v5015, %v5040
      %v5055 = vadd.f32 %v5016, %v5040
      %v5056 = vadd.f32 %v5017, %v5040
      %v5057 = vadd.f32 %v5018, %v5040
      %v5058 = vadd.f32 %v5019, %v5040
      %v5059 = vadd.f32 %v5020, %v5040
      %v5060 = vadd.f32 %v5021, %v5040
      %v5061 = vadd.f32 %v5022, %v5040
      %v5062 = vadd.f32 %v5023, %v5040
      %v5063 = vadd.f32 %v5024, %v5040
      %v5064 = vadd.f32 %v5025, %v5040
      %v5065 = vadd.f32 %v5026, %v5040
      %v5066 = vadd.f32 %v5027, %v5040
      %v5067 = vadd.f32 %v5028, %v5040
      %v5068 = vadd.f32 %v5029, %v5040
      %v5069 = vadd.f32 %v5030, %v5040
      %v5070 = vadd.f32 %v5031, %v5040
      %v5071 = vadd.f32 %v5032, %v5040
      %v5072 = vadd.f32 %v5033, %v5040
      %v5073 = vadd.f32 %v5034, %v5040
      %vm5122 = vcmask 1046528
      %v5123 = vrot.slane %v283, 1
      %v5124 = vrot.slane %v284, 1
      %v5125 = vsel %vm5122, %v5123, %v5124
      %v5126 = vrot.slane %v285, 1
      %v5127 = vsel %vm5122, %v5124, %v5126
      %v5128 = vrot.slane %v286, 1
      %v5129 = vrot.slane %v287, 1
      %v5130 = vsel %vm5122, %v5128, %v5129
      %v5131 = vrot.slane %v288, 1
      %v5132 = vsel %vm5122, %v5129, %v5131
      %v5133 = vrot.slane %v289, 1
      %v5134 = vrot.slane %v290, 1
      %v5135 = vsel %vm5122, %v5133, %v5134
      %v5136 = vrot.slane %v291, 1
      %v5137 = vsel %vm5122, %v5134, %v5136
      %v5138 = vrot.slane %v292, 1
      %v5139 = vrot.slane %v293, 1
      %v5140 = vsel %vm5122, %v5138, %v5139
      %v5141 = vrot.slane %v294, 1
      %v5142 = vsel %vm5122, %v5139, %v5141
      %v5143 = vrot.slane %v295, 1
      %v5144 = vrot.slane %v296, 1
      %v5145 = vsel %vm5122, %v5143, %v5144
      %v5146 = vrot.slane %v297, 1
      %v5147 = vsel %vm5122, %v5144, %v5146
      %v5148 = vrot.slane %v298, 1
      %v5149 = vrot.slane %v299, 1
      %v5150 = vsel %vm5122, %v5148, %v5149
      %v5151 = vrot.slane %v300, 1
      %v5152 = vsel %vm5122, %v5149, %v5151
      %v5153 = vrot.slane %v301, 1
      %v5154 = vrot.slane %v302, 1
      %v5155 = vsel %vm5122, %v5153, %v5154
      %v5156 = vrot.slane %v303, 1
      %v5157 = vsel %vm5122, %v5154, %v5156
      %v5158 = vrot.slane %v304, 1
      %v5159 = vrot.slane %v305, 1
      %v5160 = vsel %vm5122, %v5158, %v5159
      %v5161 = vrot.slane %v306, 1
      %v5162 = vsel %vm5122, %v5159, %v5161
      %v5163 = vrot.slane %v307, 1
      %v5164 = vrot.slane %v308, 1
      %v5165 = vsel %vm5122, %v5163, %v5164
      %v5166 = vrot.slane %v309, 1
      %v5167 = vsel %vm5122, %v5164, %v5166
      %v5168 = vrot.slane %v310, 1
      %v5169 = vrot.slane %v311, 1
      %v5170 = vsel %vm5122, %v5168, %v5169
      %v5171 = vrot.slane %v312, 1
      %v5172 = vsel %vm5122, %v5169, %v5171
      %v5173 = vrot.slane %v313, 1
      %v5174 = vrot.slane %v314, 1
      %v5175 = vsel %vm5122, %v5173, %v5174
      %v5176 = vrot.slane %v315, 1
      %v5177 = vsel %vm5122, %v5174, %v5176
      %v5178 = vrot.slane %v316, 1
      %v5179 = vrot.slane %v317, 1
      %v5180 = vsel %vm5122, %v5178, %v5179
      %v5181 = vrot.slane %v318, 1
      %v5182 = vsel %vm5122, %v5179, %v5181
      %v5183 = vrot.slane %v319, 1
      %v5184 = vrot.slane %v320, 1
      %v5185 = vsel %vm5122, %v5183, %v5184
      %v5186 = vrot.slane %v321, 1
      %v5187 = vsel %vm5122, %v5184, %v5186
      %v5188 = vrot.slane %v322, 1
      %v5189 = vrot.slane %v323, 1
      %v5190 = vsel %vm5122, %v5188, %v5189
      %v5191 = vrot.slane %v324, 1
      %v5192 = vsel %vm5122, %v5189, %v5191
      %v5193 = vrot.slane %v325, 1
      %v5194 = vrot.slane %v326, 1
      %v5195 = vsel %vm5122, %v5193, %v5194
      %v5196 = vrot.slane %v327, 1
      %v5197 = vsel %vm5122, %v5194, %v5196
      %v5198 = vrot.slane %v328, 1
      %v5199 = vrot.slane %v329, 1
      %v5200 = vsel %vm5122, %v5198, %v5199
      %v5201 = vrot.slane %v330, 1
      %v5202 = vsel %vm5122, %v5199, %v5201
      %v5235 = vadd.f32 %v5042, %v5125
      %v5236 = vadd.f32 %v5043, %v5127
      %v5237 = vadd.f32 %v5044, %v5130
      %v5238 = vadd.f32 %v5045, %v5132
      %v5239 = vadd.f32 %v5046, %v5135
      %v5240 = vadd.f32 %v5047, %v5137
      %v5241 = vadd.f32 %v5048, %v5140
      %v5242 = vadd.f32 %v5049, %v5142
      %v5243 = vadd.f32 %v5050, %v5145
      %v5244 = vadd.f32 %v5051, %v5147
      %v5245 = vadd.f32 %v5052, %v5150
      %v5246 = vadd.f32 %v5053, %v5152
      %v5247 = vadd.f32 %v5054, %v5155
      %v5248 = vadd.f32 %v5055, %v5157
      %v5249 = vadd.f32 %v5056, %v5160
      %v5250 = vadd.f32 %v5057, %v5162
      %v5251 = vadd.f32 %v5058, %v5165
      %v5252 = vadd.f32 %v5059, %v5167
      %v5253 = vadd.f32 %v5060, %v5170
      %v5254 = vadd.f32 %v5061, %v5172
      %v5255 = vadd.f32 %v5062, %v5175
      %v5256 = vadd.f32 %v5063, %v5177
      %v5257 = vadd.f32 %v5064, %v5180
      %v5258 = vadd.f32 %v5065, %v5182
      %v5259 = vadd.f32 %v5066, %v5185
      %v5260 = vadd.f32 %v5067, %v5187
      %v5261 = vadd.f32 %v5068, %v5190
      %v5262 = vadd.f32 %v5069, %v5192
      %v5263 = vadd.f32 %v5070, %v5195
      %v5264 = vadd.f32 %v5071, %v5197
      %v5265 = vadd.f32 %v5072, %v5200
      %v5266 = vadd.f32 %v5073, %v5202
      %v5267 = vmax.f32 %v5235, 0.0
      %v5268 = vmax.f32 %v5236, 0.0
      %v5269 = vmax.f32 %v5237, 0.0
      %v5270 = vmax.f32 %v5238, 0.0
      %v5271 = vmax.f32 %v5239, 0.0
      %v5272 = vmax.f32 %v5240, 0.0
      %v5273 = vmax.f32 %v5241, 0.0
      %v5274 = vmax.f32 %v5242, 0.0
      %v5275 = vmax.f32 %v5243, 0.0
      %v5276 = vmax.f32 %v5244, 0.0
      %v5277 = vmax.f32 %v5245, 0.0
      %v5278 = vmax.f32 %v5246, 0.0
      %v5279 = vmax.f32 %v5247, 0.0
      %v5280 = vmax.f32 %v5248, 0.0
      %v5281 = vmax.f32 %v5249, 0.0
      %v5282 = vmax.f32 %v5250, 0.0
      %v5283 = vmax.f32 %v5251, 0.0
      %v5284 = vmax.f32 %v5252, 0.0
      %v5285 = vmax.f32 %v5253, 0.0
      %v5286 = vmax.f32 %v5254, 0.0
      %v5287 = vmax.f32 %v5255, 0.0
      %v5288 = vmax.f32 %v5256, 0.0
      %v5289 = vmax.f32 %v5257, 0.0
      %v5290 = vmax.f32 %v5258, 0.0
      %v5291 = vmax.f32 %v5259, 0.0
      %v5292 = vmax.f32 %v5260, 0.0
      %v5293 = vmax.f32 %v5261, 0.0
      %v5294 = vmax.f32 %v5262, 0.0
      %v5295 = vmax.f32 %v5263, 0.0
      %v5296 = vmax.f32 %v5264, 0.0
      %v5297 = vmax.f32 %v5265, 0.0
      %v5298 = vmax.f32 %v5266, 0.0
      %5299 = vst.msk [vmem:[%s278] sm:$0xff] %vm566, %v5267
      %5300 = vst.msk [vmem:[%s278 + $0x8] sm:$0xff] %vm566, %v5268
      %5301 = vst.msk [vmem:[%s278 + $0x10] sm:$0xff] %vm566, %v5269
      %5302 = vst.msk [vmem:[%s278 + $0x18] sm:$0xff] %vm566, %v5270
      %5303 = vst.msk [vmem:[%s278 + $0x20] sm:$0xff] %vm566, %v5271
      %5304 = vst.msk [vmem:[%s278 + $0x28] sm:$0xff] %vm566, %v5272
      %5305 = vst.msk [vmem:[%s278 + $0x30] sm:$0xff] %vm566, %v5273
      %5306 = vst.msk [vmem:[%s278 + $0x38] sm:$0xff] %vm566, %v5274
      %5307 = vst.msk [vmem:[%s278 + $0x40] sm:$0xff] %vm566, %v5275
      %5308 = vst.msk [vmem:[%s278 + $0x48] sm:$0xff] %vm566, %v5276
      %5309 = vst.msk [vmem:[%s278 + $0x50] sm:$0xff] %vm566, %v5277
      %5310 = vst.msk [vmem:[%s278 + $0x58] sm:$0xff] %vm566, %v5278
      %5311 = vst.msk [vmem:[%s278 + $0x60] sm:$0xff] %vm566, %v5279
      %5312 = vst.msk [vmem:[%s278 + $0x68] sm:$0xff] %vm566, %v5280
      %5313 = vst.msk [vmem:[%s278 + $0x70] sm:$0xff] %vm566, %v5281
      %5314 = vst.msk [vmem:[%s278 + $0x78] sm:$0xff] %vm566, %v5282
      %5315 = vst.msk [vmem:[%s278 + $0x80] sm:$0xff] %vm566, %v5283
      %5316 = vst.msk [vmem:[%s278 + $0x88] sm:$0xff] %vm566, %v5284
      %5317 = vst.msk [vmem:[%s278 + $0x90] sm:$0xff] %vm566, %v5285
      %5318 = vst.msk [vmem:[%s278 + $0x98] sm:$0xff] %vm566, %v5286
      %5319 = vst.msk [vmem:[%s278 + $0xa0] sm:$0xff] %vm566, %v5287
      %5320 = vst.msk [vmem:[%s278 + $0xa8] sm:$0xff] %vm566, %v5288
      %5321 = vst.msk [vmem:[%s278 + $0xb0] sm:$0xff] %vm566, %v5289
      %5322 = vst.msk [vmem:[%s278 + $0xb8] sm:$0xff] %vm566, %v5290
      %5323 = vst.msk [vmem:[%s278 + $0xc0] sm:$0xff] %vm566, %v5291
      %5324 = vst.msk [vmem:[%s278 + $0xc8] sm:$0xff] %vm566, %v5292
      %5325 = vst.msk [vmem:[%s278 + $0xd0] sm:$0xff] %vm566, %v5293
      %5326 = vst.msk [vmem:[%s278 + $0xd8] sm:$0xff] %vm566, %v5294
      %5327 = vst.msk [vmem:[%s278 + $0xe0] sm:$0xff] %vm566, %v5295
      %5328 = vst.msk [vmem:[%s278 + $0xe8] sm:$0xff] %vm566, %v5296
      %5329 = vst.msk [vmem:[%s278 + $0xf0] sm:$0xff] %vm566, %v5297
      %5330 = vst.msk [vmem:[%s278 + $0xf8] sm:$0xff] %vm566, %v5298
      %p5331 = scmp.lt.s32.totalorder %s18, 1
      %s5332 = scalar_select %p5331, %s18, 1
      %s5333 = smul.addr %s5332, 32
      %s5334 = smul.addr %s5333, 8
      %s5335 = scalar_lea.vmem %s7, %s5334
      // Predicated region
      $region49: #{tpu_custom_call.1} parent=47 // pred_check
        %p5336 = pneg %p188
      $region50: #{tpu_custom_call.1} parent=47 // pred_check_branch
        %5338 = sbr.rel (%p5336) target = $region52
      $region51: #{tpu_custom_call.1} parent=47 // pred_region
        _
      $region52: #{tpu_custom_call.1} parent=47 // pred_fallthru
        _
    $region48: #{tpu_custom_call.1} parent=5 // pred_fallthru
      _
    %p5339 = scmp.le.s32.totalorder 2, %s13
    // Predicated region
    $region53: #{tpu_custom_call.1} parent=5 // pred_check
      %p5340 = pneg %p5339
    $region54: #{tpu_custom_call.1} parent=5 // pred_check_branch
      %5342 = sbr.rel (%p5340) target = $region56
    $region55: #{tpu_custom_call.1} parent=5 // pred_region
      %s5343 = ssub.s32 %s13, 2
      // Predicated region
      $region57: #{tpu_custom_call.1} parent=55 // pred_check
        %p5344 = pneg %p194
      $region58: #{tpu_custom_call.1} parent=55 // pred_check_branch
        %5346 = sbr.rel (%p5344) target = $region60
      $region59: #{tpu_custom_call.1} parent=55 // pred_region
        %p5347 = scmp.lt.s32.totalorder %s19, 1
        %s5348 = scalar_select %p5347, %s19, 1
        %s5349 = smul.addr %s5348, 32
        %s5350 = smul.addr %s5349, 8
        %s5351 = scalar_lea.vmem %s7, %s5350
      $region60: #{tpu_custom_call.1} parent=55 // pred_fallthru
        _
    $region56: #{tpu_custom_call.1} parent=5 // pred_fallthru
      _
  $region6: #{tpu_custom_call.1} parent=0 // loop_footer
    %s17 = sadd.s32 1, %s13
  $region7: #{tpu_custom_call.1} parent=0 // loop_footer_branch
    %12 = sbr.rel target = $region3
  $region8: #{tpu_custom_call.1} parent=0 // loop_exit
    _

</llo_original>
